<compile_context>
chip_gen: v6e
topology: v6e:2x2x1
jax: 0.10.0
libtpu: 0.0.40
codegen_flags: <defaults>
</compile_context>

<pallas_src>
import functools

import jax
import jax.numpy as jnp
from jax import lax
from jax.experimental import pallas as pl
from jax.experimental.pallas import tpu as pltpu

EPS = 1e-5


# --------------------------------------------------------------------------
# in-kernel helpers
# --------------------------------------------------------------------------
def _sum_and_sumsq(y):
  """(H*W, F) -> (2, F): row 0 = sum, row 1 = sum of squares (f32)."""
  return jnp.concatenate(
      [jnp.sum(y, axis=0, keepdims=True),
       jnp.sum(y * y, axis=0, keepdims=True)], axis=0)


def _conv3x3_im2col(a_hwc, pad_ref, w_flat, H, W, C):
  """3x3 'SAME' conv of one image via a zero-halo scratch + one MXU matmul.

  a_hwc:   (H, W, C) activation value.
  pad_ref: (H+2, W+2, C) VMEM scratch (halo ring zeroed here).
  w_flat:  (9*C, F) weights, tap-major (dy, dx), channels fastest.
  Returns (H*W, F) float32.
  """
  zero_row = jnp.zeros((1, W + 2, C), jnp.float32)
  zero_col = jnp.zeros((H, 1, C), jnp.float32)
  # Zero ONLY the halo ring; the interior is fully overwritten below.
  pad_ref[0:1, :, :] = zero_row
  pad_ref[H + 1:H + 2, :, :] = zero_row
  pad_ref[1:H + 1, 0:1, :] = zero_col
  pad_ref[1:H + 1, W + 1:W + 2, :] = zero_col
  pad_ref[1:H + 1, 1:W + 1, :] = a_hwc
  # im2col: lane-concatenate the 9 shifted taps -> one (H*W, 9C) x (9C, F)
  # MXU push (replaces 9 tiny-K dots + 18 masked selects of the old version).
  taps = [pad_ref[dy:dy + H, dx:dx + W, :].reshape(H * W, C)
          for dy in range(3) for dx in range(3)]
  win = jnp.concatenate(taps, axis=1)
  return jnp.dot(win, w_flat, preferred_element_type=jnp.float32)


# --------------------------------------------------------------------------
# kernels (grid = (N,), one image per step)
# --------------------------------------------------------------------------
def _conv1_kernel(x_ref, w_ref, y_ref, st_ref, pad_ref, *, H, W, C, F):
  y = _conv3x3_im2col(x_ref[...], pad_ref, w_ref[...], H, W, C)
  y_ref[...] = y.reshape(H, W, F)
  st_ref[...] = _sum_and_sumsq(y)


def _bnrelu_conv_kernel(a_ref, scale_ref, shift_ref, w_ref, y_ref, st_ref,
                        pad_ref, *, H, W, C, F):
  # Folded training-mode BN (scale/shift precomputed in the wrapper) + ReLU.
  a = jnp.maximum(a_ref[...] * scale_ref[...] + shift_ref[...], 0.0)
  y = _conv3x3_im2col(a, pad_ref, w_ref[...], H, W, C)
  y_ref[...] = y.reshape(H, W, F)
  st_ref[...] = _sum_and_sumsq(y)


def _bnrelu_add_kernel(y2_ref, x_ref, scale_ref, shift_ref, wd_ref, out_ref,
                       *, H, W, C_in, F):
  a2 = jnp.maximum(y2_ref[...].reshape(H * W, F) * scale_ref[...]
                   + shift_ref[...], 0.0)
  iden = jnp.dot(x_ref[...].reshape(H * W, C_in), wd_ref[...],
                 preferred_element_type=jnp.float32)
  out_ref[...] = (a2 + iden).reshape(H, W, F)


# --------------------------------------------------------------------------
# wrapper
# --------------------------------------------------------------------------
def _bn_scale_shift(stats, gamma, beta, count):
  """Fold training-mode BatchNorm into per-channel scale/shift (f32)."""
  s = jnp.sum(stats[:, 0, :], axis=0)
  ss = jnp.sum(stats[:, 1, :], axis=0)
  mean = s / count
  var = jnp.maximum(ss / count - mean * mean, 0.0)   # one-pass, biased var
  rstd = lax.rsqrt(var + EPS)
  scale = gamma.reshape(-1) * rstd
  shift = beta.reshape(-1) - mean * scale
  return scale.reshape(1, -1), shift.reshape(1, -1)


def first_residual_block(x_nchw, params):
  N, C_in, H, W = x_nchw.shape
  F = params["w1"].shape[-1]
  count = jnp.float32(N * H * W)

  x = jnp.transpose(x_nchw, (0, 2, 3, 1)).astype(jnp.float32)   # NHWC
  w1 = params["w1"].reshape(9 * C_in, F).astype(jnp.float32)    # (3,3,Ci,F)->(9Ci,F)
  w2 = params["w2"].reshape(9 * F, F).astype(jnp.float32)
  wd = params["wd"].astype(jnp.float32)

  cparams = pltpu.CompilerParams(
      dimension_semantics=("parallel",),          # shard images across TCs (v7x)
      vmem_limit_bytes=32 * 1024 * 1024)          # safe on v5e/v6e/v7x

  conv_out_shape = (jax.ShapeDtypeStruct((N, H, W, F), jnp.float32),
                    jax.ShapeDtypeStruct((N, 2, F), jnp.float32))
  conv_out_specs = (pl.BlockSpec((None, H, W, F), lambda n: (n, 0, 0, 0)),
                    pl.BlockSpec((None, 2, F), lambda n: (n, 0, 0)))

  # ---- pass 1: conv1 + per-image stats --------------------------------
  y1, st1 = pl.pallas_call(
      functools.partial(_conv1_kernel, H=H, W=W, C=C_in, F=F),
      grid=(N,),
      in_specs=[
          pl.BlockSpec((None, H, W, C_in), lambda n: (n, 0, 0, 0)),
          pl.BlockSpec((9 * C_in, F), lambda n: (0, 0)),
      ],
      out_specs=conv_out_specs,
      out_shape=conv_out_shape,
      scratch_shapes=[pltpu.VMEM((H + 2, W + 2, C_in), jnp.float32)],
      compiler_params=cparams,
  )(x, w1)

  scale1, shift1 = _bn_scale_shift(st1, params["g1"], params["b1"], count)

  # ---- pass 2: BN1+ReLU -> conv2 + per-image stats --------------------
  y2, st2 = pl.pallas_call(
      functools.partial(_bnrelu_conv_kernel, H=H, W=W, C=F, F=F),
      grid=(N,),
      in_specs=[
          pl.BlockSpec((None, H, W, F), lambda n: (n, 0, 0, 0)),
          pl.BlockSpec((1, F), lambda n: (0, 0)),
          pl.BlockSpec((1, F), lambda n: (0, 0)),
          pl.BlockSpec((9 * F, F), lambda n: (0, 0)),
      ],
      out_specs=conv_out_specs,
      out_shape=conv_out_shape,
      scratch_shapes=[pltpu.VMEM((H + 2, W + 2, F), jnp.float32)],
      compiler_params=cparams,
  )(y1, scale1, shift1, w2)

  scale2, shift2 = _bn_scale_shift(st2, params["g2"], params["b2"], count)

  # ---- pass 3: BN2+ReLU + 1x1-conv identity + residual add ------------
  out = pl.pallas_call(
      functools.partial(_bnrelu_add_kernel, H=H, W=W, C_in=C_in, F=F),
      grid=(N,),
      in_specs=[
          pl.BlockSpec((None, H, W, F), lambda n: (n, 0, 0, 0)),
          pl.BlockSpec((None, H, W, C_in), lambda n: (n, 0, 0, 0)),
          pl.BlockSpec((1, F), lambda n: (0, 0)),
          pl.BlockSpec((1, F), lambda n: (0, 0)),
          pl.BlockSpec((C_in, F), lambda n: (0, 0)),
      ],
      out_specs=pl.BlockSpec((None, H, W, F), lambda n: (n, 0, 0, 0)),
      out_shape=jax.ShapeDtypeStruct((N, H, W, F), jnp.float32),
      compiler_params=cparams,
  )(y2, x, scale2, shift2, wd)

  return jnp.transpose(out, (0, 3, 1, 2))   # NHWC -> NCHW


# --------------------------------------------------------------------------
# params / reference / test
# --------------------------------------------------------------------------
def init_params(key, c_in, feats):
  ks = jax.random.split(key, 7)
  w1 = jax.random.normal(ks[0], (3, 3, c_in, feats), jnp.float32) / jnp.sqrt(9.0 * c_in)
  w2 = jax.random.normal(ks[1], (3, 3, feats, feats), jnp.float32) / jnp.sqrt(9.0 * feats)
  wd = jax.random.normal(ks[2], (c_in, feats), jnp.float32) / jnp.sqrt(1.0 * c_in)
  # PyTorch BN default init is gamma=1 / beta=0; perturb so the affine path is
  # actually exercised by the test.
  g1 = 1.0 + 0.1 * jax.random.normal(ks[3], (1, feats), jnp.float32)
  b1 = 0.1 * jax.random.normal(ks[4], (1, feats), jnp.float32)
  g2 = 1.0 + 0.1 * jax.random.normal(ks[5], (1, feats), jnp.float32)
  b2 = 0.1 * jax.random.normal(ks[6], (1, feats), jnp.float32)
  return dict(w1=w1, w2=w2, wd=wd, g1=g1, b1=b1, g2=g2, b2=b2)


def reference(x_nchw, params):
  # Plain-JAX reference matching PyTorch training-mode forward of
  # FirstResidualBlock (conv -> BN(batch stats) -> ReLU, twice, + 1x1 skip).
  x = jnp.transpose(x_nchw, (0, 2, 3, 1)).astype(jnp.float32)
  dn = ("NHWC", "HWIO", "NHWC")

  def bn_relu(z, g, b):
    m = z.mean(axis=(0, 1, 2), keepdims=True)
    v = ((z - m) ** 2).mean(axis=(0, 1, 2), keepdims=True)      # biased var
    return jax.nn.relu((z - m) * lax.rsqrt(v + EPS)
                       * g.reshape(1, 1, 1, -1) + b.reshape(1, 1, 1, -1))

  y1 = lax.conv_general_dilated(x, params["w1"], (1, 1), "SAME",
                                dimension_numbers=dn)
  a1 = bn_relu(y1, params["g1"], params["b1"])
  y2 = lax.conv_general_dilated(a1, params["w2"], (1, 1), "SAME",
                                dimension_numbers=dn)
  a2 = bn_relu(y2, params["g2"], params["b2"])
  wd = params["wd"].reshape(1, 1, *params["wd"].shape)
  iden = lax.conv_general_dilated(x, wd, (1, 1), "SAME", dimension_numbers=dn)
  return jnp.transpose(a2 + iden, (0, 3, 1, 2))


if __name__ == "__main__":
  key = jax.random.PRNGKey(0)
  kx, kp = jax.random.split(key)

  N, C_in, H, W, F = 2, 4, 16, 16, 8
  x = jax.random.normal(kx, (N, C_in, H, W), jnp.float32)
  params = init_params(kp, C_in, F)

  out = jax.jit(first_residual_block)(x, params)
  out = jax.block_until_ready(out)
  assert out.shape == (N, F, H, W)

  ref = reference(x, params)
  err = float(jnp.max(jnp.abs(out - ref)))
  if err > 1e-3:
    raise AssertionError(f"mismatch vs reference: max abs err = {err}")

  print("KERNEL_OK")
</pallas_src>

<mosaic_0001>
module attributes {stable_mosaic.version = 11 : i64} {
  func.func @_conv1_kernel(%arg0: i32, %arg1: memref<1x16x16x4xf32, #tpu.memory_space<vmem>>, %arg2: memref<36x8xf32, #tpu.memory_space<vmem>>, %arg3: memref<1x16x16x8xf32, #tpu.memory_space<vmem>>, %arg4: memref<1x2x8xf32, #tpu.memory_space<vmem>>, %arg5: memref<18x18x4xf32, #tpu.memory_space<vmem>>) attributes {dimension_semantics = [#tpu.dimension_semantics<parallel>], iteration_bounds = array<i64: 2>, scalar_prefetch = 0 : i64, scratch_operands = 1 : i64, tpu.core_type = #tpu.core_type<tc>, window_params = [{transform_indices = @transform_0, window_bounds = array<i64: 1, 16, 16, 4>}, {pipeline_mode = #tpu.pipeline_mode<synchronous>, transform_indices = @transform_1, window_bounds = array<i64: 36, 8>}, {transform_indices = @transform_2, window_bounds = array<i64: 1, 16, 16, 8>}, {transform_indices = @transform_3, window_bounds = array<i64: 1, 2, 8>}]} {
    %c0 = arith.constant 0 : index
    %c0_0 = arith.constant 0 : index
    %c0_1 = arith.constant 0 : index
    %c0_2 = arith.constant 0 : index
    %0 = vector.load %arg1[%c0, %c0_0, %c0_1, %c0_2] : memref<1x16x16x4xf32, #tpu.memory_space<vmem>>, vector<1x16x16x4xf32>
    %1 = vector.shape_cast %0 : vector<1x16x16x4xf32> to vector<16x16x4xf32>
    %c0_3 = arith.constant 0 : index
    %c0_4 = arith.constant 0 : index
    %2 = vector.load %arg2[%c0_3, %c0_4] : memref<36x8xf32, #tpu.memory_space<vmem>>, vector<36x8xf32>
    %cst = arith.constant 0.000000e+00 : f32
    %3 = vector.broadcast %cst : f32 to vector<1x18x4xf32>
    %cst_5 = arith.constant 0.000000e+00 : f32
    %4 = vector.broadcast %cst_5 : f32 to vector<16x1x4xf32>
    %c0_6 = arith.constant 0 : index
    %c0_7 = arith.constant 0 : index
    %c0_8 = arith.constant 0 : index
    %5 = vector.load %arg5[%c0_6, %c0_7, %c0_8] : memref<18x18x4xf32, #tpu.memory_space<vmem>>, vector<1x18x4xf32>
    tpu.vector_store %arg5[%c0_6, %c0_7, %c0_8], %3 {strides = array<i32>} : memref<18x18x4xf32, #tpu.memory_space<vmem>>, vector<1x18x4xf32>,
    %c17 = arith.constant 17 : index
    %c0_9 = arith.constant 0 : index
    %c0_10 = arith.constant 0 : index
    %6 = vector.load %arg5[%c17, %c0_9, %c0_10] : memref<18x18x4xf32, #tpu.memory_space<vmem>>, vector<1x18x4xf32>
    tpu.vector_store %arg5[%c17, %c0_9, %c0_10], %3 {strides = array<i32>} : memref<18x18x4xf32, #tpu.memory_space<vmem>>, vector<1x18x4xf32>,
    %c1 = arith.constant 1 : index
    %c0_11 = arith.constant 0 : index
    %c0_12 = arith.constant 0 : index
    %7 = vector.load %arg5[%c1, %c0_11, %c0_12] : memref<18x18x4xf32, #tpu.memory_space<vmem>>, vector<16x1x4xf32>
    tpu.vector_store %arg5[%c1, %c0_11, %c0_12], %4 {strides = array<i32>} : memref<18x18x4xf32, #tpu.memory_space<vmem>>, vector<16x1x4xf32>,
    %c1_13 = arith.constant 1 : index
    %c17_14 = arith.constant 17 : index
    %c0_15 = arith.constant 0 : index
    %8 = vector.load %arg5[%c1_13, %c17_14, %c0_15] : memref<18x18x4xf32, #tpu.memory_space<vmem>>, vector<16x1x4xf32>
    tpu.vector_store %arg5[%c1_13, %c17_14, %c0_15], %4 {strides = array<i32>} : memref<18x18x4xf32, #tpu.memory_space<vmem>>, vector<16x1x4xf32>,
    %c1_16 = arith.constant 1 : index
    %c1_17 = arith.constant 1 : index
    %c0_18 = arith.constant 0 : index
    %9 = vector.load %arg5[%c1_16, %c1_17, %c0_18] : memref<18x18x4xf32, #tpu.memory_space<vmem>>, vector<16x16x4xf32>
    tpu.vector_store %arg5[%c1_16, %c1_17, %c0_18], %1 {strides = array<i32>} : memref<18x18x4xf32, #tpu.memory_space<vmem>>, vector<16x16x4xf32>,
    %c0_19 = arith.constant 0 : index
    %c0_20 = arith.constant 0 : index
    %c0_21 = arith.constant 0 : index
    %10 = vector.load %arg5[%c0_19, %c0_20, %c0_21] : memref<18x18x4xf32, #tpu.memory_space<vmem>>, vector<16x16x4xf32>
    %11 = vector.shape_cast %10 : vector<16x16x4xf32> to vector<256x4xf32>
    %c0_22 = arith.constant 0 : index
    %c1_23 = arith.constant 1 : index
    %c0_24 = arith.constant 0 : index
    %12 = vector.load %arg5[%c0_22, %c1_23, %c0_24] : memref<18x18x4xf32, #tpu.memory_space<vmem>>, vector<16x16x4xf32>
    %13 = vector.shape_cast %12 : vector<16x16x4xf32> to vector<256x4xf32>
    %c0_25 = arith.constant 0 : index
    %c2 = arith.constant 2 : index
    %c0_26 = arith.constant 0 : index
    %14 = vector.load %arg5[%c0_25, %c2, %c0_26] : memref<18x18x4xf32, #tpu.memory_space<vmem>>, vector<16x16x4xf32>
    %15 = vector.shape_cast %14 : vector<16x16x4xf32> to vector<256x4xf32>
    %c1_27 = arith.constant 1 : index
    %c0_28 = arith.constant 0 : index
    %c0_29 = arith.constant 0 : index
    %16 = vector.load %arg5[%c1_27, %c0_28, %c0_29] : memref<18x18x4xf32, #tpu.memory_space<vmem>>, vector<16x16x4xf32>
    %17 = vector.shape_cast %16 : vector<16x16x4xf32> to vector<256x4xf32>
    %c1_30 = arith.constant 1 : index
    %c1_31 = arith.constant 1 : index
    %c0_32 = arith.constant 0 : index
    %18 = vector.load %arg5[%c1_30, %c1_31, %c0_32] : memref<18x18x4xf32, #tpu.memory_space<vmem>>, vector<16x16x4xf32>
    %19 = vector.shape_cast %18 : vector<16x16x4xf32> to vector<256x4xf32>
    %c1_33 = arith.constant 1 : index
    %c2_34 = arith.constant 2 : index
    %c0_35 = arith.constant 0 : index
    %20 = vector.load %arg5[%c1_33, %c2_34, %c0_35] : memref<18x18x4xf32, #tpu.memory_space<vmem>>, vector<16x16x4xf32>
    %21 = vector.shape_cast %20 : vector<16x16x4xf32> to vector<256x4xf32>
    %c2_36 = arith.constant 2 : index
    %c0_37 = arith.constant 0 : index
    %c0_38 = arith.constant 0 : index
    %22 = vector.load %arg5[%c2_36, %c0_37, %c0_38] : memref<18x18x4xf32, #tpu.memory_space<vmem>>, vector<16x16x4xf32>
    %23 = vector.shape_cast %22 : vector<16x16x4xf32> to vector<256x4xf32>
    %c2_39 = arith.constant 2 : index
    %c1_40 = arith.constant 1 : index
    %c0_41 = arith.constant 0 : index
    %24 = vector.load %arg5[%c2_39, %c1_40, %c0_41] : memref<18x18x4xf32, #tpu.memory_space<vmem>>, vector<16x16x4xf32>
    %25 = vector.shape_cast %24 : vector<16x16x4xf32> to vector<256x4xf32>
    %c2_42 = arith.constant 2 : index
    %c2_43 = arith.constant 2 : index
    %c0_44 = arith.constant 0 : index
    %26 = vector.load %arg5[%c2_42, %c2_43, %c0_44] : memref<18x18x4xf32, #tpu.memory_space<vmem>>, vector<16x16x4xf32>
    %27 = vector.shape_cast %26 : vector<16x16x4xf32> to vector<256x4xf32>
    %28 = tpu.concatenate %11, %13, %15, %17, %19, %21, %23, %25, %27 in 1 : vector<256x4xf32>, vector<256x4xf32>, vector<256x4xf32>, vector<256x4xf32>, vector<256x4xf32>, vector<256x4xf32>, vector<256x4xf32>, vector<256x4xf32>, vector<256x4xf32> -> vector<256x36xf32>
    %cst_45 = arith.constant dense<0.000000e+00> : vector<256x8xf32>
    %29 = tpu.matmul %28, %2, %cst_45 {dimension_numbers = #tpu.dot_dimension_numbers<[1], [0], [0], [1], [0, 0, 1, 1], [], []>} : vector<256x36xf32>, vector<36x8xf32>, vector<256x8xf32> -> vector<256x8xf32>
    %30 = vector.shape_cast %29 : vector<256x8xf32> to vector<16x16x8xf32>
    %c0_46 = arith.constant 0 : index
    %c0_47 = arith.constant 0 : index
    %c0_48 = arith.constant 0 : index
    %c0_49 = arith.constant 0 : index
    %31 = vector.load %arg3[%c0_46, %c0_47, %c0_48, %c0_49] : memref<1x16x16x8xf32, #tpu.memory_space<vmem>>, vector<1x16x16x8xf32>
    %32 = vector.shape_cast %31 : vector<1x16x16x8xf32> to vector<16x16x8xf32>
    %33 = vector.shape_cast %30 : vector<16x16x8xf32> to vector<1x16x16x8xf32>
    tpu.vector_store %arg3[%c0_46, %c0_47, %c0_48, %c0_49], %33 {strides = array<i32>} : memref<1x16x16x8xf32, #tpu.memory_space<vmem>>, vector<1x16x16x8xf32>,
    %cst_50 = arith.constant dense<0.000000e+00> : vector<8xf32>
    %34 = vector.multi_reduction <add>, %29, %cst_50 [0] : vector<256x8xf32> to vector<8xf32>
    %35 = vector.shape_cast %34 : vector<8xf32> to vector<1x8xf32>
    %36 = arith.mulf %29, %29 : vector<256x8xf32>
    %cst_51 = arith.constant dense<0.000000e+00> : vector<8xf32>
    %37 = vector.multi_reduction <add>, %36, %cst_51 [0] : vector<256x8xf32> to vector<8xf32>
    %38 = vector.shape_cast %37 : vector<8xf32> to vector<1x8xf32>
    %39 = tpu.concatenate %35, %38 in 0 : vector<1x8xf32>, vector<1x8xf32> -> vector<2x8xf32>
    %c0_52 = arith.constant 0 : index
    %c0_53 = arith.constant 0 : index
    %c0_54 = arith.constant 0 : index
    %40 = vector.load %arg4[%c0_52, %c0_53, %c0_54] : memref<1x2x8xf32, #tpu.memory_space<vmem>>, vector<1x2x8xf32>
    %41 = vector.shape_cast %40 : vector<1x2x8xf32> to vector<2x8xf32>
    %42 = vector.shape_cast %39 : vector<2x8xf32> to vector<1x2x8xf32>
    tpu.vector_store %arg4[%c0_52, %c0_53, %c0_54], %42 {strides = array<i32>} : memref<1x2x8xf32, #tpu.memory_space<vmem>>, vector<1x2x8xf32>,
    return
  }
  func.func @transform_0(%arg0: i32) -> (i32, i32, i32, i32) {
    %c0_i32 = arith.constant 0 : i32
    %c0_i32_0 = arith.constant 0 : i32
    %c0_i32_1 = arith.constant 0 : i32
    %c0_i32_2 = arith.constant 0 : i32
    return %arg0, %c0_i32, %c0_i32_0, %c0_i32_1 : i32, i32, i32, i32
  }
  func.func @transform_1(%arg0: i32) -> (i32, i32) {
    %c0_i32 = arith.constant 0 : i32
    %c0_i32_0 = arith.constant 0 : i32
    %c0_i32_1 = arith.constant 0 : i32
    return %c0_i32, %c0_i32_0 : i32, i32
  }
  func.func @transform_2(%arg0: i32) -> (i32, i32, i32, i32) {
    %c0_i32 = arith.constant 0 : i32
    %c0_i32_0 = arith.constant 0 : i32
    %c0_i32_1 = arith.constant 0 : i32
    %c0_i32_2 = arith.constant 0 : i32
    return %arg0, %c0_i32, %c0_i32_0, %c0_i32_1 : i32, i32, i32, i32
  }
  func.func @transform_3(%arg0: i32) -> (i32, i32, i32) {
    %c0_i32 = arith.constant 0 : i32
    %c0_i32_0 = arith.constant 0 : i32
    %c0_i32_1 = arith.constant 0 : i32
    return %arg0, %c0_i32, %c0_i32_0 : i32, i32, i32
  }
}

module attributes {stable_mosaic.version = 11 : i64} {
  func.func @_bnrelu_add_kernel(%arg0: i32, %arg1: memref<1x16x16x8xf32, #tpu.memory_space<vmem>>, %arg2: memref<1x16x16x4xf32, #tpu.memory_space<vmem>>, %arg3: memref<1x8xf32, #tpu.memory_space<vmem>>, %arg4: memref<1x8xf32, #tpu.memory_space<vmem>>, %arg5: memref<4x8xf32, #tpu.memory_space<vmem>>, %arg6: memref<1x16x16x8xf32, #tpu.memory_space<vmem>>) attributes {dimension_semantics = [#tpu.dimension_semantics<parallel>], iteration_bounds = array<i64: 2>, scalar_prefetch = 0 : i64, scratch_operands = 0 : i64, tpu.core_type = #tpu.core_type<tc>, window_params = [{transform_indices = @transform_0, window_bounds = array<i64: 1, 16, 16, 8>}, {transform_indices = @transform_1, window_bounds = array<i64: 1, 16, 16, 4>}, {pipeline_mode = #tpu.pipeline_mode<synchronous>, transform_indices = @transform_2, window_bounds = array<i64: 1, 8>}, {pipeline_mode = #tpu.pipeline_mode<synchronous>, transform_indices = @transform_3, window_bounds = array<i64: 1, 8>}, {pipeline_mode = #tpu.pipeline_mode<synchronous>, transform_indices = @transform_4, window_bounds = array<i64: 4, 8>}, {transform_indices = @transform_5, window_bounds = array<i64: 1, 16, 16, 8>}]} {
    %c0 = arith.constant 0 : index
    %c0_0 = arith.constant 0 : index
    %c0_1 = arith.constant 0 : index
    %c0_2 = arith.constant 0 : index
    %0 = vector.load %arg1[%c0, %c0_0, %c0_1, %c0_2] : memref<1x16x16x8xf32, #tpu.memory_space<vmem>>, vector<1x16x16x8xf32>
    %1 = vector.shape_cast %0 : vector<1x16x16x8xf32> to vector<16x16x8xf32>
    %2 = vector.shape_cast %1 : vector<16x16x8xf32> to vector<256x8xf32>
    %c0_3 = arith.constant 0 : index
    %c0_4 = arith.constant 0 : index
    %3 = vector.load %arg3[%c0_3, %c0_4] : memref<1x8xf32, #tpu.memory_space<vmem>>, vector<1x8xf32>
    %4 = vector.broadcast %3 : vector<1x8xf32> to vector<256x8xf32>
    %5 = arith.mulf %2, %4 : vector<256x8xf32>
    %c0_5 = arith.constant 0 : index
    %c0_6 = arith.constant 0 : index
    %6 = vector.load %arg4[%c0_5, %c0_6] : memref<1x8xf32, #tpu.memory_space<vmem>>, vector<1x8xf32>
    %7 = vector.broadcast %6 : vector<1x8xf32> to vector<256x8xf32>
    %8 = arith.addf %5, %7 : vector<256x8xf32>
    %cst = arith.constant 0.000000e+00 : f32
    %9 = vector.broadcast %cst : f32 to vector<256x8xf32>
    %10 = arith.maximumf %8, %9 : vector<256x8xf32>
    %c0_7 = arith.constant 0 : index
    %c0_8 = arith.constant 0 : index
    %c0_9 = arith.constant 0 : index
    %c0_10 = arith.constant 0 : index
    %11 = vector.load %arg2[%c0_7, %c0_8, %c0_9, %c0_10] : memref<1x16x16x4xf32, #tpu.memory_space<vmem>>, vector<1x16x16x4xf32>
    %12 = vector.shape_cast %11 : vector<1x16x16x4xf32> to vector<16x16x4xf32>
    %13 = vector.shape_cast %12 : vector<16x16x4xf32> to vector<256x4xf32>
    %c0_11 = arith.constant 0 : index
    %c0_12 = arith.constant 0 : index
    %14 = vector.load %arg5[%c0_11, %c0_12] : memref<4x8xf32, #tpu.memory_space<vmem>>, vector<4x8xf32>
    %cst_13 = arith.constant dense<0.000000e+00> : vector<256x8xf32>
    %15 = tpu.matmul %13, %14, %cst_13 {dimension_numbers = #tpu.dot_dimension_numbers<[1], [0], [0], [1], [0, 0, 1, 1], [], []>} : vector<256x4xf32>, vector<4x8xf32>, vector<256x8xf32> -> vector<256x8xf32>
    %16 = arith.addf %10, %15 : vector<256x8xf32>
    %17 = vector.shape_cast %16 : vector<256x8xf32> to vector<16x16x8xf32>
    %c0_14 = arith.constant 0 : index
    %c0_15 = arith.constant 0 : index
    %c0_16 = arith.constant 0 : index
    %c0_17 = arith.constant 0 : index
    %18 = vector.load %arg6[%c0_14, %c0_15, %c0_16, %c0_17] : memref<1x16x16x8xf32, #tpu.memory_space<vmem>>, vector<1x16x16x8xf32>
    %19 = vector.shape_cast %18 : vector<1x16x16x8xf32> to vector<16x16x8xf32>
    %20 = vector.shape_cast %17 : vector<16x16x8xf32> to vector<1x16x16x8xf32>
    tpu.vector_store %arg6[%c0_14, %c0_15, %c0_16, %c0_17], %20 {strides = array<i32>} : memref<1x16x16x8xf32, #tpu.memory_space<vmem>>, vector<1x16x16x8xf32>,
    return
  }
  func.func @transform_0(%arg0: i32) -> (i32, i32, i32, i32) {
    %c0_i32 = arith.constant 0 : i32
    %c0_i32_0 = arith.constant 0 : i32
    %c0_i32_1 = arith.constant 0 : i32
    %c0_i32_2 = arith.constant 0 : i32
    return %arg0, %c0_i32, %c0_i32_0, %c0_i32_1 : i32, i32, i32, i32
  }
  func.func @transform_1(%arg0: i32) -> (i32, i32, i32, i32) {
    %c0_i32 = arith.constant 0 : i32
    %c0_i32_0 = arith.constant 0 : i32
    %c0_i32_1 = arith.constant 0 : i32
    %c0_i32_2 = arith.constant 0 : i32
    return %arg0, %c0_i32, %c0_i32_0, %c0_i32_1 : i32, i32, i32, i32
  }
  func.func @transform_2(%arg0: i32) -> (i32, i32) {
    %c0_i32 = arith.constant 0 : i32
    %c0_i32_0 = arith.constant 0 : i32
    %c0_i32_1 = arith.constant 0 : i32
    return %c0_i32, %c0_i32_0 : i32, i32
  }
  func.func @transform_3(%arg0: i32) -> (i32, i32) {
    %c0_i32 = arith.constant 0 : i32
    %c0_i32_0 = arith.constant 0 : i32
    %c0_i32_1 = arith.constant 0 : i32
    return %c0_i32, %c0_i32_0 : i32, i32
  }
  func.func @transform_4(%arg0: i32) -> (i32, i32) {
    %c0_i32 = arith.constant 0 : i32
    %c0_i32_0 = arith.constant 0 : i32
    %c0_i32_1 = arith.constant 0 : i32
    return %c0_i32, %c0_i32_0 : i32, i32
  }
  func.func @transform_5(%arg0: i32) -> (i32, i32, i32, i32) {
    %c0_i32 = arith.constant 0 : i32
    %c0_i32_0 = arith.constant 0 : i32
    %c0_i32_1 = arith.constant 0 : i32
    %c0_i32_2 = arith.constant 0 : i32
    return %arg0, %c0_i32, %c0_i32_0, %c0_i32_1 : i32, i32, i32, i32
  }
}

module attributes {stable_mosaic.version = 11 : i64} {
  func.func @_bnrelu_conv_kernel(%arg0: i32, %arg1: memref<1x16x16x8xf32, #tpu.memory_space<vmem>>, %arg2: memref<1x8xf32, #tpu.memory_space<vmem>>, %arg3: memref<1x8xf32, #tpu.memory_space<vmem>>, %arg4: memref<72x8xf32, #tpu.memory_space<vmem>>, %arg5: memref<1x16x16x8xf32, #tpu.memory_space<vmem>>, %arg6: memref<1x2x8xf32, #tpu.memory_space<vmem>>, %arg7: memref<18x18x8xf32, #tpu.memory_space<vmem>>) attributes {dimension_semantics = [#tpu.dimension_semantics<parallel>], iteration_bounds = array<i64: 2>, scalar_prefetch = 0 : i64, scratch_operands = 1 : i64, tpu.core_type = #tpu.core_type<tc>, window_params = [{transform_indices = @transform_0, window_bounds = array<i64: 1, 16, 16, 8>}, {pipeline_mode = #tpu.pipeline_mode<synchronous>, transform_indices = @transform_1, window_bounds = array<i64: 1, 8>}, {pipeline_mode = #tpu.pipeline_mode<synchronous>, transform_indices = @transform_2, window_bounds = array<i64: 1, 8>}, {pipeline_mode = #tpu.pipeline_mode<synchronous>, transform_indices = @transform_3, window_bounds = array<i64: 72, 8>}, {transform_indices = @transform_4, window_bounds = array<i64: 1, 16, 16, 8>}, {transform_indices = @transform_5, window_bounds = array<i64: 1, 2, 8>}]} {
    %c0 = arith.constant 0 : index
    %c0_0 = arith.constant 0 : index
    %c0_1 = arith.constant 0 : index
    %c0_2 = arith.constant 0 : index
    %0 = vector.load %arg1[%c0, %c0_0, %c0_1, %c0_2] : memref<1x16x16x8xf32, #tpu.memory_space<vmem>>, vector<1x16x16x8xf32>
    %1 = vector.shape_cast %0 : vector<1x16x16x8xf32> to vector<16x16x8xf32>
    %c0_3 = arith.constant 0 : index
    %c0_4 = arith.constant 0 : index
    %2 = vector.load %arg2[%c0_3, %c0_4] : memref<1x8xf32, #tpu.memory_space<vmem>>, vector<1x8xf32>
    %3 = vector.shape_cast %2 : vector<1x8xf32> to vector<1x1x8xf32>
    %4 = vector.broadcast %3 : vector<1x1x8xf32> to vector<16x16x8xf32>
    %5 = arith.mulf %1, %4 : vector<16x16x8xf32>
    %c0_5 = arith.constant 0 : index
    %c0_6 = arith.constant 0 : index
    %6 = vector.load %arg3[%c0_5, %c0_6] : memref<1x8xf32, #tpu.memory_space<vmem>>, vector<1x8xf32>
    %7 = vector.shape_cast %6 : vector<1x8xf32> to vector<1x1x8xf32>
    %8 = vector.broadcast %7 : vector<1x1x8xf32> to vector<16x16x8xf32>
    %9 = arith.addf %5, %8 : vector<16x16x8xf32>
    %cst = arith.constant 0.000000e+00 : f32
    %10 = vector.broadcast %cst : f32 to vector<16x16x8xf32>
    %11 = arith.maximumf %9, %10 : vector<16x16x8xf32>
    %c0_7 = arith.constant 0 : index
    %c0_8 = arith.constant 0 : index
    %12 = vector.load %arg4[%c0_7, %c0_8] : memref<72x8xf32, #tpu.memory_space<vmem>>, vector<72x8xf32>
    %cst_9 = arith.constant 0.000000e+00 : f32
    %13 = vector.broadcast %cst_9 : f32 to vector<1x18x8xf32>
    %cst_10 = arith.constant 0.000000e+00 : f32
    %14 = vector.broadcast %cst_10 : f32 to vector<16x1x8xf32>
    %c0_11 = arith.constant 0 : index
    %c0_12 = arith.constant 0 : index
    %c0_13 = arith.constant 0 : index
    %15 = vector.load %arg7[%c0_11, %c0_12, %c0_13] : memref<18x18x8xf32, #tpu.memory_space<vmem>>, vector<1x18x8xf32>
    tpu.vector_store %arg7[%c0_11, %c0_12, %c0_13], %13 {strides = array<i32>} : memref<18x18x8xf32, #tpu.memory_space<vmem>>, vector<1x18x8xf32>,
    %c17 = arith.constant 17 : index
    %c0_14 = arith.constant 0 : index
    %c0_15 = arith.constant 0 : index
    %16 = vector.load %arg7[%c17, %c0_14, %c0_15] : memref<18x18x8xf32, #tpu.memory_space<vmem>>, vector<1x18x8xf32>
    tpu.vector_store %arg7[%c17, %c0_14, %c0_15], %13 {strides = array<i32>} : memref<18x18x8xf32, #tpu.memory_space<vmem>>, vector<1x18x8xf32>,
    %c1 = arith.constant 1 : index
    %c0_16 = arith.constant 0 : index
    %c0_17 = arith.constant 0 : index
    %17 = vector.load %arg7[%c1, %c0_16, %c0_17] : memref<18x18x8xf32, #tpu.memory_space<vmem>>, vector<16x1x8xf32>
    tpu.vector_store %arg7[%c1, %c0_16, %c0_17], %14 {strides = array<i32>} : memref<18x18x8xf32, #tpu.memory_space<vmem>>, vector<16x1x8xf32>,
    %c1_18 = arith.constant 1 : index
    %c17_19 = arith.constant 17 : index
    %c0_20 = arith.constant 0 : index
    %18 = vector.load %arg7[%c1_18, %c17_19, %c0_20] : memref<18x18x8xf32, #tpu.memory_space<vmem>>, vector<16x1x8xf32>
    tpu.vector_store %arg7[%c1_18, %c17_19, %c0_20], %14 {strides = array<i32>} : memref<18x18x8xf32, #tpu.memory_space<vmem>>, vector<16x1x8xf32>,
    %c1_21 = arith.constant 1 : index
    %c1_22 = arith.constant 1 : index
    %c0_23 = arith.constant 0 : index
    %19 = vector.load %arg7[%c1_21, %c1_22, %c0_23] : memref<18x18x8xf32, #tpu.memory_space<vmem>>, vector<16x16x8xf32>
    tpu.vector_store %arg7[%c1_21, %c1_22, %c0_23], %11 {strides = array<i32>} : memref<18x18x8xf32, #tpu.memory_space<vmem>>, vector<16x16x8xf32>,
    %c0_24 = arith.constant 0 : index
    %c0_25 = arith.constant 0 : index
    %c0_26 = arith.constant 0 : index
    %20 = vector.load %arg7[%c0_24, %c0_25, %c0_26] : memref<18x18x8xf32, #tpu.memory_space<vmem>>, vector<16x16x8xf32>
    %21 = vector.shape_cast %20 : vector<16x16x8xf32> to vector<256x8xf32>
    %c0_27 = arith.constant 0 : index
    %c1_28 = arith.constant 1 : index
    %c0_29 = arith.constant 0 : index
    %22 = vector.load %arg7[%c0_27, %c1_28, %c0_29] : memref<18x18x8xf32, #tpu.memory_space<vmem>>, vector<16x16x8xf32>
    %23 = vector.shape_cast %22 : vector<16x16x8xf32> to vector<256x8xf32>
    %c0_30 = arith.constant 0 : index
    %c2 = arith.constant 2 : index
    %c0_31 = arith.constant 0 : index
    %24 = vector.load %arg7[%c0_30, %c2, %c0_31] : memref<18x18x8xf32, #tpu.memory_space<vmem>>, vector<16x16x8xf32>
    %25 = vector.shape_cast %24 : vector<16x16x8xf32> to vector<256x8xf32>
    %c1_32 = arith.constant 1 : index
    %c0_33 = arith.constant 0 : index
    %c0_34 = arith.constant 0 : index
    %26 = vector.load %arg7[%c1_32, %c0_33, %c0_34] : memref<18x18x8xf32, #tpu.memory_space<vmem>>, vector<16x16x8xf32>
    %27 = vector.shape_cast %26 : vector<16x16x8xf32> to vector<256x8xf32>
    %c1_35 = arith.constant 1 : index
    %c1_36 = arith.constant 1 : index
    %c0_37 = arith.constant 0 : index
    %28 = vector.load %arg7[%c1_35, %c1_36, %c0_37] : memref<18x18x8xf32, #tpu.memory_space<vmem>>, vector<16x16x8xf32>
    %29 = vector.shape_cast %28 : vector<16x16x8xf32> to vector<256x8xf32>
    %c1_38 = arith.constant 1 : index
    %c2_39 = arith.constant 2 : index
    %c0_40 = arith.constant 0 : index
    %30 = vector.load %arg7[%c1_38, %c2_39, %c0_40] : memref<18x18x8xf32, #tpu.memory_space<vmem>>, vector<16x16x8xf32>
    %31 = vector.shape_cast %30 : vector<16x16x8xf32> to vector<256x8xf32>
    %c2_41 = arith.constant 2 : index
    %c0_42 = arith.constant 0 : index
    %c0_43 = arith.constant 0 : index
    %32 = vector.load %arg7[%c2_41, %c0_42, %c0_43] : memref<18x18x8xf32, #tpu.memory_space<vmem>>, vector<16x16x8xf32>
    %33 = vector.shape_cast %32 : vector<16x16x8xf32> to vector<256x8xf32>
    %c2_44 = arith.constant 2 : index
    %c1_45 = arith.constant 1 : index
    %c0_46 = arith.constant 0 : index
    %34 = vector.load %arg7[%c2_44, %c1_45, %c0_46] : memref<18x18x8xf32, #tpu.memory_space<vmem>>, vector<16x16x8xf32>
    %35 = vector.shape_cast %34 : vector<16x16x8xf32> to vector<256x8xf32>
    %c2_47 = arith.constant 2 : index
    %c2_48 = arith.constant 2 : index
    %c0_49 = arith.constant 0 : index
    %36 = vector.load %arg7[%c2_47, %c2_48, %c0_49] : memref<18x18x8xf32, #tpu.memory_space<vmem>>, vector<16x16x8xf32>
    %37 = vector.shape_cast %36 : vector<16x16x8xf32> to vector<256x8xf32>
    %38 = tpu.concatenate %21, %23, %25, %27, %29, %31, %33, %35, %37 in 1 : vector<256x8xf32>, vector<256x8xf32>, vector<256x8xf32>, vector<256x8xf32>, vector<256x8xf32>, vector<256x8xf32>, vector<256x8xf32>, vector<256x8xf32>, vector<256x8xf32> -> vector<256x72xf32>
    %cst_50 = arith.constant dense<0.000000e+00> : vector<256x8xf32>
    %39 = tpu.matmul %38, %12, %cst_50 {dimension_numbers = #tpu.dot_dimension_numbers<[1], [0], [0], [1], [0, 0, 1, 1], [], []>} : vector<256x72xf32>, vector<72x8xf32>, vector<256x8xf32> -> vector<256x8xf32>
    %40 = vector.shape_cast %39 : vector<256x8xf32> to vector<16x16x8xf32>
    %c0_51 = arith.constant 0 : index
    %c0_52 = arith.constant 0 : index
    %c0_53 = arith.constant 0 : index
    %c0_54 = arith.constant 0 : index
    %41 = vector.load %arg5[%c0_51, %c0_52, %c0_53, %c0_54] : memref<1x16x16x8xf32, #tpu.memory_space<vmem>>, vector<1x16x16x8xf32>
    %42 = vector.shape_cast %41 : vector<1x16x16x8xf32> to vector<16x16x8xf32>
    %43 = vector.shape_cast %40 : vector<16x16x8xf32> to vector<1x16x16x8xf32>
    tpu.vector_store %arg5[%c0_51, %c0_52, %c0_53, %c0_54], %43 {strides = array<i32>} : memref<1x16x16x8xf32, #tpu.memory_space<vmem>>, vector<1x16x16x8xf32>,
    %cst_55 = arith.constant dense<0.000000e+00> : vector<8xf32>
    %44 = vector.multi_reduction <add>, %39, %cst_55 [0] : vector<256x8xf32> to vector<8xf32>
    %45 = vector.shape_cast %44 : vector<8xf32> to vector<1x8xf32>
    %46 = arith.mulf %39, %39 : vector<256x8xf32>
    %cst_56 = arith.constant dense<0.000000e+00> : vector<8xf32>
    %47 = vector.multi_reduction <add>, %46, %cst_56 [0] : vector<256x8xf32> to vector<8xf32>
    %48 = vector.shape_cast %47 : vector<8xf32> to vector<1x8xf32>
    %49 = tpu.concatenate %45, %48 in 0 : vector<1x8xf32>, vector<1x8xf32> -> vector<2x8xf32>
    %c0_57 = arith.constant 0 : index
    %c0_58 = arith.constant 0 : index
    %c0_59 = arith.constant 0 : index
    %50 = vector.load %arg6[%c0_57, %c0_58, %c0_59] : memref<1x2x8xf32, #tpu.memory_space<vmem>>, vector<1x2x8xf32>
    %51 = vector.shape_cast %50 : vector<1x2x8xf32> to vector<2x8xf32>
    %52 = vector.shape_cast %49 : vector<2x8xf32> to vector<1x2x8xf32>
    tpu.vector_store %arg6[%c0_57, %c0_58, %c0_59], %52 {strides = array<i32>} : memref<1x2x8xf32, #tpu.memory_space<vmem>>, vector<1x2x8xf32>,
    return
  }
  func.func @transform_0(%arg0: i32) -> (i32, i32, i32, i32) {
    %c0_i32 = arith.constant 0 : i32
    %c0_i32_0 = arith.constant 0 : i32
    %c0_i32_1 = arith.constant 0 : i32
    %c0_i32_2 = arith.constant 0 : i32
    return %arg0, %c0_i32, %c0_i32_0, %c0_i32_1 : i32, i32, i32, i32
  }
  func.func @transform_1(%arg0: i32) -> (i32, i32) {
    %c0_i32 = arith.constant 0 : i32
    %c0_i32_0 = arith.constant 0 : i32
    %c0_i32_1 = arith.constant 0 : i32
    return %c0_i32, %c0_i32_0 : i32, i32
  }
  func.func @transform_2(%arg0: i32) -> (i32, i32) {
    %c0_i32 = arith.constant 0 : i32
    %c0_i32_0 = arith.constant 0 : i32
    %c0_i32_1 = arith.constant 0 : i32
    return %c0_i32, %c0_i32_0 : i32, i32
  }
  func.func @transform_3(%arg0: i32) -> (i32, i32) {
    %c0_i32 = arith.constant 0 : i32
    %c0_i32_0 = arith.constant 0 : i32
    %c0_i32_1 = arith.constant 0 : i32
    return %c0_i32, %c0_i32_0 : i32, i32
  }
  func.func @transform_4(%arg0: i32) -> (i32, i32, i32, i32) {
    %c0_i32 = arith.constant 0 : i32
    %c0_i32_0 = arith.constant 0 : i32
    %c0_i32_1 = arith.constant 0 : i32
    %c0_i32_2 = arith.constant 0 : i32
    return %arg0, %c0_i32, %c0_i32_0, %c0_i32_1 : i32, i32, i32, i32
  }
  func.func @transform_5(%arg0: i32) -> (i32, i32, i32) {
    %c0_i32 = arith.constant 0 : i32
    %c0_i32_0 = arith.constant 0 : i32
    %c0_i32_1 = arith.constant 0 : i32
    return %arg0, %c0_i32, %c0_i32_0 : i32, i32, i32
  }
}

</mosaic_0001>

<llo_original>
// kernel: first_residual_block.5
$region0: #{first_residual_block.5}
  #allocation0 [shape = 'u32[]', space=smem, size = 0x4, offset = 0x4, fixed_abs, tag = 'smem constant byte address 0x4 - core index']
  #allocation1 [shape = 'u32[144,128]{1,0:T(1,128)}', space=vmem, size = 0x12000, scoped, tag = 'internal scratch']
  %s0 = inlined_call_operand.vmem [shape: f32[2,16,16,8], index: 0, kind: input, shape index: {}]
  %s1 = inlined_call_operand.vmem [shape: f32[2,16,16,4], index: 1, kind: input, shape index: {}]
  %s2 = inlined_call_operand.vmem [shape: f32[1,8], index: 2, kind: input, shape index: {}]
  %s3 = inlined_call_operand.vmem [shape: f32[1,8], index: 3, kind: input, shape index: {}]
  %s4 = inlined_call_operand.vmem [shape: f32[4,8], index: 4, kind: input, shape index: {}]
  %s5 = inlined_call_operand.vmem [shape: f32[2,16,16,8], index: 5, kind: output, shape index: {}]
  %s6 = sld [smem:[#allocation0]]
  $region53: #{first_residual_block.5} parent=0
    _
  %s8 = ssub.s32 1, %s6
  %s9 = scalar_select 0, %s8, %s6
  loop: start=0, step=1, limit=4
  $region2: #{first_residual_block.5} parent=0 // loop_pre_header
    _
  $region3: #{first_residual_block.5} parent=0 // loop_header
    %s11 = sphi 0, %s15
    %p12 = scmp.ge.s32.totalorder %s11, 4
    %s21 = sphi 0, %s23
    %s24 = sphi 0, %s21
    %s25 = sphi 0, %s24
    %s41 = sphi 0, %s25
    %s47 = sphi 0, %s49
    %s50 = sphi 0, %s47
    %s51 = sphi 0, %s50
    %s67 = sphi 0, %s51
    %s71 = sphi 0, %s71
    %s73 = sphi 0, %s71
    %s74 = sphi 0, %s73
    %s88 = sphi 0, %s74
    %s92 = sphi 0, %s92
    %s94 = sphi 0, %s92
    %s95 = sphi 0, %s94
    %s109 = sphi 0, %s95
    %s113 = sphi 0, %s113
    %s115 = sphi 0, %s113
    %s116 = sphi 0, %s115
    %s130 = sphi 0, %s116
    %s136 = sphi 0, %s138
    %s139 = sphi 0, %s136
    %s140 = sphi 0, %s139
    %s156 = sphi 0, %s140
  $region4: #{first_residual_block.5} parent=0 // loop_header_branch
    %14 = sbr.rel (%p12) target = $region8
  $region5: #{first_residual_block.5} parent=0 // loop_body
    %s16 = ssub.s32 %s11, 1
    %s17 = ssub.s32 %s11, 2
    %s18 = sadd.s32 %s11, 1
    %s19 = ssub.s32 %s11, %s18
    %p20 = scmp.eq.s32.totalorder %s19, 0
    %s22 = sadd.s32 %s21, 1
    %s23 = scalar_select %p20, %s21, %s22
    %p26 = pneg %p20
    %p27 = scmp.eq.s32.totalorder %s11, 1
    %p28 = por %p26, %p27
    %p29 = scmp.ne.s32.totalorder %s21, %s24
    %p30 = scmp.eq.s32.totalorder %s11, 0
    %p31 = por %p29, %p30
    %p32 = scmp.ne.s32.totalorder %s21, %s24
    %p33 = scmp.eq.s32.totalorder %s16, 1
    %p34 = por %p32, %p33
    %p35 = scmp.ne.s32.totalorder %s24, %s25
    %p36 = scmp.eq.s32.totalorder %s16, 0
    %p37 = por %p35, %p36
    %p38 = scmp.ne.s32.totalorder %s24, %s25
    %p39 = scmp.eq.s32.totalorder %s17, 1
    %p40 = por %p38, %p39
    %p42 = scmp.ne.s32.totalorder %s25, %s41
    %p43 = scmp.eq.s32.totalorder %s17, 0
    %p44 = por %p42, %p43
    %s45 = ssub.s32 %s11, %s18
    %p46 = scmp.eq.s32.totalorder %s45, 0
    %s48 = sadd.s32 %s47, 1
    %s49 = scalar_select %p46, %s47, %s48
    %p52 = pneg %p46
    %p53 = scmp.eq.s32.totalorder %s11, 1
    %p54 = por %p52, %p53
    %p55 = scmp.ne.s32.totalorder %s47, %s50
    %p56 = scmp.eq.s32.totalorder %s11, 0
    %p57 = por %p55, %p56
    %p58 = scmp.ne.s32.totalorder %s47, %s50
    %p59 = scmp.eq.s32.totalorder %s16, 1
    %p60 = por %p58, %p59
    %p61 = scmp.ne.s32.totalorder %s50, %s51
    %p62 = scmp.eq.s32.totalorder %s16, 0
    %p63 = por %p61, %p62
    %p64 = scmp.ne.s32.totalorder %s50, %s51
    %p65 = scmp.eq.s32.totalorder %s17, 1
    %p66 = por %p64, %p65
    %p68 = scmp.ne.s32.totalorder %s51, %s67
    %p69 = scmp.eq.s32.totalorder %s17, 0
    %p70 = por %p68, %p69
    %s72 = sadd.s32 %s71, 1
    %p75 = scmp.eq.s32.totalorder %s11, 1
    %p76 = scmp.ne.s32.totalorder %s71, %s73
    %p77 = scmp.eq.s32.totalorder %s11, 0
    %p78 = por %p76, %p77
    %p79 = scmp.ne.s32.totalorder %s71, %s73
    %p80 = scmp.eq.s32.totalorder %s16, 1
    %p81 = por %p79, %p80
    %p82 = scmp.ne.s32.totalorder %s73, %s74
    %p83 = scmp.eq.s32.totalorder %s16, 0
    %p84 = por %p82, %p83
    %p85 = scmp.ne.s32.totalorder %s73, %s74
    %p86 = scmp.eq.s32.totalorder %s17, 1
    %p87 = por %p85, %p86
    %p89 = scmp.ne.s32.totalorder %s74, %s88
    %p90 = scmp.eq.s32.totalorder %s17, 0
    %p91 = por %p89, %p90
    %s93 = sadd.s32 %s92, 1
    %p96 = scmp.eq.s32.totalorder %s11, 1
    %p97 = scmp.ne.s32.totalorder %s92, %s94
    %p98 = scmp.eq.s32.totalorder %s11, 0
    %p99 = por %p97, %p98
    %p100 = scmp.ne.s32.totalorder %s92, %s94
    %p101 = scmp.eq.s32.totalorder %s16, 1
    %p102 = por %p100, %p101
    %p103 = scmp.ne.s32.totalorder %s94, %s95
    %p104 = scmp.eq.s32.totalorder %s16, 0
    %p105 = por %p103, %p104
    %p106 = scmp.ne.s32.totalorder %s94, %s95
    %p107 = scmp.eq.s32.totalorder %s17, 1
    %p108 = por %p106, %p107
    %p110 = scmp.ne.s32.totalorder %s95, %s109
    %p111 = scmp.eq.s32.totalorder %s17, 0
    %p112 = por %p110, %p111
    %s114 = sadd.s32 %s113, 1
    %p117 = scmp.eq.s32.totalorder %s11, 1
    %p118 = scmp.ne.s32.totalorder %s113, %s115
    %p119 = scmp.eq.s32.totalorder %s11, 0
    %p120 = por %p118, %p119
    %p121 = scmp.ne.s32.totalorder %s113, %s115
    %p122 = scmp.eq.s32.totalorder %s16, 1
    %p123 = por %p121, %p122
    %p124 = scmp.ne.s32.totalorder %s115, %s116
    %p125 = scmp.eq.s32.totalorder %s16, 0
    %p126 = por %p124, %p125
    %p127 = scmp.ne.s32.totalorder %s115, %s116
    %p128 = scmp.eq.s32.totalorder %s17, 1
    %p129 = por %p127, %p128
    %p131 = scmp.ne.s32.totalorder %s116, %s130
    %p132 = scmp.eq.s32.totalorder %s17, 0
    %p133 = por %p131, %p132
    %s134 = ssub.s32 %s11, %s18
    %p135 = scmp.eq.s32.totalorder %s134, 0
    %s137 = sadd.s32 %s136, 1
    %s138 = scalar_select %p135, %s136, %s137
    %p141 = pneg %p135
    %p142 = scmp.eq.s32.totalorder %s11, 1
    %p143 = por %p141, %p142
    %p144 = scmp.ne.s32.totalorder %s136, %s139
    %p145 = scmp.eq.s32.totalorder %s11, 0
    %p146 = por %p144, %p145
    %p147 = scmp.ne.s32.totalorder %s136, %s139
    %p148 = scmp.eq.s32.totalorder %s16, 1
    %p149 = por %p147, %p148
    %p150 = scmp.ne.s32.totalorder %s139, %s140
    %p151 = scmp.eq.s32.totalorder %s16, 0
    %p152 = por %p150, %p151
    %p153 = scmp.ne.s32.totalorder %s139, %s140
    %p154 = scmp.eq.s32.totalorder %s17, 1
    %p155 = por %p153, %p154
    %p157 = scmp.ne.s32.totalorder %s140, %s156
    %p158 = scmp.eq.s32.totalorder %s17, 0
    %p159 = por %p157, %p158
    %p160 = scmp.le.s32.totalorder 1, %s11
    %p161 = scmp.lt.s32.totalorder %s11, 3
    %p162 = pnand %p160, %p161
    %p163 = pneg %p162
    // Predicated region
    $region9: #{first_residual_block.5} parent=5 // pred_check
      _
    $region10: #{first_residual_block.5} parent=5 // pred_check_branch
      %165 = sbr.rel (%p162) target = $region12
    $region11: #{first_residual_block.5} parent=5 // pred_region
      %s166 = ssub.s32 %s11, 1
      // Predicated region
      $region13: #{first_residual_block.5} parent=11 // pred_check
        %p167 = pneg %p84
      $region14: #{first_residual_block.5} parent=11 // pred_check_branch
        %169 = sbr.rel (%p167) target = $region16
      $region15: #{first_residual_block.5} parent=11 // pred_region
        _
      $region16: #{first_residual_block.5} parent=11 // pred_fallthru
        _
      // Predicated region
      $region17: #{first_residual_block.5} parent=11 // pred_check
        %p170 = pneg %p105
      $region18: #{first_residual_block.5} parent=11 // pred_check_branch
        %172 = sbr.rel (%p170) target = $region20
      $region19: #{first_residual_block.5} parent=11 // pred_region
        _
      $region20: #{first_residual_block.5} parent=11 // pred_fallthru
        _
      // Predicated region
      $region21: #{first_residual_block.5} parent=11 // pred_check
        %p173 = pneg %p126
      $region22: #{first_residual_block.5} parent=11 // pred_check_branch
        %175 = sbr.rel (%p173) target = $region24
      $region23: #{first_residual_block.5} parent=11 // pred_region
        _
      $region24: #{first_residual_block.5} parent=11 // pred_fallthru
        _
    $region12: #{first_residual_block.5} parent=5 // pred_fallthru
      _
    %p176 = scmp.lt.s32.totalorder %s11, 2
    // Predicated region
    $region25: #{first_residual_block.5} parent=5 // pred_check
      %p177 = pneg %p176
    $region26: #{first_residual_block.5} parent=5 // pred_check_branch
      %179 = sbr.rel (%p177) target = $region28
    $region27: #{first_residual_block.5} parent=5 // pred_region
      // Predicated region
      $region29: #{first_residual_block.5} parent=27 // pred_check
        %p180 = pneg %p31
      $region30: #{first_residual_block.5} parent=27 // pred_check_branch
        %182 = sbr.rel (%p180) target = $region32
      $region31: #{first_residual_block.5} parent=27 // pred_region
        %p183 = scmp.lt.s32.totalorder %s11, 1
        %s184 = scalar_select %p183, %s11, 1
        %s185 = smul.addr %s184, 32
        %s186 = smul.addr %s185, 8
        %s187 = scalar_lea.vmem %s0, %s186
      $region32: #{first_residual_block.5} parent=27 // pred_fallthru
        _
      // Predicated region
      $region33: #{first_residual_block.5} parent=27 // pred_check
        %p188 = pneg %p57
      $region34: #{first_residual_block.5} parent=27 // pred_check_branch
        %190 = sbr.rel (%p188) target = $region36
      $region35: #{first_residual_block.5} parent=27 // pred_region
        %p191 = scmp.lt.s32.totalorder %s11, 1
        %s192 = scalar_select %p191, %s11, 1
        %s193 = smul.addr %s192, 32
        %s194 = smul.addr %s193, 8
        %s195 = scalar_lea.vmem %s1, %s194
      $region36: #{first_residual_block.5} parent=27 // pred_fallthru
        _
    $region28: #{first_residual_block.5} parent=5 // pred_fallthru
      _
    %p196 = scmp.le.s32.totalorder 1, %s11
    %p197 = scmp.lt.s32.totalorder %s11, 3
    %p198 = pnand %p196, %p197
    %p199 = pneg %p198
    // Predicated region
    $region37: #{first_residual_block.5} parent=5 // pred_check
      _
    $region38: #{first_residual_block.5} parent=5 // pred_check_branch
      %201 = sbr.rel (%p198) target = $region40
    $region39: #{first_residual_block.5} parent=5 // pred_region
      %s202 = ssub.s32 %s11, 1
      %p203 = scmp.lt.s32.totalorder %s16, 1
      %s204 = scalar_select %p203, %s16, 1
      %s205 = smul.addr %s204, 32
      %s206 = smul.addr %s205, 8
      %s207 = scalar_lea.vmem %s0, %s206
      %p208 = pneg %p37
      %p209 = pneg %p34
      %p210 = scmp.lt.s32.totalorder %s16, 1
      %s211 = scalar_select %p210, %s16, 1
      %s212 = smul.addr %s211, 32
      %s213 = smul.addr %s212, 8
      %s214 = scalar_lea.vmem %s1, %s213
      %p215 = pneg %p63
      %p216 = pneg %p60
      %p217 = pneg %p84
      %p218 = pneg %p81
      %p219 = pneg %p105
      %p220 = pneg %p102
      %p221 = pneg %p126
      %p222 = pneg %p123
      %p223 = pneg %p152
      %p224 = pneg %p149
      %p225 = scmp.lt.s32.totalorder %s16, 1
      %s226 = scalar_select %p225, %s16, 1
      %s227 = smul.addr %s226, 32
      %s228 = smul.addr %s227, 8
      %s229 = scalar_lea.vmem %s5, %s228
      %p230 = scmp.lt.s32.totalorder %s16, 1
      %s231 = scalar_select %p230, %s16, 1
      %s232 = smul.addr %s231, 32
      %s233 = smul.addr %s232, 8
      %s234 = scalar_lea.vmem %s0, %s233
      %p235 = scmp.lt.s32.totalorder %s16, 1
      %s236 = scalar_select %p235, %s16, 1
      %s237 = smul.addr %s236, 32
      %s238 = smul.addr %s237, 8
      %s239 = scalar_lea.vmem %s1, %s238
      %p240 = scmp.lt.s32.totalorder %s16, 1
      %s241 = scalar_select %p240, %s16, 1
      %s242 = smul.addr %s241, 32
      %s243 = smul.addr %s242, 8
      %s244 = scalar_lea.vmem %s5, %s243
      %v245 = vld [vmem:[%s234] sm:$0xff]
      %v246 = vld [vmem:[%s234 + $0x8] sm:$0xff]
      %v247 = vld [vmem:[%s234 + $0x10] sm:$0xff]
      %v248 = vld [vmem:[%s234 + $0x18] sm:$0xff]
      %v249 = vld [vmem:[%s234 + $0x20] sm:$0xff]
      %v250 = vld [vmem:[%s234 + $0x28] sm:$0xff]
      %v251 = vld [vmem:[%s234 + $0x30] sm:$0xff]
      %v252 = vld [vmem:[%s234 + $0x38] sm:$0xff]
      %v253 = vld [vmem:[%s234 + $0x40] sm:$0xff]
      %v254 = vld [vmem:[%s234 + $0x48] sm:$0xff]
      %v255 = vld [vmem:[%s234 + $0x50] sm:$0xff]
      %v256 = vld [vmem:[%s234 + $0x58] sm:$0xff]
      %v257 = vld [vmem:[%s234 + $0x60] sm:$0xff]
      %v258 = vld [vmem:[%s234 + $0x68] sm:$0xff]
      %v259 = vld [vmem:[%s234 + $0x70] sm:$0xff]
      %v260 = vld [vmem:[%s234 + $0x78] sm:$0xff]
      %v261 = vld [vmem:[%s234 + $0x80] sm:$0xff]
      %v262 = vld [vmem:[%s234 + $0x88] sm:$0xff]
      %v263 = vld [vmem:[%s234 + $0x90] sm:$0xff]
      %v264 = vld [vmem:[%s234 + $0x98] sm:$0xff]
      %v265 = vld [vmem:[%s234 + $0xa0] sm:$0xff]
      %v266 = vld [vmem:[%s234 + $0xa8] sm:$0xff]
      %v267 = vld [vmem:[%s234 + $0xb0] sm:$0xff]
      %v268 = vld [vmem:[%s234 + $0xb8] sm:$0xff]
      %v269 = vld [vmem:[%s234 + $0xc0] sm:$0xff]
      %v270 = vld [vmem:[%s234 + $0xc8] sm:$0xff]
      %v271 = vld [vmem:[%s234 + $0xd0] sm:$0xff]
      %v272 = vld [vmem:[%s234 + $0xd8] sm:$0xff]
      %v273 = vld [vmem:[%s234 + $0xe0] sm:$0xff]
      %v274 = vld [vmem:[%s234 + $0xe8] sm:$0xff]
      %v275 = vld [vmem:[%s234 + $0xf0] sm:$0xff]
      %v276 = vld [vmem:[%s234 + $0xf8] sm:$0xff]
      %v277 = vld [vmem:[%s2] sm:$0x1]
      %v279 = vlaneseq
      %v280 = vshrl.u32 %v279, 7
      %v281 = vsub.s32 0, %v280
      %v282 = vrot.slane %v277, %v281
      %v284 = vmul.f32 %v245, %v282
      %v285 = vmul.f32 %v246, %v282
      %v286 = vmul.f32 %v247, %v282
      %v287 = vmul.f32 %v248, %v282
      %v288 = vmul.f32 %v249, %v282
      %v289 = vmul.f32 %v250, %v282
      %v290 = vmul.f32 %v251, %v282
      %v291 = vmul.f32 %v252, %v282
      %v292 = vmul.f32 %v253, %v282
      %v293 = vmul.f32 %v254, %v282
      %v294 = vmul.f32 %v255, %v282
      %v295 = vmul.f32 %v256, %v282
      %v296 = vmul.f32 %v257, %v282
      %v297 = vmul.f32 %v258, %v282
      %v298 = vmul.f32 %v259, %v282
      %v299 = vmul.f32 %v260, %v282
      %v300 = vmul.f32 %v261, %v282
      %v301 = vmul.f32 %v262, %v282
      %v302 = vmul.f32 %v263, %v282
      %v303 = vmul.f32 %v264, %v282
      %v304 = vmul.f32 %v265, %v282
      %v305 = vmul.f32 %v266, %v282
      %v306 = vmul.f32 %v267, %v282
      %v307 = vmul.f32 %v268, %v282
      %v308 = vmul.f32 %v269, %v282
      %v309 = vmul.f32 %v270, %v282
      %v310 = vmul.f32 %v271, %v282
      %v311 = vmul.f32 %v272, %v282
      %v312 = vmul.f32 %v273, %v282
      %v313 = vmul.f32 %v274, %v282
      %v314 = vmul.f32 %v275, %v282
      %v315 = vmul.f32 %v276, %v282
      %v316 = vld [vmem:[%s3] sm:$0x1]
      %v318 = vlaneseq
      %v319 = vshrl.u32 %v318, 7
      %v320 = vsub.s32 0, %v319
      %v321 = vrot.slane %v316, %v320
      %v323 = vadd.f32 %v284, %v321
      %v324 = vadd.f32 %v285, %v321
      %v325 = vadd.f32 %v286, %v321
      %v326 = vadd.f32 %v287, %v321
      %v327 = vadd.f32 %v288, %v321
      %v328 = vadd.f32 %v289, %v321
      %v329 = vadd.f32 %v290, %v321
      %v330 = vadd.f32 %v291, %v321
      %v331 = vadd.f32 %v292, %v321
      %v332 = vadd.f32 %v293, %v321
      %v333 = vadd.f32 %v294, %v321
      %v334 = vadd.f32 %v295, %v321
      %v335 = vadd.f32 %v296, %v321
      %v336 = vadd.f32 %v297, %v321
      %v337 = vadd.f32 %v298, %v321
      %v338 = vadd.f32 %v299, %v321
      %v339 = vadd.f32 %v300, %v321
      %v340 = vadd.f32 %v301, %v321
      %v341 = vadd.f32 %v302, %v321
      %v342 = vadd.f32 %v303, %v321
      %v343 = vadd.f32 %v304, %v321
      %v344 = vadd.f32 %v305, %v321
      %v345 = vadd.f32 %v306, %v321
      %v346 = vadd.f32 %v307, %v321
      %v347 = vadd.f32 %v308, %v321
      %v348 = vadd.f32 %v309, %v321
      %v349 = vadd.f32 %v310, %v321
      %v350 = vadd.f32 %v311, %v321
      %v351 = vadd.f32 %v312, %v321
      %v352 = vadd.f32 %v313, %v321
      %v353 = vadd.f32 %v314, %v321
      %v354 = vadd.f32 %v315, %v321
      %v355 = vmax.f32 %v323, 0.0
      %v356 = vmax.f32 %v324, 0.0
      %v357 = vmax.f32 %v325, 0.0
      %v358 = vmax.f32 %v326, 0.0
      %v359 = vmax.f32 %v327, 0.0
      %v360 = vmax.f32 %v328, 0.0
      %v361 = vmax.f32 %v329, 0.0
      %v362 = vmax.f32 %v330, 0.0
      %v363 = vmax.f32 %v331, 0.0
      %v364 = vmax.f32 %v332, 0.0
      %v365 = vmax.f32 %v333, 0.0
      %v366 = vmax.f32 %v334, 0.0
      %v367 = vmax.f32 %v335, 0.0
      %v368 = vmax.f32 %v336, 0.0
      %v369 = vmax.f32 %v337, 0.0
      %v370 = vmax.f32 %v338, 0.0
      %v371 = vmax.f32 %v339, 0.0
      %v372 = vmax.f32 %v340, 0.0
      %v373 = vmax.f32 %v341, 0.0
      %v374 = vmax.f32 %v342, 0.0
      %v375 = vmax.f32 %v343, 0.0
      %v376 = vmax.f32 %v344, 0.0
      %v377 = vmax.f32 %v345, 0.0
      %v378 = vmax.f32 %v346, 0.0
      %v379 = vmax.f32 %v347, 0.0
      %v380 = vmax.f32 %v348, 0.0
      %v381 = vmax.f32 %v349, 0.0
      %v382 = vmax.f32 %v350, 0.0
      %v383 = vmax.f32 %v351, 0.0
      %v384 = vmax.f32 %v352, 0.0
      %v385 = vmax.f32 %v353, 0.0
      %v386 = vmax.f32 %v354, 0.0
      %v387 = vld [vmem:[%s239] sm:$0xff]
      %v388 = vld [vmem:[%s239 + $0x8] sm:$0xff]
      %v389 = vld [vmem:[%s239 + $0x10] sm:$0xff]
      %v390 = vld [vmem:[%s239 + $0x18] sm:$0xff]
      %v391 = vld [vmem:[%s239 + $0x20] sm:$0xff]
      %v392 = vld [vmem:[%s239 + $0x28] sm:$0xff]
      %v393 = vld [vmem:[%s239 + $0x30] sm:$0xff]
      %v394 = vld [vmem:[%s239 + $0x38] sm:$0xff]
      %v395 = vld [vmem:[%s239 + $0x40] sm:$0xff]
      %v396 = vld [vmem:[%s239 + $0x48] sm:$0xff]
      %v397 = vld [vmem:[%s239 + $0x50] sm:$0xff]
      %v398 = vld [vmem:[%s239 + $0x58] sm:$0xff]
      %v399 = vld [vmem:[%s239 + $0x60] sm:$0xff]
      %v400 = vld [vmem:[%s239 + $0x68] sm:$0xff]
      %v401 = vld [vmem:[%s239 + $0x70] sm:$0xff]
      %v402 = vld [vmem:[%s239 + $0x78] sm:$0xff]
      %v403 = vld [vmem:[%s239 + $0x80] sm:$0xff]
      %v404 = vld [vmem:[%s239 + $0x88] sm:$0xff]
      %v405 = vld [vmem:[%s239 + $0x90] sm:$0xff]
      %v406 = vld [vmem:[%s239 + $0x98] sm:$0xff]
      %v407 = vld [vmem:[%s239 + $0xa0] sm:$0xff]
      %v408 = vld [vmem:[%s239 + $0xa8] sm:$0xff]
      %v409 = vld [vmem:[%s239 + $0xb0] sm:$0xff]
      %v410 = vld [vmem:[%s239 + $0xb8] sm:$0xff]
      %v411 = vld [vmem:[%s239 + $0xc0] sm:$0xff]
      %v412 = vld [vmem:[%s239 + $0xc8] sm:$0xff]
      %v413 = vld [vmem:[%s239 + $0xd0] sm:$0xff]
      %v414 = vld [vmem:[%s239 + $0xd8] sm:$0xff]
      %v415 = vld [vmem:[%s239 + $0xe0] sm:$0xff]
      %v416 = vld [vmem:[%s239 + $0xe8] sm:$0xff]
      %v417 = vld [vmem:[%s239 + $0xf0] sm:$0xff]
      %v418 = vld [vmem:[%s239 + $0xf8] sm:$0xff]
      %v419 = vld [vmem:[%s4] sm:$0xf]
      %vm420 = vcmask 31744
      %v422 = vsel %vm420, %v387, 0
      %v425 = vsel %vm420, %v388, 0
      %v428 = vsel %vm420, %v389, 0
      %v431 = vsel %vm420, %v390, 0
      %v434 = vsel %vm420, %v391, 0
      %v437 = vsel %vm420, %v392, 0
      %v440 = vsel %vm420, %v393, 0
      %v443 = vsel %vm420, %v394, 0
      %v446 = vsel %vm420, %v395, 0
      %v449 = vsel %vm420, %v396, 0
      %v452 = vsel %vm420, %v397, 0
      %v455 = vsel %vm420, %v398, 0
      %v458 = vsel %vm420, %v399, 0
      %v461 = vsel %vm420, %v400, 0
      %v464 = vsel %vm420, %v401, 0
      %v467 = vsel %vm420, %v402, 0
      %v470 = vsel %vm420, %v403, 0
      %v473 = vsel %vm420, %v404, 0
      %v476 = vsel %vm420, %v405, 0
      %v479 = vsel %vm420, %v406, 0
      %v482 = vsel %vm420, %v407, 0
      %v485 = vsel %vm420, %v408, 0
      %v488 = vsel %vm420, %v409, 0
      %v491 = vsel %vm420, %v410, 0
      %v494 = vsel %vm420, %v411, 0
      %v497 = vsel %vm420, %v412, 0
      %v500 = vsel %vm420, %v413, 0
      %v503 = vsel %vm420, %v414, 0
      %v506 = vsel %vm420, %v415, 0
      %v509 = vsel %vm420, %v416, 0
      %v512 = vsel %vm420, %v417, 0
      %v515 = vsel %vm420, %v418, 0
      %vm517 = vcmask 1043456
      %v519 = vsel %vm517, %v419, 0
      %521 = vmatprep.subr.mxu0 0.0
      %522 = vmatpush1.msra.mxu0 0.0
      %523 = vmatprep.subr.mxu0 0.0
      %524 = vmatpush1.msra.mxu0 0.0
      %525 = vmatprep.subr.mxu0 0.0
      %526 = vmatpush1.msra.mxu0 0.0
      %527 = vmatprep.subr.mxu0 0.0
      %528 = vmatpush1.msra.mxu0 0.0
      %529 = vmatprep.subr.mxu0 0.0
      %530 = vmatpush1.msra.mxu0 0.0
      %531 = vmatprep.subr.mxu0 0.0
      %532 = vmatpush1.msra.mxu0 0.0
      %533 = vmatprep.subr.mxu0 0.0
      %534 = vmatpush1.msra.mxu0 0.0
      %535 = vmatprep.subr.mxu0 0.0
      %536 = vmatpush1.msra.mxu0 0.0
      %537 = vmatprep.subr.mxu0 0.0
      %538 = vmatpush1.msra.mxu0 0.0
      %539 = vmatprep.subr.mxu0 0.0
      %540 = vmatpush1.msra.mxu0 0.0
      %541 = vmatprep.subr.mxu0 0.0
      %542 = vmatpush1.msra.mxu0 0.0
      %543 = vmatprep.subr.mxu0 0.0
      %544 = vmatpush1.msra.mxu0 0.0
      %545 = vmatprep.subr.mxu0 0.0
      %546 = vmatpush1.msra.mxu0 0.0
      %547 = vmatprep.subr.mxu0 0.0
      %548 = vmatpush1.msra.mxu0 0.0
      %549 = vmatprep.subr.mxu0 0.0
      %550 = vmatpush1.msra.mxu0 0.0
      %551 = vmatprep.subr.mxu0 0.0
      %552 = vmatpush1.msra.mxu0 %v519
      %553 = vmatprep.subr.mxu0 0.0
      %554 = vmatpush2.msra.mxu0 0.0
      %555 = vmatprep.subr.mxu0 0.0
      %556 = vmatpush2.msra.mxu0 0.0
      %557 = vmatprep.subr.mxu0 0.0
      %558 = vmatpush2.msra.mxu0 0.0
      %559 = vmatprep.subr.mxu0 0.0
      %560 = vmatpush2.msra.mxu0 0.0
      %561 = vmatprep.subr.mxu0 0.0
      %562 = vmatpush2.msra.mxu0 0.0
      %563 = vmatprep.subr.mxu0 0.0
      %564 = vmatpush2.msra.mxu0 0.0
      %565 = vmatprep.subr.mxu0 0.0
      %566 = vmatpush2.msra.mxu0 0.0
      %567 = vmatprep.subr.mxu0 0.0
      %568 = vmatpush2.msra.mxu0 0.0
      %569 = vmatprep.subr.mxu0 0.0
      %570 = vmatpush2.msra.mxu0 0.0
      %571 = vmatprep.subr.mxu0 0.0
      %572 = vmatpush2.msra.mxu0 0.0
      %573 = vmatprep.subr.mxu0 0.0
      %574 = vmatpush2.msra.mxu0 0.0
      %575 = vmatprep.subr.mxu0 0.0
      %576 = vmatpush2.msra.mxu0 0.0
      %577 = vmatprep.subr.mxu0 0.0
      %578 = vmatpush2.msra.mxu0 0.0
      %579 = vmatprep.subr.mxu0 0.0
      %580 = vmatpush2.msra.mxu0 0.0
      %581 = vmatprep.subr.mxu0 0.0
      %582 = vmatpush2.msra.mxu0 0.0
      %583 = vmatprep.subr.mxu0 0.0
      %584 = vmatpush2.msra.mxu0 0.0
      %585 = vmatprep.mubr.f32.mxu0 0.0
      %586 = vmatmul.mubr.f32.gmra.mxu0 %v422
      %v587 = vpop.f32.mrf.mxu0
      %v588 = vadd.f32 0.0, %v587
      %v589 = vpop.f32.mrf.mxu0
      %590 = vmatprep.mubr.f32.mxu0 0.0
      %591 = vmatmul.mubr.f32.gmra.mxu0 %v425
      %v592 = vpop.f32.mrf.mxu0
      %v593 = vadd.f32 0.0, %v592
      %v594 = vpop.f32.mrf.mxu0
      %595 = vmatprep.mubr.f32.mxu0 0.0
      %596 = vmatmul.mubr.f32.gmra.mxu0 %v428
      %v597 = vpop.f32.mrf.mxu0
      %v598 = vadd.f32 0.0, %v597
      %v599 = vpop.f32.mrf.mxu0
      %600 = vmatprep.mubr.f32.mxu0 0.0
      %601 = vmatmul.mubr.f32.gmra.mxu0 %v431
      %v602 = vpop.f32.mrf.mxu0
      %v603 = vadd.f32 0.0, %v602
      %v604 = vpop.f32.mrf.mxu0
      %605 = vmatprep.mubr.f32.mxu0 0.0
      %606 = vmatmul.mubr.f32.gmra.mxu0 %v434
      %v607 = vpop.f32.mrf.mxu0
      %v608 = vadd.f32 0.0, %v607
      %v609 = vpop.f32.mrf.mxu0
      %610 = vmatprep.mubr.f32.mxu0 0.0
      %611 = vmatmul.mubr.f32.gmra.mxu0 %v437
      %v612 = vpop.f32.mrf.mxu0
      %v613 = vadd.f32 0.0, %v612
      %v614 = vpop.f32.mrf.mxu0
      %615 = vmatprep.mubr.f32.mxu0 0.0
      %616 = vmatmul.mubr.f32.gmra.mxu0 %v440
      %v617 = vpop.f32.mrf.mxu0
      %v618 = vadd.f32 0.0, %v617
      %v619 = vpop.f32.mrf.mxu0
      %620 = vmatprep.mubr.f32.mxu0 0.0
      %621 = vmatmul.mubr.f32.gmra.mxu0 %v443
      %v622 = vpop.f32.mrf.mxu0
      %v623 = vadd.f32 0.0, %v622
      %v624 = vpop.f32.mrf.mxu0
      %625 = vmatprep.mubr.f32.mxu0 0.0
      %626 = vmatmul.mubr.f32.gmra.mxu0 %v446
      %v627 = vpop.f32.mrf.mxu0
      %v628 = vadd.f32 0.0, %v627
      %v629 = vpop.f32.mrf.mxu0
      %630 = vmatprep.mubr.f32.mxu0 0.0
      %631 = vmatmul.mubr.f32.gmra.mxu0 %v449
      %v632 = vpop.f32.mrf.mxu0
      %v633 = vadd.f32 0.0, %v632
      %v634 = vpop.f32.mrf.mxu0
      %635 = vmatprep.mubr.f32.mxu0 0.0
      %636 = vmatmul.mubr.f32.gmra.mxu0 %v452
      %v637 = vpop.f32.mrf.mxu0
      %v638 = vadd.f32 0.0, %v637
      %v639 = vpop.f32.mrf.mxu0
      %640 = vmatprep.mubr.f32.mxu0 0.0
      %641 = vmatmul.mubr.f32.gmra.mxu0 %v455
      %v642 = vpop.f32.mrf.mxu0
      %v643 = vadd.f32 0.0, %v642
      %v644 = vpop.f32.mrf.mxu0
      %645 = vmatprep.mubr.f32.mxu0 0.0
      %646 = vmatmul.mubr.f32.gmra.mxu0 %v458
      %v647 = vpop.f32.mrf.mxu0
      %v648 = vadd.f32 0.0, %v647
      %v649 = vpop.f32.mrf.mxu0
      %650 = vmatprep.mubr.f32.mxu0 0.0
      %651 = vmatmul.mubr.f32.gmra.mxu0 %v461
      %v652 = vpop.f32.mrf.mxu0
      %v653 = vadd.f32 0.0, %v652
      %v654 = vpop.f32.mrf.mxu0
      %655 = vmatprep.mubr.f32.mxu0 0.0
      %656 = vmatmul.mubr.f32.gmra.mxu0 %v464
      %v657 = vpop.f32.mrf.mxu0
      %v658 = vadd.f32 0.0, %v657
      %v659 = vpop.f32.mrf.mxu0
      %660 = vmatprep.mubr.f32.mxu0 0.0
      %661 = vmatmul.mubr.f32.gmra.mxu0 %v467
      %v662 = vpop.f32.mrf.mxu0
      %v663 = vadd.f32 0.0, %v662
      %v664 = vpop.f32.mrf.mxu0
      %665 = vmatprep.mubr.f32.mxu0 0.0
      %666 = vmatmul.mubr.f32.gmra.mxu0 %v470
      %v667 = vpop.f32.mrf.mxu0
      %v668 = vadd.f32 0.0, %v667
      %v669 = vpop.f32.mrf.mxu0
      %670 = vmatprep.mubr.f32.mxu0 0.0
      %671 = vmatmul.mubr.f32.gmra.mxu0 %v473
      %v672 = vpop.f32.mrf.mxu0
      %v673 = vadd.f32 0.0, %v672
      %v674 = vpop.f32.mrf.mxu0
      %675 = vmatprep.mubr.f32.mxu0 0.0
      %676 = vmatmul.mubr.f32.gmra.mxu0 %v476
      %v677 = vpop.f32.mrf.mxu0
      %v678 = vadd.f32 0.0, %v677
      %v679 = vpop.f32.mrf.mxu0
      %680 = vmatprep.mubr.f32.mxu0 0.0
      %681 = vmatmul.mubr.f32.gmra.mxu0 %v479
      %v682 = vpop.f32.mrf.mxu0
      %v683 = vadd.f32 0.0, %v682
      %v684 = vpop.f32.mrf.mxu0
      %685 = vmatprep.mubr.f32.mxu0 0.0
      %686 = vmatmul.mubr.f32.gmra.mxu0 %v482
      %v687 = vpop.f32.mrf.mxu0
      %v688 = vadd.f32 0.0, %v687
      %v689 = vpop.f32.mrf.mxu0
      %690 = vmatprep.mubr.f32.mxu0 0.0
      %691 = vmatmul.mubr.f32.gmra.mxu0 %v485
      %v692 = vpop.f32.mrf.mxu0
      %v693 = vadd.f32 0.0, %v692
      %v694 = vpop.f32.mrf.mxu0
      %695 = vmatprep.mubr.f32.mxu0 0.0
      %696 = vmatmul.mubr.f32.gmra.mxu0 %v488
      %v697 = vpop.f32.mrf.mxu0
      %v698 = vadd.f32 0.0, %v697
      %v699 = vpop.f32.mrf.mxu0
      %700 = vmatprep.mubr.f32.mxu0 0.0
      %701 = vmatmul.mubr.f32.gmra.mxu0 %v491
      %v702 = vpop.f32.mrf.mxu0
      %v703 = vadd.f32 0.0, %v702
      %v704 = vpop.f32.mrf.mxu0
      %705 = vmatprep.mubr.f32.mxu0 0.0
      %706 = vmatmul.mubr.f32.gmra.mxu0 %v494
      %v707 = vpop.f32.mrf.mxu0
      %v708 = vadd.f32 0.0, %v707
      %v709 = vpop.f32.mrf.mxu0
      %710 = vmatprep.mubr.f32.mxu0 0.0
      %711 = vmatmul.mubr.f32.gmra.mxu0 %v497
      %v712 = vpop.f32.mrf.mxu0
      %v713 = vadd.f32 0.0, %v712
      %v714 = vpop.f32.mrf.mxu0
      %715 = vmatprep.mubr.f32.mxu0 0.0
      %716 = vmatmul.mubr.f32.gmra.mxu0 %v500
      %v717 = vpop.f32.mrf.mxu0
      %v718 = vadd.f32 0.0, %v717
      %v719 = vpop.f32.mrf.mxu0
      %720 = vmatprep.mubr.f32.mxu0 0.0
      %721 = vmatmul.mubr.f32.gmra.mxu0 %v503
      %v722 = vpop.f32.mrf.mxu0
      %v723 = vadd.f32 0.0, %v722
      %v724 = vpop.f32.mrf.mxu0
      %725 = vmatprep.mubr.f32.mxu0 0.0
      %726 = vmatmul.mubr.f32.gmra.mxu0 %v506
      %v727 = vpop.f32.mrf.mxu0
      %v728 = vadd.f32 0.0, %v727
      %v729 = vpop.f32.mrf.mxu0
      %730 = vmatprep.mubr.f32.mxu0 0.0
      %731 = vmatmul.mubr.f32.gmra.mxu0 %v509
      %v732 = vpop.f32.mrf.mxu0
      %v733 = vadd.f32 0.0, %v732
      %v734 = vpop.f32.mrf.mxu0
      %735 = vmatprep.mubr.f32.mxu0 0.0
      %736 = vmatmul.mubr.f32.gmra.mxu0 %v512
      %v737 = vpop.f32.mrf.mxu0
      %v738 = vadd.f32 0.0, %v737
      %v739 = vpop.f32.mrf.mxu0
      %740 = vmatprep.mubr.f32.mxu0 0.0
      %741 = vmatmul.mubr.f32.gmra.mxu0 %v515
      %v742 = vpop.f32.mrf.mxu0
      %v743 = vadd.f32 0.0, %v742
      %v744 = vpop.f32.mrf.mxu0
      %745 = vdwg.mxu0
      %v746 = vadd.f32 %v355, %v588
      %v747 = vadd.f32 %v356, %v593
      %v748 = vadd.f32 %v357, %v598
      %v749 = vadd.f32 %v358, %v603
      %v750 = vadd.f32 %v359, %v608
      %v751 = vadd.f32 %v360, %v613
      %v752 = vadd.f32 %v361, %v618
      %v753 = vadd.f32 %v362, %v623
      %v754 = vadd.f32 %v363, %v628
      %v755 = vadd.f32 %v364, %v633
      %v756 = vadd.f32 %v365, %v638
      %v757 = vadd.f32 %v366, %v643
      %v758 = vadd.f32 %v367, %v648
      %v759 = vadd.f32 %v368, %v653
      %v760 = vadd.f32 %v369, %v658
      %v761 = vadd.f32 %v370, %v663
      %v762 = vadd.f32 %v371, %v668
      %v763 = vadd.f32 %v372, %v673
      %v764 = vadd.f32 %v373, %v678
      %v765 = vadd.f32 %v374, %v683
      %v766 = vadd.f32 %v375, %v688
      %v767 = vadd.f32 %v376, %v693
      %v768 = vadd.f32 %v377, %v698
      %v769 = vadd.f32 %v378, %v703
      %v770 = vadd.f32 %v379, %v708
      %v771 = vadd.f32 %v380, %v713
      %v772 = vadd.f32 %v381, %v718
      %v773 = vadd.f32 %v382, %v723
      %v774 = vadd.f32 %v383, %v728
      %v775 = vadd.f32 %v384, %v733
      %v776 = vadd.f32 %v385, %v738
      %v777 = vadd.f32 %v386, %v743
      %vm778 = vcmask 64512
      %779 = vst.msk [vmem:[%s244] sm:$0xff] %vm778, %v746
      %780 = vst.msk [vmem:[%s244 + $0x8] sm:$0xff] %vm778, %v747
      %781 = vst.msk [vmem:[%s244 + $0x10] sm:$0xff] %vm778, %v748
      %782 = vst.msk [vmem:[%s244 + $0x18] sm:$0xff] %vm778, %v749
      %783 = vst.msk [vmem:[%s244 + $0x20] sm:$0xff] %vm778, %v750
      %784 = vst.msk [vmem:[%s244 + $0x28] sm:$0xff] %vm778, %v751
      %785 = vst.msk [vmem:[%s244 + $0x30] sm:$0xff] %vm778, %v752
      %786 = vst.msk [vmem:[%s244 + $0x38] sm:$0xff] %vm778, %v753
      %787 = vst.msk [vmem:[%s244 + $0x40] sm:$0xff] %vm778, %v754
      %788 = vst.msk [vmem:[%s244 + $0x48] sm:$0xff] %vm778, %v755
      %789 = vst.msk [vmem:[%s244 + $0x50] sm:$0xff] %vm778, %v756
      %790 = vst.msk [vmem:[%s244 + $0x58] sm:$0xff] %vm778, %v757
      %791 = vst.msk [vmem:[%s244 + $0x60] sm:$0xff] %vm778, %v758
      %792 = vst.msk [vmem:[%s244 + $0x68] sm:$0xff] %vm778, %v759
      %793 = vst.msk [vmem:[%s244 + $0x70] sm:$0xff] %vm778, %v760
      %794 = vst.msk [vmem:[%s244 + $0x78] sm:$0xff] %vm778, %v761
      %795 = vst.msk [vmem:[%s244 + $0x80] sm:$0xff] %vm778, %v762
      %796 = vst.msk [vmem:[%s244 + $0x88] sm:$0xff] %vm778, %v763
      %797 = vst.msk [vmem:[%s244 + $0x90] sm:$0xff] %vm778, %v764
      %798 = vst.msk [vmem:[%s244 + $0x98] sm:$0xff] %vm778, %v765
      %799 = vst.msk [vmem:[%s244 + $0xa0] sm:$0xff] %vm778, %v766
      %800 = vst.msk [vmem:[%s244 + $0xa8] sm:$0xff] %vm778, %v767
      %801 = vst.msk [vmem:[%s244 + $0xb0] sm:$0xff] %vm778, %v768
      %802 = vst.msk [vmem:[%s244 + $0xb8] sm:$0xff] %vm778, %v769
      %803 = vst.msk [vmem:[%s244 + $0xc0] sm:$0xff] %vm778, %v770
      %804 = vst.msk [vmem:[%s244 + $0xc8] sm:$0xff] %vm778, %v771
      %805 = vst.msk [vmem:[%s244 + $0xd0] sm:$0xff] %vm778, %v772
      %806 = vst.msk [vmem:[%s244 + $0xd8] sm:$0xff] %vm778, %v773
      %807 = vst.msk [vmem:[%s244 + $0xe0] sm:$0xff] %vm778, %v774
      %808 = vst.msk [vmem:[%s244 + $0xe8] sm:$0xff] %vm778, %v775
      %809 = vst.msk [vmem:[%s244 + $0xf0] sm:$0xff] %vm778, %v776
      %810 = vst.msk [vmem:[%s244 + $0xf8] sm:$0xff] %vm778, %v777
      %p811 = scmp.lt.s32.totalorder %s16, 1
      %s812 = scalar_select %p811, %s16, 1
      %s813 = smul.addr %s812, 32
      %s814 = smul.addr %s813, 8
      %s815 = scalar_lea.vmem %s5, %s814
      // Predicated region
      $region41: #{first_residual_block.5} parent=39 // pred_check
        %p816 = pneg %p149
      $region42: #{first_residual_block.5} parent=39 // pred_check_branch
        %818 = sbr.rel (%p816) target = $region44
      $region43: #{first_residual_block.5} parent=39 // pred_region
        _
      $region44: #{first_residual_block.5} parent=39 // pred_fallthru
        _
    $region40: #{first_residual_block.5} parent=5 // pred_fallthru
      _
    %p819 = scmp.le.s32.totalorder 2, %s11
    // Predicated region
    $region45: #{first_residual_block.5} parent=5 // pred_check
      %p820 = pneg %p819
    $region46: #{first_residual_block.5} parent=5 // pred_check_branch
      %822 = sbr.rel (%p820) target = $region48
    $region47: #{first_residual_block.5} parent=5 // pred_region
      %s823 = ssub.s32 %s11, 2
      // Predicated region
      $region49: #{first_residual_block.5} parent=47 // pred_check
        %p824 = pneg %p155
      $region50: #{first_residual_block.5} parent=47 // pred_check_branch
        %826 = sbr.rel (%p824) target = $region52
      $region51: #{first_residual_block.5} parent=47 // pred_region
        %p827 = scmp.lt.s32.totalorder %s17, 1
        %s828 = scalar_select %p827, %s17, 1
        %s829 = smul.addr %s828, 32
        %s830 = smul.addr %s829, 8
        %s831 = scalar_lea.vmem %s5, %s830
      $region52: #{first_residual_block.5} parent=47 // pred_fallthru
        _
    $region48: #{first_residual_block.5} parent=5 // pred_fallthru
      _
  $region6: #{first_residual_block.5} parent=0 // loop_footer
    %s15 = sadd.s32 1, %s11
  $region7: #{first_residual_block.5} parent=0 // loop_footer_branch
    %10 = sbr.rel target = $region3
  $region8: #{first_residual_block.5} parent=0 // loop_exit
    _

// kernel: first_residual_block.3
$region0: #{first_residual_block.3}
  #allocation0 [shape = 'u32[]', space=smem, size = 0x4, offset = 0x4, fixed_abs, tag = 'smem constant byte address 0x4 - core index']
  #allocation1 [shape = 'u32[144,128]{1,0:T(1,128)}', space=vmem, size = 0x12000, scoped, tag = 'internal scratch']
  #allocation2 [shape = 'f32[18,18,4]{2,1,0:T(8,128)}', space=vmem, size = 0x36000, scoped, tag = 'scratch operand']
  %s0 = inlined_call_operand.vmem [shape: f32[2,16,16,4], index: 0, kind: input, shape index: {}]
  %s1 = inlined_call_operand.vmem [shape: f32[36,8], index: 1, kind: input, shape index: {}]
  %s2 = inlined_call_operand.vmem [shape: f32[2,16,16,8], index: 2, kind: output, shape index: {0}]
  %s3 = inlined_call_operand.vmem [shape: f32[2,2,8], index: 3, kind: output, shape index: {1}]
  %4 = xla_tuple %s2, %s3
  %s5 = sld [smem:[#allocation0]]
  $region49: #{first_residual_block.3} parent=0
    _
  %s7 = ssub.s32 1, %s5
  %s8 = scalar_select 0, %s7, %s5
  loop: start=0, step=1, limit=4
  $region2: #{first_residual_block.3} parent=0 // loop_pre_header
    _
  $region3: #{first_residual_block.3} parent=0 // loop_header
    %s10 = sphi 0, %s14
    %p11 = scmp.ge.s32.totalorder %s10, 4
    %s20 = sphi 0, %s22
    %s23 = sphi 0, %s20
    %s24 = sphi 0, %s23
    %s40 = sphi 0, %s24
    %s44 = sphi 0, %s44
    %s46 = sphi 0, %s44
    %s47 = sphi 0, %s46
    %s61 = sphi 0, %s47
    %s67 = sphi 0, %s69
    %s70 = sphi 0, %s67
    %s71 = sphi 0, %s70
    %s87 = sphi 0, %s71
    %s93 = sphi 0, %s95
    %s96 = sphi 0, %s93
    %s97 = sphi 0, %s96
    %s113 = sphi 0, %s97
  $region4: #{first_residual_block.3} parent=0 // loop_header_branch
    %13 = sbr.rel (%p11) target = $region8
  $region5: #{first_residual_block.3} parent=0 // loop_body
    %s15 = ssub.s32 %s10, 1
    %s16 = ssub.s32 %s10, 2
    %s17 = sadd.s32 %s10, 1
    %s18 = ssub.s32 %s10, %s17
    %p19 = scmp.eq.s32.totalorder %s18, 0
    %s21 = sadd.s32 %s20, 1
    %s22 = scalar_select %p19, %s20, %s21
    %p25 = pneg %p19
    %p26 = scmp.eq.s32.totalorder %s10, 1
    %p27 = por %p25, %p26
    %p28 = scmp.ne.s32.totalorder %s20, %s23
    %p29 = scmp.eq.s32.totalorder %s10, 0
    %p30 = por %p28, %p29
    %p31 = scmp.ne.s32.totalorder %s20, %s23
    %p32 = scmp.eq.s32.totalorder %s15, 1
    %p33 = por %p31, %p32
    %p34 = scmp.ne.s32.totalorder %s23, %s24
    %p35 = scmp.eq.s32.totalorder %s15, 0
    %p36 = por %p34, %p35
    %p37 = scmp.ne.s32.totalorder %s23, %s24
    %p38 = scmp.eq.s32.totalorder %s16, 1
    %p39 = por %p37, %p38
    %p41 = scmp.ne.s32.totalorder %s24, %s40
    %p42 = scmp.eq.s32.totalorder %s16, 0
    %p43 = por %p41, %p42
    %s45 = sadd.s32 %s44, 1
    %p48 = scmp.eq.s32.totalorder %s10, 1
    %p49 = scmp.ne.s32.totalorder %s44, %s46
    %p50 = scmp.eq.s32.totalorder %s10, 0
    %p51 = por %p49, %p50
    %p52 = scmp.ne.s32.totalorder %s44, %s46
    %p53 = scmp.eq.s32.totalorder %s15, 1
    %p54 = por %p52, %p53
    %p55 = scmp.ne.s32.totalorder %s46, %s47
    %p56 = scmp.eq.s32.totalorder %s15, 0
    %p57 = por %p55, %p56
    %p58 = scmp.ne.s32.totalorder %s46, %s47
    %p59 = scmp.eq.s32.totalorder %s16, 1
    %p60 = por %p58, %p59
    %p62 = scmp.ne.s32.totalorder %s47, %s61
    %p63 = scmp.eq.s32.totalorder %s16, 0
    %p64 = por %p62, %p63
    %s65 = ssub.s32 %s10, %s17
    %p66 = scmp.eq.s32.totalorder %s65, 0
    %s68 = sadd.s32 %s67, 1
    %s69 = scalar_select %p66, %s67, %s68
    %p72 = pneg %p66
    %p73 = scmp.eq.s32.totalorder %s10, 1
    %p74 = por %p72, %p73
    %p75 = scmp.ne.s32.totalorder %s67, %s70
    %p76 = scmp.eq.s32.totalorder %s10, 0
    %p77 = por %p75, %p76
    %p78 = scmp.ne.s32.totalorder %s67, %s70
    %p79 = scmp.eq.s32.totalorder %s15, 1
    %p80 = por %p78, %p79
    %p81 = scmp.ne.s32.totalorder %s70, %s71
    %p82 = scmp.eq.s32.totalorder %s15, 0
    %p83 = por %p81, %p82
    %p84 = scmp.ne.s32.totalorder %s70, %s71
    %p85 = scmp.eq.s32.totalorder %s16, 1
    %p86 = por %p84, %p85
    %p88 = scmp.ne.s32.totalorder %s71, %s87
    %p89 = scmp.eq.s32.totalorder %s16, 0
    %p90 = por %p88, %p89
    %s91 = ssub.s32 %s10, %s17
    %p92 = scmp.eq.s32.totalorder %s91, 0
    %s94 = sadd.s32 %s93, 1
    %s95 = scalar_select %p92, %s93, %s94
    %p98 = pneg %p92
    %p99 = scmp.eq.s32.totalorder %s10, 1
    %p100 = por %p98, %p99
    %p101 = scmp.ne.s32.totalorder %s93, %s96
    %p102 = scmp.eq.s32.totalorder %s10, 0
    %p103 = por %p101, %p102
    %p104 = scmp.ne.s32.totalorder %s93, %s96
    %p105 = scmp.eq.s32.totalorder %s15, 1
    %p106 = por %p104, %p105
    %p107 = scmp.ne.s32.totalorder %s96, %s97
    %p108 = scmp.eq.s32.totalorder %s15, 0
    %p109 = por %p107, %p108
    %p110 = scmp.ne.s32.totalorder %s96, %s97
    %p111 = scmp.eq.s32.totalorder %s16, 1
    %p112 = por %p110, %p111
    %p114 = scmp.ne.s32.totalorder %s97, %s113
    %p115 = scmp.eq.s32.totalorder %s16, 0
    %p116 = por %p114, %p115
    %p117 = scmp.le.s32.totalorder 1, %s10
    %p118 = scmp.lt.s32.totalorder %s10, 3
    %p119 = pnand %p117, %p118
    %p120 = pneg %p119
    // Predicated region
    $region9: #{first_residual_block.3} parent=5 // pred_check
      _
    $region10: #{first_residual_block.3} parent=5 // pred_check_branch
      %122 = sbr.rel (%p119) target = $region12
    $region11: #{first_residual_block.3} parent=5 // pred_region
      %s123 = ssub.s32 %s10, 1
      // Predicated region
      $region13: #{first_residual_block.3} parent=11 // pred_check
        %p124 = pneg %p57
      $region14: #{first_residual_block.3} parent=11 // pred_check_branch
        %126 = sbr.rel (%p124) target = $region16
      $region15: #{first_residual_block.3} parent=11 // pred_region
        _
      $region16: #{first_residual_block.3} parent=11 // pred_fallthru
        _
    $region12: #{first_residual_block.3} parent=5 // pred_fallthru
      _
    %p127 = scmp.lt.s32.totalorder %s10, 2
    // Predicated region
    $region17: #{first_residual_block.3} parent=5 // pred_check
      %p128 = pneg %p127
    $region18: #{first_residual_block.3} parent=5 // pred_check_branch
      %130 = sbr.rel (%p128) target = $region20
    $region19: #{first_residual_block.3} parent=5 // pred_region
      // Predicated region
      $region21: #{first_residual_block.3} parent=19 // pred_check
        %p131 = pneg %p30
      $region22: #{first_residual_block.3} parent=19 // pred_check_branch
        %133 = sbr.rel (%p131) target = $region24
      $region23: #{first_residual_block.3} parent=19 // pred_region
        %p134 = scmp.lt.s32.totalorder %s10, 1
        %s135 = scalar_select %p134, %s10, 1
        %s136 = smul.addr %s135, 32
        %s137 = smul.addr %s136, 8
        %s138 = scalar_lea.vmem %s0, %s137
      $region24: #{first_residual_block.3} parent=19 // pred_fallthru
        _
    $region20: #{first_residual_block.3} parent=5 // pred_fallthru
      _
    %p139 = scmp.le.s32.totalorder 1, %s10
    %p140 = scmp.lt.s32.totalorder %s10, 3
    %p141 = pnand %p139, %p140
    %p142 = pneg %p141
    // Predicated region
    $region25: #{first_residual_block.3} parent=5 // pred_check
      _
    $region26: #{first_residual_block.3} parent=5 // pred_check_branch
      %144 = sbr.rel (%p141) target = $region28
    $region27: #{first_residual_block.3} parent=5 // pred_region
      %s145 = ssub.s32 %s10, 1
      %p146 = scmp.lt.s32.totalorder %s15, 1
      %s147 = scalar_select %p146, %s15, 1
      %s148 = smul.addr %s147, 32
      %s149 = smul.addr %s148, 8
      %s150 = scalar_lea.vmem %s0, %s149
      %p151 = pneg %p36
      %p152 = pneg %p33
      %p153 = pneg %p57
      %p154 = pneg %p54
      %p155 = pneg %p83
      %p156 = pneg %p80
      %p157 = scmp.lt.s32.totalorder %s15, 1
      %s158 = scalar_select %p157, %s15, 1
      %s159 = smul.addr %s158, 32
      %s160 = smul.addr %s159, 8
      %s161 = scalar_lea.vmem %s2, %s160
      %p162 = pneg %p109
      %p163 = pneg %p106
      %p164 = scmp.lt.s32.totalorder %s15, 1
      %s165 = scalar_select %p164, %s15, 1
      %s166 = smul.addr %s165, 2
      %s167 = scalar_lea.vmem %s3, %s166
      %p168 = scmp.lt.s32.totalorder %s15, 1
      %s169 = scalar_select %p168, %s15, 1
      %s170 = smul.addr %s169, 32
      %s171 = smul.addr %s170, 8
      %s172 = scalar_lea.vmem %s0, %s171
      %p173 = scmp.lt.s32.totalorder %s15, 1
      %s174 = scalar_select %p173, %s15, 1
      %s175 = smul.addr %s174, 32
      %s176 = smul.addr %s175, 8
      %s177 = scalar_lea.vmem %s2, %s176
      %p178 = scmp.lt.s32.totalorder %s15, 1
      %s179 = scalar_select %p178, %s15, 1
      %s180 = smul.addr %s179, 2
      %s181 = scalar_lea.vmem %s3, %s180
      %v182 = vld [vmem:[%s172] sm:$0xff]
      %v183 = vld [vmem:[%s172 + $0x8] sm:$0xff]
      %v184 = vld [vmem:[%s172 + $0x10] sm:$0xff]
      %v185 = vld [vmem:[%s172 + $0x18] sm:$0xff]
      %v186 = vld [vmem:[%s172 + $0x20] sm:$0xff]
      %v187 = vld [vmem:[%s172 + $0x28] sm:$0xff]
      %v188 = vld [vmem:[%s172 + $0x30] sm:$0xff]
      %v189 = vld [vmem:[%s172 + $0x38] sm:$0xff]
      %v190 = vld [vmem:[%s172 + $0x40] sm:$0xff]
      %v191 = vld [vmem:[%s172 + $0x48] sm:$0xff]
      %v192 = vld [vmem:[%s172 + $0x50] sm:$0xff]
      %v193 = vld [vmem:[%s172 + $0x58] sm:$0xff]
      %v194 = vld [vmem:[%s172 + $0x60] sm:$0xff]
      %v195 = vld [vmem:[%s172 + $0x68] sm:$0xff]
      %v196 = vld [vmem:[%s172 + $0x70] sm:$0xff]
      %v197 = vld [vmem:[%s172 + $0x78] sm:$0xff]
      %v198 = vld [vmem:[%s172 + $0x80] sm:$0xff]
      %v199 = vld [vmem:[%s172 + $0x88] sm:$0xff]
      %v200 = vld [vmem:[%s172 + $0x90] sm:$0xff]
      %v201 = vld [vmem:[%s172 + $0x98] sm:$0xff]
      %v202 = vld [vmem:[%s172 + $0xa0] sm:$0xff]
      %v203 = vld [vmem:[%s172 + $0xa8] sm:$0xff]
      %v204 = vld [vmem:[%s172 + $0xb0] sm:$0xff]
      %v205 = vld [vmem:[%s172 + $0xb8] sm:$0xff]
      %v206 = vld [vmem:[%s172 + $0xc0] sm:$0xff]
      %v207 = vld [vmem:[%s172 + $0xc8] sm:$0xff]
      %v208 = vld [vmem:[%s172 + $0xd0] sm:$0xff]
      %v209 = vld [vmem:[%s172 + $0xd8] sm:$0xff]
      %v210 = vld [vmem:[%s172 + $0xe0] sm:$0xff]
      %v211 = vld [vmem:[%s172 + $0xe8] sm:$0xff]
      %v212 = vld [vmem:[%s172 + $0xf0] sm:$0xff]
      %v213 = vld [vmem:[%s172 + $0xf8] sm:$0xff]
      %v214 = vld [vmem:[%s1] sm:$0xff]
      %v215 = vld [vmem:[%s1 + $0x8] sm:$0xff]
      %v216 = vld [vmem:[%s1 + $0x10] sm:$0xff]
      %v217 = vld [vmem:[%s1 + $0x18] sm:$0xff]
      %v218 = vld [vmem:[%s1 + $0x20] sm:$0xf]
      %vm219 = vcmask 31744
      %220 = vst.msk [vmem:[#allocation2] sm:$0xff] %vm219, 0.0
      %221 = vst.msk [vmem:[#allocation2 + $0x8] sm:$0xff] %vm219, 0.0
      %vm222 = vcmask 25600
      %223 = vst.msk [vmem:[#allocation2 + $0x10] sm:$0x3] %vm222, 0.0
      %s224 = scalar_lea.vmem [#allocation2], 408
      %225 = vst.msk [vmem:[%s224] sm:$0xff] %vm219, 0.0
      %226 = vst.msk [vmem:[%s224 + $0x8] sm:$0xff] %vm219, 0.0
      %227 = vst.msk [vmem:[%s224 + $0x10] sm:$0x3] %vm222, 0.0
      %s228 = scalar_lea.vmem [#allocation2], 24
      %vm229 = vcmask 24576
      %230 = vst.msk [vmem:[%s228] sm:$0x1] %vm229, 0.0
      %231 = vst.msk [vmem:[%s228 + $0x18] sm:$0x1] %vm229, 0.0
      %232 = vst.msk [vmem:[%s228 + $0x30] sm:$0x1] %vm229, 0.0
      %233 = vst.msk [vmem:[%s228 + $0x48] sm:$0x1] %vm229, 0.0
      %234 = vst.msk [vmem:[%s228 + $0x60] sm:$0x1] %vm229, 0.0
      %235 = vst.msk [vmem:[%s228 + $0x78] sm:$0x1] %vm229, 0.0
      %236 = vst.msk [vmem:[%s228 + $0x90] sm:$0x1] %vm229, 0.0
      %237 = vst.msk [vmem:[%s228 + $0xa8] sm:$0x1] %vm229, 0.0
      %238 = vst.msk [vmem:[%s228 + $0xc0] sm:$0x1] %vm229, 0.0
      %239 = vst.msk [vmem:[%s228 + $0xd8] sm:$0x1] %vm229, 0.0
      %240 = vst.msk [vmem:[%s228 + $0xf0] sm:$0x1] %vm229, 0.0
      %241 = vst.msk [vmem:[%s228 + $0x108] sm:$0x1] %vm229, 0.0
      %242 = vst.msk [vmem:[%s228 + $0x120] sm:$0x1] %vm229, 0.0
      %243 = vst.msk [vmem:[%s228 + $0x138] sm:$0x1] %vm229, 0.0
      %244 = vst.msk [vmem:[%s228 + $0x150] sm:$0x1] %vm229, 0.0
      %245 = vst.msk [vmem:[%s228 + $0x168] sm:$0x1] %vm229, 0.0
      %246 = vst.msk [vmem:[%s228 + $0x11] sm:$0x1] %vm229, 0.0
      %247 = vst.msk [vmem:[%s228 + $0x29] sm:$0x1] %vm229, 0.0
      %248 = vst.msk [vmem:[%s228 + $0x41] sm:$0x1] %vm229, 0.0
      %249 = vst.msk [vmem:[%s228 + $0x59] sm:$0x1] %vm229, 0.0
      %250 = vst.msk [vmem:[%s228 + $0x71] sm:$0x1] %vm229, 0.0
      %251 = vst.msk [vmem:[%s228 + $0x89] sm:$0x1] %vm229, 0.0
      %252 = vst.msk [vmem:[%s228 + $0xa1] sm:$0x1] %vm229, 0.0
      %253 = vst.msk [vmem:[%s228 + $0xb9] sm:$0x1] %vm229, 0.0
      %254 = vst.msk [vmem:[%s228 + $0xd1] sm:$0x1] %vm229, 0.0
      %255 = vst.msk [vmem:[%s228 + $0xe9] sm:$0x1] %vm229, 0.0
      %256 = vst.msk [vmem:[%s228 + $0x101] sm:$0x1] %vm229, 0.0
      %257 = vst.msk [vmem:[%s228 + $0x119] sm:$0x1] %vm229, 0.0
      %258 = vst.msk [vmem:[%s228 + $0x131] sm:$0x1] %vm229, 0.0
      %259 = vst.msk [vmem:[%s228 + $0x149] sm:$0x1] %vm229, 0.0
      %260 = vst.msk [vmem:[%s228 + $0x161] sm:$0x1] %vm229, 0.0
      %261 = vst.msk [vmem:[%s228 + $0x179] sm:$0x1] %vm229, 0.0
      %262 = vst.msk [vmem:[%s228 + $0x1] sm:$0xff] %vm219, %v182
      %263 = vst.msk [vmem:[%s228 + $0x9] sm:$0xff] %vm219, %v183
      %264 = vst.msk [vmem:[%s228 + $0x19] sm:$0xff] %vm219, %v184
      %265 = vst.msk [vmem:[%s228 + $0x21] sm:$0xff] %vm219, %v185
      %266 = vst.msk [vmem:[%s228 + $0x31] sm:$0xff] %vm219, %v186
      %267 = vst.msk [vmem:[%s228 + $0x39] sm:$0xff] %vm219, %v187
      %268 = vst.msk [vmem:[%s228 + $0x49] sm:$0xff] %vm219, %v188
      %269 = vst.msk [vmem:[%s228 + $0x51] sm:$0xff] %vm219, %v189
      %270 = vst.msk [vmem:[%s228 + $0x61] sm:$0xff] %vm219, %v190
      %271 = vst.msk [vmem:[%s228 + $0x69] sm:$0xff] %vm219, %v191
      %272 = vst.msk [vmem:[%s228 + $0x79] sm:$0xff] %vm219, %v192
      %273 = vst.msk [vmem:[%s228 + $0x81] sm:$0xff] %vm219, %v193
      %274 = vst.msk [vmem:[%s228 + $0x91] sm:$0xff] %vm219, %v194
      %275 = vst.msk [vmem:[%s228 + $0x99] sm:$0xff] %vm219, %v195
      %276 = vst.msk [vmem:[%s228 + $0xa9] sm:$0xff] %vm219, %v196
      %277 = vst.msk [vmem:[%s228 + $0xb1] sm:$0xff] %vm219, %v197
      %278 = vst.msk [vmem:[%s228 + $0xc1] sm:$0xff] %vm219, %v198
      %279 = vst.msk [vmem:[%s228 + $0xc9] sm:$0xff] %vm219, %v199
      %280 = vst.msk [vmem:[%s228 + $0xd9] sm:$0xff] %vm219, %v200
      %281 = vst.msk [vmem:[%s228 + $0xe1] sm:$0xff] %vm219, %v201
      %282 = vst.msk [vmem:[%s228 + $0xf1] sm:$0xff] %vm219, %v202
      %283 = vst.msk [vmem:[%s228 + $0xf9] sm:$0xff] %vm219, %v203
      %284 = vst.msk [vmem:[%s228 + $0x109] sm:$0xff] %vm219, %v204
      %285 = vst.msk [vmem:[%s228 + $0x111] sm:$0xff] %vm219, %v205
      %286 = vst.msk [vmem:[%s228 + $0x121] sm:$0xff] %vm219, %v206
      %287 = vst.msk [vmem:[%s228 + $0x129] sm:$0xff] %vm219, %v207
      %288 = vst.msk [vmem:[%s228 + $0x139] sm:$0xff] %vm219, %v208
      %289 = vst.msk [vmem:[%s228 + $0x141] sm:$0xff] %vm219, %v209
      %290 = vst.msk [vmem:[%s228 + $0x151] sm:$0xff] %vm219, %v210
      %291 = vst.msk [vmem:[%s228 + $0x159] sm:$0xff] %vm219, %v211
      %292 = vst.msk [vmem:[%s228 + $0x169] sm:$0xff] %vm219, %v212
      %293 = vst.msk [vmem:[%s228 + $0x171] sm:$0xff] %vm219, %v213
      %v294 = vld [vmem:[#allocation2] sm:$0xff]
      %v295 = vld [vmem:[#allocation2 + $0x8] sm:$0xff]
      %v296 = vld [vmem:[#allocation2 + $0x18] sm:$0xff]
      %v297 = vld [vmem:[#allocation2 + $0x20] sm:$0xff]
      %v298 = vld [vmem:[#allocation2 + $0x30] sm:$0xff]
      %v299 = vld [vmem:[#allocation2 + $0x38] sm:$0xff]
      %v300 = vld [vmem:[#allocation2 + $0x48] sm:$0xff]
      %v301 = vld [vmem:[#allocation2 + $0x50] sm:$0xff]
      %v302 = vld [vmem:[#allocation2 + $0x60] sm:$0xff]
      %v303 = vld [vmem:[#allocation2 + $0x68] sm:$0xff]
      %v304 = vld [vmem:[#allocation2 + $0x78] sm:$0xff]
      %v305 = vld [vmem:[#allocation2 + $0x80] sm:$0xff]
      %v306 = vld [vmem:[#allocation2 + $0x90] sm:$0xff]
      %v307 = vld [vmem:[#allocation2 + $0x98] sm:$0xff]
      %v308 = vld [vmem:[#allocation2 + $0xa8] sm:$0xff]
      %v309 = vld [vmem:[#allocation2 + $0xb0] sm:$0xff]
      %v310 = vld [vmem:[#allocation2 + $0xc0] sm:$0xff]
      %v311 = vld [vmem:[#allocation2 + $0xc8] sm:$0xff]
      %v312 = vld [vmem:[#allocation2 + $0xd8] sm:$0xff]
      %v313 = vld [vmem:[#allocation2 + $0xe0] sm:$0xff]
      %v314 = vld [vmem:[#allocation2 + $0xf0] sm:$0xff]
      %v315 = vld [vmem:[#allocation2 + $0xf8] sm:$0xff]
      %v316 = vld [vmem:[#allocation2 + $0x108] sm:$0xff]
      %v317 = vld [vmem:[#allocation2 + $0x110] sm:$0xff]
      %v318 = vld [vmem:[#allocation2 + $0x120] sm:$0xff]
      %v319 = vld [vmem:[#allocation2 + $0x128] sm:$0xff]
      %v320 = vld [vmem:[#allocation2 + $0x138] sm:$0xff]
      %v321 = vld [vmem:[#allocation2 + $0x140] sm:$0xff]
      %v322 = vld [vmem:[#allocation2 + $0x150] sm:$0xff]
      %v323 = vld [vmem:[#allocation2 + $0x158] sm:$0xff]
      %v324 = vld [vmem:[#allocation2 + $0x168] sm:$0xff]
      %v325 = vld [vmem:[#allocation2 + $0x170] sm:$0xff]
      %v326 = vld [vmem:[#allocation2 + $0x1] sm:$0xff]
      %v327 = vld [vmem:[#allocation2 + $0x9] sm:$0xff]
      %v328 = vld [vmem:[#allocation2 + $0x19] sm:$0xff]
      %v329 = vld [vmem:[#allocation2 + $0x21] sm:$0xff]
      %v330 = vld [vmem:[#allocation2 + $0x31] sm:$0xff]
      %v331 = vld [vmem:[#allocation2 + $0x39] sm:$0xff]
      %v332 = vld [vmem:[#allocation2 + $0x49] sm:$0xff]
      %v333 = vld [vmem:[#allocation2 + $0x51] sm:$0xff]
      %v334 = vld [vmem:[#allocation2 + $0x61] sm:$0xff]
      %v335 = vld [vmem:[#allocation2 + $0x69] sm:$0xff]
      %v336 = vld [vmem:[#allocation2 + $0x79] sm:$0xff]
      %v337 = vld [vmem:[#allocation2 + $0x81] sm:$0xff]
      %v338 = vld [vmem:[#allocation2 + $0x91] sm:$0xff]
      %v339 = vld [vmem:[#allocation2 + $0x99] sm:$0xff]
      %v340 = vld [vmem:[#allocation2 + $0xa9] sm:$0xff]
      %v341 = vld [vmem:[#allocation2 + $0xb1] sm:$0xff]
      %v342 = vld [vmem:[#allocation2 + $0xc1] sm:$0xff]
      %v343 = vld [vmem:[#allocation2 + $0xc9] sm:$0xff]
      %v344 = vld [vmem:[#allocation2 + $0xd9] sm:$0xff]
      %v345 = vld [vmem:[#allocation2 + $0xe1] sm:$0xff]
      %v346 = vld [vmem:[#allocation2 + $0xf1] sm:$0xff]
      %v347 = vld [vmem:[#allocation2 + $0xf9] sm:$0xff]
      %v348 = vld [vmem:[#allocation2 + $0x109] sm:$0xff]
      %v349 = vld [vmem:[#allocation2 + $0x111] sm:$0xff]
      %v350 = vld [vmem:[#allocation2 + $0x121] sm:$0xff]
      %v351 = vld [vmem:[#allocation2 + $0x129] sm:$0xff]
      %v352 = vld [vmem:[#allocation2 + $0x139] sm:$0xff]
      %v353 = vld [vmem:[#allocation2 + $0x141] sm:$0xff]
      %v354 = vld [vmem:[#allocation2 + $0x151] sm:$0xff]
      %v355 = vld [vmem:[#allocation2 + $0x159] sm:$0xff]
      %v356 = vld [vmem:[#allocation2 + $0x169] sm:$0xff]
      %v357 = vld [vmem:[#allocation2 + $0x171] sm:$0xff]
      %v358 = vld [vmem:[#allocation2 + $0x2] sm:$0xff]
      %v359 = vld [vmem:[#allocation2 + $0xa] sm:$0xff]
      %v360 = vld [vmem:[#allocation2 + $0x1a] sm:$0xff]
      %v361 = vld [vmem:[#allocation2 + $0x22] sm:$0xff]
      %v362 = vld [vmem:[#allocation2 + $0x32] sm:$0xff]
      %v363 = vld [vmem:[#allocation2 + $0x3a] sm:$0xff]
      %v364 = vld [vmem:[#allocation2 + $0x4a] sm:$0xff]
      %v365 = vld [vmem:[#allocation2 + $0x52] sm:$0xff]
      %v366 = vld [vmem:[#allocation2 + $0x62] sm:$0xff]
      %v367 = vld [vmem:[#allocation2 + $0x6a] sm:$0xff]
      %v368 = vld [vmem:[#allocation2 + $0x7a] sm:$0xff]
      %v369 = vld [vmem:[#allocation2 + $0x82] sm:$0xff]
      %v370 = vld [vmem:[#allocation2 + $0x92] sm:$0xff]
      %v371 = vld [vmem:[#allocation2 + $0x9a] sm:$0xff]
      %v372 = vld [vmem:[#allocation2 + $0xaa] sm:$0xff]
      %v373 = vld [vmem:[#allocation2 + $0xb2] sm:$0xff]
      %v374 = vld [vmem:[#allocation2 + $0xc2] sm:$0xff]
      %v375 = vld [vmem:[#allocation2 + $0xca] sm:$0xff]
      %v376 = vld [vmem:[#allocation2 + $0xda] sm:$0xff]
      %v377 = vld [vmem:[#allocation2 + $0xe2] sm:$0xff]
      %v378 = vld [vmem:[#allocation2 + $0xf2] sm:$0xff]
      %v379 = vld [vmem:[#allocation2 + $0xfa] sm:$0xff]
      %v380 = vld [vmem:[#allocation2 + $0x10a] sm:$0xff]
      %v381 = vld [vmem:[#allocation2 + $0x112] sm:$0xff]
      %v382 = vld [vmem:[#allocation2 + $0x122] sm:$0xff]
      %v383 = vld [vmem:[#allocation2 + $0x12a] sm:$0xff]
      %v384 = vld [vmem:[#allocation2 + $0x13a] sm:$0xff]
      %v385 = vld [vmem:[#allocation2 + $0x142] sm:$0xff]
      %v386 = vld [vmem:[#allocation2 + $0x152] sm:$0xff]
      %v387 = vld [vmem:[#allocation2 + $0x15a] sm:$0xff]
      %v388 = vld [vmem:[#allocation2 + $0x16a] sm:$0xff]
      %v389 = vld [vmem:[#allocation2 + $0x172] sm:$0xff]
      %v390 = vld [vmem:[%s228] sm:$0xff]
      %v391 = vld [vmem:[%s228 + $0x8] sm:$0xff]
      %v392 = vld [vmem:[%s228 + $0x18] sm:$0xff]
      %v393 = vld [vmem:[%s228 + $0x20] sm:$0xff]
      %v394 = vld [vmem:[%s228 + $0x30] sm:$0xff]
      %v395 = vld [vmem:[%s228 + $0x38] sm:$0xff]
      %v396 = vld [vmem:[%s228 + $0x48] sm:$0xff]
      %v397 = vld [vmem:[%s228 + $0x50] sm:$0xff]
      %v398 = vld [vmem:[%s228 + $0x60] sm:$0xff]
      %v399 = vld [vmem:[%s228 + $0x68] sm:$0xff]
      %v400 = vld [vmem:[%s228 + $0x78] sm:$0xff]
      %v401 = vld [vmem:[%s228 + $0x80] sm:$0xff]
      %v402 = vld [vmem:[%s228 + $0x90] sm:$0xff]
      %v403 = vld [vmem:[%s228 + $0x98] sm:$0xff]
      %v404 = vld [vmem:[%s228 + $0xa8] sm:$0xff]
      %v405 = vld [vmem:[%s228 + $0xb0] sm:$0xff]
      %v406 = vld [vmem:[%s228 + $0xc0] sm:$0xff]
      %v407 = vld [vmem:[%s228 + $0xc8] sm:$0xff]
      %v408 = vld [vmem:[%s228 + $0xd8] sm:$0xff]
      %v409 = vld [vmem:[%s228 + $0xe0] sm:$0xff]
      %v410 = vld [vmem:[%s228 + $0xf0] sm:$0xff]
      %v411 = vld [vmem:[%s228 + $0xf8] sm:$0xff]
      %v412 = vld [vmem:[%s228 + $0x108] sm:$0xff]
      %v413 = vld [vmem:[%s228 + $0x110] sm:$0xff]
      %v414 = vld [vmem:[%s228 + $0x120] sm:$0xff]
      %v415 = vld [vmem:[%s228 + $0x128] sm:$0xff]
      %v416 = vld [vmem:[%s228 + $0x138] sm:$0xff]
      %v417 = vld [vmem:[%s228 + $0x140] sm:$0xff]
      %v418 = vld [vmem:[%s228 + $0x150] sm:$0xff]
      %v419 = vld [vmem:[%s228 + $0x158] sm:$0xff]
      %v420 = vld [vmem:[%s228 + $0x168] sm:$0xff]
      %v421 = vld [vmem:[%s228 + $0x170] sm:$0xff]
      %v422 = vld [vmem:[%s228 + $0x1] sm:$0xff]
      %v423 = vld [vmem:[%s228 + $0x9] sm:$0xff]
      %v424 = vld [vmem:[%s228 + $0x19] sm:$0xff]
      %v425 = vld [vmem:[%s228 + $0x21] sm:$0xff]
      %v426 = vld [vmem:[%s228 + $0x31] sm:$0xff]
      %v427 = vld [vmem:[%s228 + $0x39] sm:$0xff]
      %v428 = vld [vmem:[%s228 + $0x49] sm:$0xff]
      %v429 = vld [vmem:[%s228 + $0x51] sm:$0xff]
      %v430 = vld [vmem:[%s228 + $0x61] sm:$0xff]
      %v431 = vld [vmem:[%s228 + $0x69] sm:$0xff]
      %v432 = vld [vmem:[%s228 + $0x79] sm:$0xff]
      %v433 = vld [vmem:[%s228 + $0x81] sm:$0xff]
      %v434 = vld [vmem:[%s228 + $0x91] sm:$0xff]
      %v435 = vld [vmem:[%s228 + $0x99] sm:$0xff]
      %v436 = vld [vmem:[%s228 + $0xa9] sm:$0xff]
      %v437 = vld [vmem:[%s228 + $0xb1] sm:$0xff]
      %v438 = vld [vmem:[%s228 + $0xc1] sm:$0xff]
      %v439 = vld [vmem:[%s228 + $0xc9] sm:$0xff]
      %v440 = vld [vmem:[%s228 + $0xd9] sm:$0xff]
      %v441 = vld [vmem:[%s228 + $0xe1] sm:$0xff]
      %v442 = vld [vmem:[%s228 + $0xf1] sm:$0xff]
      %v443 = vld [vmem:[%s228 + $0xf9] sm:$0xff]
      %v444 = vld [vmem:[%s228 + $0x109] sm:$0xff]
      %v445 = vld [vmem:[%s228 + $0x111] sm:$0xff]
      %v446 = vld [vmem:[%s228 + $0x121] sm:$0xff]
      %v447 = vld [vmem:[%s228 + $0x129] sm:$0xff]
      %v448 = vld [vmem:[%s228 + $0x139] sm:$0xff]
      %v449 = vld [vmem:[%s228 + $0x141] sm:$0xff]
      %v450 = vld [vmem:[%s228 + $0x151] sm:$0xff]
      %v451 = vld [vmem:[%s228 + $0x159] sm:$0xff]
      %v452 = vld [vmem:[%s228 + $0x169] sm:$0xff]
      %v453 = vld [vmem:[%s228 + $0x171] sm:$0xff]
      %v454 = vld [vmem:[%s228 + $0x2] sm:$0xff]
      %v455 = vld [vmem:[%s228 + $0xa] sm:$0xff]
      %v456 = vld [vmem:[%s228 + $0x1a] sm:$0xff]
      %v457 = vld [vmem:[%s228 + $0x22] sm:$0xff]
      %v458 = vld [vmem:[%s228 + $0x32] sm:$0xff]
      %v459 = vld [vmem:[%s228 + $0x3a] sm:$0xff]
      %v460 = vld [vmem:[%s228 + $0x4a] sm:$0xff]
      %v461 = vld [vmem:[%s228 + $0x52] sm:$0xff]
      %v462 = vld [vmem:[%s228 + $0x62] sm:$0xff]
      %v463 = vld [vmem:[%s228 + $0x6a] sm:$0xff]
      %v464 = vld [vmem:[%s228 + $0x7a] sm:$0xff]
      %v465 = vld [vmem:[%s228 + $0x82] sm:$0xff]
      %v466 = vld [vmem:[%s228 + $0x92] sm:$0xff]
      %v467 = vld [vmem:[%s228 + $0x9a] sm:$0xff]
      %v468 = vld [vmem:[%s228 + $0xaa] sm:$0xff]
      %v469 = vld [vmem:[%s228 + $0xb2] sm:$0xff]
      %v470 = vld [vmem:[%s228 + $0xc2] sm:$0xff]
      %v471 = vld [vmem:[%s228 + $0xca] sm:$0xff]
      %v472 = vld [vmem:[%s228 + $0xda] sm:$0xff]
      %v473 = vld [vmem:[%s228 + $0xe2] sm:$0xff]
      %v474 = vld [vmem:[%s228 + $0xf2] sm:$0xff]
      %v475 = vld [vmem:[%s228 + $0xfa] sm:$0xff]
      %v476 = vld [vmem:[%s228 + $0x10a] sm:$0xff]
      %v477 = vld [vmem:[%s228 + $0x112] sm:$0xff]
      %v478 = vld [vmem:[%s228 + $0x122] sm:$0xff]
      %v479 = vld [vmem:[%s228 + $0x12a] sm:$0xff]
      %v480 = vld [vmem:[%s228 + $0x13a] sm:$0xff]
      %v481 = vld [vmem:[%s228 + $0x142] sm:$0xff]
      %v482 = vld [vmem:[%s228 + $0x152] sm:$0xff]
      %v483 = vld [vmem:[%s228 + $0x15a] sm:$0xff]
      %v484 = vld [vmem:[%s228 + $0x16a] sm:$0xff]
      %v485 = vld [vmem:[%s228 + $0x172] sm:$0xff]
      %s486 = scalar_lea.vmem [#allocation2], 48
      %v487 = vld [vmem:[%s486] sm:$0xff]
      %v488 = vld [vmem:[%s486 + $0x8] sm:$0xff]
      %v489 = vld [vmem:[%s486 + $0x18] sm:$0xff]
      %v490 = vld [vmem:[%s486 + $0x20] sm:$0xff]
      %v491 = vld [vmem:[%s486 + $0x30] sm:$0xff]
      %v492 = vld [vmem:[%s486 + $0x38] sm:$0xff]
      %v493 = vld [vmem:[%s486 + $0x48] sm:$0xff]
      %v494 = vld [vmem:[%s486 + $0x50] sm:$0xff]
      %v495 = vld [vmem:[%s486 + $0x60] sm:$0xff]
      %v496 = vld [vmem:[%s486 + $0x68] sm:$0xff]
      %v497 = vld [vmem:[%s486 + $0x78] sm:$0xff]
      %v498 = vld [vmem:[%s486 + $0x80] sm:$0xff]
      %v499 = vld [vmem:[%s486 + $0x90] sm:$0xff]
      %v500 = vld [vmem:[%s486 + $0x98] sm:$0xff]
      %v501 = vld [vmem:[%s486 + $0xa8] sm:$0xff]
      %v502 = vld [vmem:[%s486 + $0xb0] sm:$0xff]
      %v503 = vld [vmem:[%s486 + $0xc0] sm:$0xff]
      %v504 = vld [vmem:[%s486 + $0xc8] sm:$0xff]
      %v505 = vld [vmem:[%s486 + $0xd8] sm:$0xff]
      %v506 = vld [vmem:[%s486 + $0xe0] sm:$0xff]
      %v507 = vld [vmem:[%s486 + $0xf0] sm:$0xff]
      %v508 = vld [vmem:[%s486 + $0xf8] sm:$0xff]
      %v509 = vld [vmem:[%s486 + $0x108] sm:$0xff]
      %v510 = vld [vmem:[%s486 + $0x110] sm:$0xff]
      %v511 = vld [vmem:[%s486 + $0x120] sm:$0xff]
      %v512 = vld [vmem:[%s486 + $0x128] sm:$0xff]
      %v513 = vld [vmem:[%s486 + $0x138] sm:$0xff]
      %v514 = vld [vmem:[%s486 + $0x140] sm:$0xff]
      %v515 = vld [vmem:[%s486 + $0x150] sm:$0xff]
      %v516 = vld [vmem:[%s486 + $0x158] sm:$0xff]
      %v517 = vld [vmem:[%s486 + $0x168] sm:$0xff]
      %v518 = vld [vmem:[%s486 + $0x170] sm:$0xff]
      %v519 = vld [vmem:[%s486 + $0x1] sm:$0xff]
      %v520 = vld [vmem:[%s486 + $0x9] sm:$0xff]
      %v521 = vld [vmem:[%s486 + $0x19] sm:$0xff]
      %v522 = vld [vmem:[%s486 + $0x21] sm:$0xff]
      %v523 = vld [vmem:[%s486 + $0x31] sm:$0xff]
      %v524 = vld [vmem:[%s486 + $0x39] sm:$0xff]
      %v525 = vld [vmem:[%s486 + $0x49] sm:$0xff]
      %v526 = vld [vmem:[%s486 + $0x51] sm:$0xff]
      %v527 = vld [vmem:[%s486 + $0x61] sm:$0xff]
      %v528 = vld [vmem:[%s486 + $0x69] sm:$0xff]
      %v529 = vld [vmem:[%s486 + $0x79] sm:$0xff]
      %v530 = vld [vmem:[%s486 + $0x81] sm:$0xff]
      %v531 = vld [vmem:[%s486 + $0x91] sm:$0xff]
      %v532 = vld [vmem:[%s486 + $0x99] sm:$0xff]
      %v533 = vld [vmem:[%s486 + $0xa9] sm:$0xff]
      %v534 = vld [vmem:[%s486 + $0xb1] sm:$0xff]
      %v535 = vld [vmem:[%s486 + $0xc1] sm:$0xff]
      %v536 = vld [vmem:[%s486 + $0xc9] sm:$0xff]
      %v537 = vld [vmem:[%s486 + $0xd9] sm:$0xff]
      %v538 = vld [vmem:[%s486 + $0xe1] sm:$0xff]
      %v539 = vld [vmem:[%s486 + $0xf1] sm:$0xff]
      %v540 = vld [vmem:[%s486 + $0xf9] sm:$0xff]
      %v541 = vld [vmem:[%s486 + $0x109] sm:$0xff]
      %v542 = vld [vmem:[%s486 + $0x111] sm:$0xff]
      %v543 = vld [vmem:[%s486 + $0x121] sm:$0xff]
      %v544 = vld [vmem:[%s486 + $0x129] sm:$0xff]
      %v545 = vld [vmem:[%s486 + $0x139] sm:$0xff]
      %v546 = vld [vmem:[%s486 + $0x141] sm:$0xff]
      %v547 = vld [vmem:[%s486 + $0x151] sm:$0xff]
      %v548 = vld [vmem:[%s486 + $0x159] sm:$0xff]
      %v549 = vld [vmem:[%s486 + $0x169] sm:$0xff]
      %v550 = vld [vmem:[%s486 + $0x171] sm:$0xff]
      %v551 = vld [vmem:[%s486 + $0x2] sm:$0xff]
      %v552 = vld [vmem:[%s486 + $0xa] sm:$0xff]
      %v553 = vld [vmem:[%s486 + $0x1a] sm:$0xff]
      %v554 = vld [vmem:[%s486 + $0x22] sm:$0xff]
      %v555 = vld [vmem:[%s486 + $0x32] sm:$0xff]
      %v556 = vld [vmem:[%s486 + $0x3a] sm:$0xff]
      %v557 = vld [vmem:[%s486 + $0x4a] sm:$0xff]
      %v558 = vld [vmem:[%s486 + $0x52] sm:$0xff]
      %v559 = vld [vmem:[%s486 + $0x62] sm:$0xff]
      %v560 = vld [vmem:[%s486 + $0x6a] sm:$0xff]
      %v561 = vld [vmem:[%s486 + $0x7a] sm:$0xff]
      %v562 = vld [vmem:[%s486 + $0x82] sm:$0xff]
      %v563 = vld [vmem:[%s486 + $0x92] sm:$0xff]
      %v564 = vld [vmem:[%s486 + $0x9a] sm:$0xff]
      %v565 = vld [vmem:[%s486 + $0xaa] sm:$0xff]
      %v566 = vld [vmem:[%s486 + $0xb2] sm:$0xff]
      %v567 = vld [vmem:[%s486 + $0xc2] sm:$0xff]
      %v568 = vld [vmem:[%s486 + $0xca] sm:$0xff]
      %v569 = vld [vmem:[%s486 + $0xda] sm:$0xff]
      %v570 = vld [vmem:[%s486 + $0xe2] sm:$0xff]
      %v571 = vld [vmem:[%s486 + $0xf2] sm:$0xff]
      %v572 = vld [vmem:[%s486 + $0xfa] sm:$0xff]
      %v573 = vld [vmem:[%s486 + $0x10a] sm:$0xff]
      %v574 = vld [vmem:[%s486 + $0x112] sm:$0xff]
      %v575 = vld [vmem:[%s486 + $0x122] sm:$0xff]
      %v576 = vld [vmem:[%s486 + $0x12a] sm:$0xff]
      %v577 = vld [vmem:[%s486 + $0x13a] sm:$0xff]
      %v578 = vld [vmem:[%s486 + $0x142] sm:$0xff]
      %v579 = vld [vmem:[%s486 + $0x152] sm:$0xff]
      %v580 = vld [vmem:[%s486 + $0x15a] sm:$0xff]
      %v581 = vld [vmem:[%s486 + $0x16a] sm:$0xff]
      %v582 = vld [vmem:[%s486 + $0x172] sm:$0xff]
      %615 = vrot.lane.b32.xlu0 %v326, 4
      %v616 = vpop.permute.xlu0 %615
      %617 = vrot.lane.b32.xlu0 %v327, 4
      %v618 = vpop.permute.xlu0 %617
      %619 = vrot.lane.b32.xlu0 %v328, 4
      %v620 = vpop.permute.xlu0 %619
      %621 = vrot.lane.b32.xlu0 %v329, 4
      %v622 = vpop.permute.xlu0 %621
      %623 = vrot.lane.b32.xlu0 %v330, 4
      %v624 = vpop.permute.xlu0 %623
      %625 = vrot.lane.b32.xlu0 %v331, 4
      %v626 = vpop.permute.xlu0 %625
      %627 = vrot.lane.b32.xlu0 %v332, 4
      %v628 = vpop.permute.xlu0 %627
      %629 = vrot.lane.b32.xlu0 %v333, 4
      %v630 = vpop.permute.xlu0 %629
      %631 = vrot.lane.b32.xlu0 %v334, 4
      %v632 = vpop.permute.xlu0 %631
      %633 = vrot.lane.b32.xlu0 %v335, 4
      %v634 = vpop.permute.xlu0 %633
      %635 = vrot.lane.b32.xlu0 %v336, 4
      %v636 = vpop.permute.xlu0 %635
      %637 = vrot.lane.b32.xlu0 %v337, 4
      %v638 = vpop.permute.xlu0 %637
      %639 = vrot.lane.b32.xlu0 %v338, 4
      %v640 = vpop.permute.xlu0 %639
      %641 = vrot.lane.b32.xlu0 %v339, 4
      %v642 = vpop.permute.xlu0 %641
      %643 = vrot.lane.b32.xlu0 %v340, 4
      %v644 = vpop.permute.xlu0 %643
      %645 = vrot.lane.b32.xlu0 %v341, 4
      %v646 = vpop.permute.xlu0 %645
      %647 = vrot.lane.b32.xlu0 %v342, 4
      %v648 = vpop.permute.xlu0 %647
      %649 = vrot.lane.b32.xlu0 %v343, 4
      %v650 = vpop.permute.xlu0 %649
      %651 = vrot.lane.b32.xlu0 %v344, 4
      %v652 = vpop.permute.xlu0 %651
      %653 = vrot.lane.b32.xlu0 %v345, 4
      %v654 = vpop.permute.xlu0 %653
      %655 = vrot.lane.b32.xlu0 %v346, 4
      %v656 = vpop.permute.xlu0 %655
      %657 = vrot.lane.b32.xlu0 %v347, 4
      %v658 = vpop.permute.xlu0 %657
      %659 = vrot.lane.b32.xlu0 %v348, 4
      %v660 = vpop.permute.xlu0 %659
      %661 = vrot.lane.b32.xlu0 %v349, 4
      %v662 = vpop.permute.xlu0 %661
      %663 = vrot.lane.b32.xlu0 %v350, 4
      %v664 = vpop.permute.xlu0 %663
      %665 = vrot.lane.b32.xlu0 %v351, 4
      %v666 = vpop.permute.xlu0 %665
      %667 = vrot.lane.b32.xlu0 %v352, 4
      %v668 = vpop.permute.xlu0 %667
      %669 = vrot.lane.b32.xlu0 %v353, 4
      %v670 = vpop.permute.xlu0 %669
      %671 = vrot.lane.b32.xlu0 %v354, 4
      %v672 = vpop.permute.xlu0 %671
      %673 = vrot.lane.b32.xlu0 %v355, 4
      %v674 = vpop.permute.xlu0 %673
      %675 = vrot.lane.b32.xlu0 %v356, 4
      %v676 = vpop.permute.xlu0 %675
      %677 = vrot.lane.b32.xlu0 %v357, 4
      %v678 = vpop.permute.xlu0 %677
      %743 = vrot.lane.b32.xlu0 %v358, 8
      %v744 = vpop.permute.xlu0 %743
      %745 = vrot.lane.b32.xlu0 %v359, 8
      %v746 = vpop.permute.xlu0 %745
      %747 = vrot.lane.b32.xlu0 %v360, 8
      %v748 = vpop.permute.xlu0 %747
      %749 = vrot.lane.b32.xlu0 %v361, 8
      %v750 = vpop.permute.xlu0 %749
      %751 = vrot.lane.b32.xlu0 %v362, 8
      %v752 = vpop.permute.xlu0 %751
      %753 = vrot.lane.b32.xlu0 %v363, 8
      %v754 = vpop.permute.xlu0 %753
      %755 = vrot.lane.b32.xlu0 %v364, 8
      %v756 = vpop.permute.xlu0 %755
      %757 = vrot.lane.b32.xlu0 %v365, 8
      %v758 = vpop.permute.xlu0 %757
      %759 = vrot.lane.b32.xlu0 %v366, 8
      %v760 = vpop.permute.xlu0 %759
      %761 = vrot.lane.b32.xlu0 %v367, 8
      %v762 = vpop.permute.xlu0 %761
      %763 = vrot.lane.b32.xlu0 %v368, 8
      %v764 = vpop.permute.xlu0 %763
      %765 = vrot.lane.b32.xlu0 %v369, 8
      %v766 = vpop.permute.xlu0 %765
      %767 = vrot.lane.b32.xlu0 %v370, 8
      %v768 = vpop.permute.xlu0 %767
      %769 = vrot.lane.b32.xlu0 %v371, 8
      %v770 = vpop.permute.xlu0 %769
      %771 = vrot.lane.b32.xlu0 %v372, 8
      %v772 = vpop.permute.xlu0 %771
      %773 = vrot.lane.b32.xlu0 %v373, 8
      %v774 = vpop.permute.xlu0 %773
      %775 = vrot.lane.b32.xlu0 %v374, 8
      %v776 = vpop.permute.xlu0 %775
      %777 = vrot.lane.b32.xlu0 %v375, 8
      %v778 = vpop.permute.xlu0 %777
      %779 = vrot.lane.b32.xlu0 %v376, 8
      %v780 = vpop.permute.xlu0 %779
      %781 = vrot.lane.b32.xlu0 %v377, 8
      %v782 = vpop.permute.xlu0 %781
      %783 = vrot.lane.b32.xlu0 %v378, 8
      %v784 = vpop.permute.xlu0 %783
      %785 = vrot.lane.b32.xlu0 %v379, 8
      %v786 = vpop.permute.xlu0 %785
      %787 = vrot.lane.b32.xlu0 %v380, 8
      %v788 = vpop.permute.xlu0 %787
      %789 = vrot.lane.b32.xlu0 %v381, 8
      %v790 = vpop.permute.xlu0 %789
      %791 = vrot.lane.b32.xlu0 %v382, 8
      %v792 = vpop.permute.xlu0 %791
      %793 = vrot.lane.b32.xlu0 %v383, 8
      %v794 = vpop.permute.xlu0 %793
      %795 = vrot.lane.b32.xlu0 %v384, 8
      %v796 = vpop.permute.xlu0 %795
      %797 = vrot.lane.b32.xlu0 %v385, 8
      %v798 = vpop.permute.xlu0 %797
      %799 = vrot.lane.b32.xlu0 %v386, 8
      %v800 = vpop.permute.xlu0 %799
      %801 = vrot.lane.b32.xlu0 %v387, 8
      %v802 = vpop.permute.xlu0 %801
      %803 = vrot.lane.b32.xlu0 %v388, 8
      %v804 = vpop.permute.xlu0 %803
      %805 = vrot.lane.b32.xlu0 %v389, 8
      %v806 = vpop.permute.xlu0 %805
      %871 = vrot.lane.b32.xlu0 %v390, 12
      %v872 = vpop.permute.xlu0 %871
      %873 = vrot.lane.b32.xlu0 %v391, 12
      %v874 = vpop.permute.xlu0 %873
      %875 = vrot.lane.b32.xlu0 %v392, 12
      %v876 = vpop.permute.xlu0 %875
      %877 = vrot.lane.b32.xlu0 %v393, 12
      %v878 = vpop.permute.xlu0 %877
      %879 = vrot.lane.b32.xlu0 %v394, 12
      %v880 = vpop.permute.xlu0 %879
      %881 = vrot.lane.b32.xlu0 %v395, 12
      %v882 = vpop.permute.xlu0 %881
      %883 = vrot.lane.b32.xlu0 %v396, 12
      %v884 = vpop.permute.xlu0 %883
      %885 = vrot.lane.b32.xlu0 %v397, 12
      %v886 = vpop.permute.xlu0 %885
      %887 = vrot.lane.b32.xlu0 %v398, 12
      %v888 = vpop.permute.xlu0 %887
      %889 = vrot.lane.b32.xlu0 %v399, 12
      %v890 = vpop.permute.xlu0 %889
      %891 = vrot.lane.b32.xlu0 %v400, 12
      %v892 = vpop.permute.xlu0 %891
      %893 = vrot.lane.b32.xlu0 %v401, 12
      %v894 = vpop.permute.xlu0 %893
      %895 = vrot.lane.b32.xlu0 %v402, 12
      %v896 = vpop.permute.xlu0 %895
      %897 = vrot.lane.b32.xlu0 %v403, 12
      %v898 = vpop.permute.xlu0 %897
      %899 = vrot.lane.b32.xlu0 %v404, 12
      %v900 = vpop.permute.xlu0 %899
      %901 = vrot.lane.b32.xlu0 %v405, 12
      %v902 = vpop.permute.xlu0 %901
      %903 = vrot.lane.b32.xlu0 %v406, 12
      %v904 = vpop.permute.xlu0 %903
      %905 = vrot.lane.b32.xlu0 %v407, 12
      %v906 = vpop.permute.xlu0 %905
      %907 = vrot.lane.b32.xlu0 %v408, 12
      %v908 = vpop.permute.xlu0 %907
      %909 = vrot.lane.b32.xlu0 %v409, 12
      %v910 = vpop.permute.xlu0 %909
      %911 = vrot.lane.b32.xlu0 %v410, 12
      %v912 = vpop.permute.xlu0 %911
      %913 = vrot.lane.b32.xlu0 %v411, 12
      %v914 = vpop.permute.xlu0 %913
      %915 = vrot.lane.b32.xlu0 %v412, 12
      %v916 = vpop.permute.xlu0 %915
      %917 = vrot.lane.b32.xlu0 %v413, 12
      %v918 = vpop.permute.xlu0 %917
      %919 = vrot.lane.b32.xlu0 %v414, 12
      %v920 = vpop.permute.xlu0 %919
      %921 = vrot.lane.b32.xlu0 %v415, 12
      %v922 = vpop.permute.xlu0 %921
      %923 = vrot.lane.b32.xlu0 %v416, 12
      %v924 = vpop.permute.xlu0 %923
      %925 = vrot.lane.b32.xlu0 %v417, 12
      %v926 = vpop.permute.xlu0 %925
      %927 = vrot.lane.b32.xlu0 %v418, 12
      %v928 = vpop.permute.xlu0 %927
      %929 = vrot.lane.b32.xlu0 %v419, 12
      %v930 = vpop.permute.xlu0 %929
      %931 = vrot.lane.b32.xlu0 %v420, 12
      %v932 = vpop.permute.xlu0 %931
      %933 = vrot.lane.b32.xlu0 %v421, 12
      %v934 = vpop.permute.xlu0 %933
      %999 = vrot.lane.b32.xlu0 %v422, 16
      %v1000 = vpop.permute.xlu0 %999
      %1001 = vrot.lane.b32.xlu0 %v423, 16
      %v1002 = vpop.permute.xlu0 %1001
      %1003 = vrot.lane.b32.xlu0 %v424, 16
      %v1004 = vpop.permute.xlu0 %1003
      %1005 = vrot.lane.b32.xlu0 %v425, 16
      %v1006 = vpop.permute.xlu0 %1005
      %1007 = vrot.lane.b32.xlu0 %v426, 16
      %v1008 = vpop.permute.xlu0 %1007
      %1009 = vrot.lane.b32.xlu0 %v427, 16
      %v1010 = vpop.permute.xlu0 %1009
      %1011 = vrot.lane.b32.xlu0 %v428, 16
      %v1012 = vpop.permute.xlu0 %1011
      %1013 = vrot.lane.b32.xlu0 %v429, 16
      %v1014 = vpop.permute.xlu0 %1013
      %1015 = vrot.lane.b32.xlu0 %v430, 16
      %v1016 = vpop.permute.xlu0 %1015
      %1017 = vrot.lane.b32.xlu0 %v431, 16
      %v1018 = vpop.permute.xlu0 %1017
      %1019 = vrot.lane.b32.xlu0 %v432, 16
      %v1020 = vpop.permute.xlu0 %1019
      %1021 = vrot.lane.b32.xlu0 %v433, 16
      %v1022 = vpop.permute.xlu0 %1021
      %1023 = vrot.lane.b32.xlu0 %v434, 16
      %v1024 = vpop.permute.xlu0 %1023
      %1025 = vrot.lane.b32.xlu0 %v435, 16
      %v1026 = vpop.permute.xlu0 %1025
      %1027 = vrot.lane.b32.xlu0 %v436, 16
      %v1028 = vpop.permute.xlu0 %1027
      %1029 = vrot.lane.b32.xlu0 %v437, 16
      %v1030 = vpop.permute.xlu0 %1029
      %1031 = vrot.lane.b32.xlu0 %v438, 16
      %v1032 = vpop.permute.xlu0 %1031
      %1033 = vrot.lane.b32.xlu0 %v439, 16
      %v1034 = vpop.permute.xlu0 %1033
      %1035 = vrot.lane.b32.xlu0 %v440, 16
      %v1036 = vpop.permute.xlu0 %1035
      %1037 = vrot.lane.b32.xlu0 %v441, 16
      %v1038 = vpop.permute.xlu0 %1037
      %1039 = vrot.lane.b32.xlu0 %v442, 16
      %v1040 = vpop.permute.xlu0 %1039
      %1041 = vrot.lane.b32.xlu0 %v443, 16
      %v1042 = vpop.permute.xlu0 %1041
      %1043 = vrot.lane.b32.xlu0 %v444, 16
      %v1044 = vpop.permute.xlu0 %1043
      %1045 = vrot.lane.b32.xlu0 %v445, 16
      %v1046 = vpop.permute.xlu0 %1045
      %1047 = vrot.lane.b32.xlu0 %v446, 16
      %v1048 = vpop.permute.xlu0 %1047
      %1049 = vrot.lane.b32.xlu0 %v447, 16
      %v1050 = vpop.permute.xlu0 %1049
      %1051 = vrot.lane.b32.xlu0 %v448, 16
      %v1052 = vpop.permute.xlu0 %1051
      %1053 = vrot.lane.b32.xlu0 %v449, 16
      %v1054 = vpop.permute.xlu0 %1053
      %1055 = vrot.lane.b32.xlu0 %v450, 16
      %v1056 = vpop.permute.xlu0 %1055
      %1057 = vrot.lane.b32.xlu0 %v451, 16
      %v1058 = vpop.permute.xlu0 %1057
      %1059 = vrot.lane.b32.xlu0 %v452, 16
      %v1060 = vpop.permute.xlu0 %1059
      %1061 = vrot.lane.b32.xlu0 %v453, 16
      %v1062 = vpop.permute.xlu0 %1061
      %1127 = vrot.lane.b32.xlu0 %v454, 20
      %v1128 = vpop.permute.xlu0 %1127
      %1129 = vrot.lane.b32.xlu0 %v455, 20
      %v1130 = vpop.permute.xlu0 %1129
      %1131 = vrot.lane.b32.xlu0 %v456, 20
      %v1132 = vpop.permute.xlu0 %1131
      %1133 = vrot.lane.b32.xlu0 %v457, 20
      %v1134 = vpop.permute.xlu0 %1133
      %1135 = vrot.lane.b32.xlu0 %v458, 20
      %v1136 = vpop.permute.xlu0 %1135
      %1137 = vrot.lane.b32.xlu0 %v459, 20
      %v1138 = vpop.permute.xlu0 %1137
      %1139 = vrot.lane.b32.xlu0 %v460, 20
      %v1140 = vpop.permute.xlu0 %1139
      %1141 = vrot.lane.b32.xlu0 %v461, 20
      %v1142 = vpop.permute.xlu0 %1141
      %1143 = vrot.lane.b32.xlu0 %v462, 20
      %v1144 = vpop.permute.xlu0 %1143
      %1145 = vrot.lane.b32.xlu0 %v463, 20
      %v1146 = vpop.permute.xlu0 %1145
      %1147 = vrot.lane.b32.xlu0 %v464, 20
      %v1148 = vpop.permute.xlu0 %1147
      %1149 = vrot.lane.b32.xlu0 %v465, 20
      %v1150 = vpop.permute.xlu0 %1149
      %1151 = vrot.lane.b32.xlu0 %v466, 20
      %v1152 = vpop.permute.xlu0 %1151
      %1153 = vrot.lane.b32.xlu0 %v467, 20
      %v1154 = vpop.permute.xlu0 %1153
      %1155 = vrot.lane.b32.xlu0 %v468, 20
      %v1156 = vpop.permute.xlu0 %1155
      %1157 = vrot.lane.b32.xlu0 %v469, 20
      %v1158 = vpop.permute.xlu0 %1157
      %1159 = vrot.lane.b32.xlu0 %v470, 20
      %v1160 = vpop.permute.xlu0 %1159
      %1161 = vrot.lane.b32.xlu0 %v471, 20
      %v1162 = vpop.permute.xlu0 %1161
      %1163 = vrot.lane.b32.xlu0 %v472, 20
      %v1164 = vpop.permute.xlu0 %1163
      %1165 = vrot.lane.b32.xlu0 %v473, 20
      %v1166 = vpop.permute.xlu0 %1165
      %1167 = vrot.lane.b32.xlu0 %v474, 20
      %v1168 = vpop.permute.xlu0 %1167
      %1169 = vrot.lane.b32.xlu0 %v475, 20
      %v1170 = vpop.permute.xlu0 %1169
      %1171 = vrot.lane.b32.xlu0 %v476, 20
      %v1172 = vpop.permute.xlu0 %1171
      %1173 = vrot.lane.b32.xlu0 %v477, 20
      %v1174 = vpop.permute.xlu0 %1173
      %1175 = vrot.lane.b32.xlu0 %v478, 20
      %v1176 = vpop.permute.xlu0 %1175
      %1177 = vrot.lane.b32.xlu0 %v479, 20
      %v1178 = vpop.permute.xlu0 %1177
      %1179 = vrot.lane.b32.xlu0 %v480, 20
      %v1180 = vpop.permute.xlu0 %1179
      %1181 = vrot.lane.b32.xlu0 %v481, 20
      %v1182 = vpop.permute.xlu0 %1181
      %1183 = vrot.lane.b32.xlu0 %v482, 20
      %v1184 = vpop.permute.xlu0 %1183
      %1185 = vrot.lane.b32.xlu0 %v483, 20
      %v1186 = vpop.permute.xlu0 %1185
      %1187 = vrot.lane.b32.xlu0 %v484, 20
      %v1188 = vpop.permute.xlu0 %1187
      %1189 = vrot.lane.b32.xlu0 %v485, 20
      %v1190 = vpop.permute.xlu0 %1189
      %1255 = vrot.lane.b32.xlu0 %v487, 24
      %v1256 = vpop.permute.xlu0 %1255
      %1257 = vrot.lane.b32.xlu0 %v488, 24
      %v1258 = vpop.permute.xlu0 %1257
      %1259 = vrot.lane.b32.xlu0 %v489, 24
      %v1260 = vpop.permute.xlu0 %1259
      %1261 = vrot.lane.b32.xlu0 %v490, 24
      %v1262 = vpop.permute.xlu0 %1261
      %1263 = vrot.lane.b32.xlu0 %v491, 24
      %v1264 = vpop.permute.xlu0 %1263
      %1265 = vrot.lane.b32.xlu0 %v492, 24
      %v1266 = vpop.permute.xlu0 %1265
      %1267 = vrot.lane.b32.xlu0 %v493, 24
      %v1268 = vpop.permute.xlu0 %1267
      %1269 = vrot.lane.b32.xlu0 %v494, 24
      %v1270 = vpop.permute.xlu0 %1269
      %1271 = vrot.lane.b32.xlu0 %v495, 24
      %v1272 = vpop.permute.xlu0 %1271
      %1273 = vrot.lane.b32.xlu0 %v496, 24
      %v1274 = vpop.permute.xlu0 %1273
      %1275 = vrot.lane.b32.xlu0 %v497, 24
      %v1276 = vpop.permute.xlu0 %1275
      %1277 = vrot.lane.b32.xlu0 %v498, 24
      %v1278 = vpop.permute.xlu0 %1277
      %1279 = vrot.lane.b32.xlu0 %v499, 24
      %v1280 = vpop.permute.xlu0 %1279
      %1281 = vrot.lane.b32.xlu0 %v500, 24
      %v1282 = vpop.permute.xlu0 %1281
      %1283 = vrot.lane.b32.xlu0 %v501, 24
      %v1284 = vpop.permute.xlu0 %1283
      %1285 = vrot.lane.b32.xlu0 %v502, 24
      %v1286 = vpop.permute.xlu0 %1285
      %1287 = vrot.lane.b32.xlu0 %v503, 24
      %v1288 = vpop.permute.xlu0 %1287
      %1289 = vrot.lane.b32.xlu0 %v504, 24
      %v1290 = vpop.permute.xlu0 %1289
      %1291 = vrot.lane.b32.xlu0 %v505, 24
      %v1292 = vpop.permute.xlu0 %1291
      %1293 = vrot.lane.b32.xlu0 %v506, 24
      %v1294 = vpop.permute.xlu0 %1293
      %1295 = vrot.lane.b32.xlu0 %v507, 24
      %v1296 = vpop.permute.xlu0 %1295
      %1297 = vrot.lane.b32.xlu0 %v508, 24
      %v1298 = vpop.permute.xlu0 %1297
      %1299 = vrot.lane.b32.xlu0 %v509, 24
      %v1300 = vpop.permute.xlu0 %1299
      %1301 = vrot.lane.b32.xlu0 %v510, 24
      %v1302 = vpop.permute.xlu0 %1301
      %1303 = vrot.lane.b32.xlu0 %v511, 24
      %v1304 = vpop.permute.xlu0 %1303
      %1305 = vrot.lane.b32.xlu0 %v512, 24
      %v1306 = vpop.permute.xlu0 %1305
      %1307 = vrot.lane.b32.xlu0 %v513, 24
      %v1308 = vpop.permute.xlu0 %1307
      %1309 = vrot.lane.b32.xlu0 %v514, 24
      %v1310 = vpop.permute.xlu0 %1309
      %1311 = vrot.lane.b32.xlu0 %v515, 24
      %v1312 = vpop.permute.xlu0 %1311
      %1313 = vrot.lane.b32.xlu0 %v516, 24
      %v1314 = vpop.permute.xlu0 %1313
      %1315 = vrot.lane.b32.xlu0 %v517, 24
      %v1316 = vpop.permute.xlu0 %1315
      %1317 = vrot.lane.b32.xlu0 %v518, 24
      %v1318 = vpop.permute.xlu0 %1317
      %1383 = vrot.lane.b32.xlu0 %v519, 28
      %v1384 = vpop.permute.xlu0 %1383
      %1385 = vrot.lane.b32.xlu0 %v520, 28
      %v1386 = vpop.permute.xlu0 %1385
      %1387 = vrot.lane.b32.xlu0 %v521, 28
      %v1388 = vpop.permute.xlu0 %1387
      %1389 = vrot.lane.b32.xlu0 %v522, 28
      %v1390 = vpop.permute.xlu0 %1389
      %1391 = vrot.lane.b32.xlu0 %v523, 28
      %v1392 = vpop.permute.xlu0 %1391
      %1393 = vrot.lane.b32.xlu0 %v524, 28
      %v1394 = vpop.permute.xlu0 %1393
      %1395 = vrot.lane.b32.xlu0 %v525, 28
      %v1396 = vpop.permute.xlu0 %1395
      %1397 = vrot.lane.b32.xlu0 %v526, 28
      %v1398 = vpop.permute.xlu0 %1397
      %1399 = vrot.lane.b32.xlu0 %v527, 28
      %v1400 = vpop.permute.xlu0 %1399
      %1401 = vrot.lane.b32.xlu0 %v528, 28
      %v1402 = vpop.permute.xlu0 %1401
      %1403 = vrot.lane.b32.xlu0 %v529, 28
      %v1404 = vpop.permute.xlu0 %1403
      %1405 = vrot.lane.b32.xlu0 %v530, 28
      %v1406 = vpop.permute.xlu0 %1405
      %1407 = vrot.lane.b32.xlu0 %v531, 28
      %v1408 = vpop.permute.xlu0 %1407
      %1409 = vrot.lane.b32.xlu0 %v532, 28
      %v1410 = vpop.permute.xlu0 %1409
      %1411 = vrot.lane.b32.xlu0 %v533, 28
      %v1412 = vpop.permute.xlu0 %1411
      %1413 = vrot.lane.b32.xlu0 %v534, 28
      %v1414 = vpop.permute.xlu0 %1413
      %1415 = vrot.lane.b32.xlu0 %v535, 28
      %v1416 = vpop.permute.xlu0 %1415
      %1417 = vrot.lane.b32.xlu0 %v536, 28
      %v1418 = vpop.permute.xlu0 %1417
      %1419 = vrot.lane.b32.xlu0 %v537, 28
      %v1420 = vpop.permute.xlu0 %1419
      %1421 = vrot.lane.b32.xlu0 %v538, 28
      %v1422 = vpop.permute.xlu0 %1421
      %1423 = vrot.lane.b32.xlu0 %v539, 28
      %v1424 = vpop.permute.xlu0 %1423
      %1425 = vrot.lane.b32.xlu0 %v540, 28
      %v1426 = vpop.permute.xlu0 %1425
      %1427 = vrot.lane.b32.xlu0 %v541, 28
      %v1428 = vpop.permute.xlu0 %1427
      %1429 = vrot.lane.b32.xlu0 %v542, 28
      %v1430 = vpop.permute.xlu0 %1429
      %1431 = vrot.lane.b32.xlu0 %v543, 28
      %v1432 = vpop.permute.xlu0 %1431
      %1433 = vrot.lane.b32.xlu0 %v544, 28
      %v1434 = vpop.permute.xlu0 %1433
      %1435 = vrot.lane.b32.xlu0 %v545, 28
      %v1436 = vpop.permute.xlu0 %1435
      %1437 = vrot.lane.b32.xlu0 %v546, 28
      %v1438 = vpop.permute.xlu0 %1437
      %1439 = vrot.lane.b32.xlu0 %v547, 28
      %v1440 = vpop.permute.xlu0 %1439
      %1441 = vrot.lane.b32.xlu0 %v548, 28
      %v1442 = vpop.permute.xlu0 %1441
      %1443 = vrot.lane.b32.xlu0 %v549, 28
      %v1444 = vpop.permute.xlu0 %1443
      %1445 = vrot.lane.b32.xlu0 %v550, 28
      %v1446 = vpop.permute.xlu0 %1445
      %1511 = vrot.lane.b32.xlu0 %v551, 32
      %v1512 = vpop.permute.xlu0 %1511
      %1513 = vrot.lane.b32.xlu0 %v552, 32
      %v1514 = vpop.permute.xlu0 %1513
      %1515 = vrot.lane.b32.xlu0 %v553, 32
      %v1516 = vpop.permute.xlu0 %1515
      %1517 = vrot.lane.b32.xlu0 %v554, 32
      %v1518 = vpop.permute.xlu0 %1517
      %1519 = vrot.lane.b32.xlu0 %v555, 32
      %v1520 = vpop.permute.xlu0 %1519
      %1521 = vrot.lane.b32.xlu0 %v556, 32
      %v1522 = vpop.permute.xlu0 %1521
      %1523 = vrot.lane.b32.xlu0 %v557, 32
      %v1524 = vpop.permute.xlu0 %1523
      %1525 = vrot.lane.b32.xlu0 %v558, 32
      %v1526 = vpop.permute.xlu0 %1525
      %1527 = vrot.lane.b32.xlu0 %v559, 32
      %v1528 = vpop.permute.xlu0 %1527
      %1529 = vrot.lane.b32.xlu0 %v560, 32
      %v1530 = vpop.permute.xlu0 %1529
      %1531 = vrot.lane.b32.xlu0 %v561, 32
      %v1532 = vpop.permute.xlu0 %1531
      %1533 = vrot.lane.b32.xlu0 %v562, 32
      %v1534 = vpop.permute.xlu0 %1533
      %1535 = vrot.lane.b32.xlu0 %v563, 32
      %v1536 = vpop.permute.xlu0 %1535
      %1537 = vrot.lane.b32.xlu0 %v564, 32
      %v1538 = vpop.permute.xlu0 %1537
      %1539 = vrot.lane.b32.xlu0 %v565, 32
      %v1540 = vpop.permute.xlu0 %1539
      %1541 = vrot.lane.b32.xlu0 %v566, 32
      %v1542 = vpop.permute.xlu0 %1541
      %1543 = vrot.lane.b32.xlu0 %v567, 32
      %v1544 = vpop.permute.xlu0 %1543
      %1545 = vrot.lane.b32.xlu0 %v568, 32
      %v1546 = vpop.permute.xlu0 %1545
      %1547 = vrot.lane.b32.xlu0 %v569, 32
      %v1548 = vpop.permute.xlu0 %1547
      %1549 = vrot.lane.b32.xlu0 %v570, 32
      %v1550 = vpop.permute.xlu0 %1549
      %1551 = vrot.lane.b32.xlu0 %v571, 32
      %v1552 = vpop.permute.xlu0 %1551
      %1553 = vrot.lane.b32.xlu0 %v572, 32
      %v1554 = vpop.permute.xlu0 %1553
      %1555 = vrot.lane.b32.xlu0 %v573, 32
      %v1556 = vpop.permute.xlu0 %1555
      %1557 = vrot.lane.b32.xlu0 %v574, 32
      %v1558 = vpop.permute.xlu0 %1557
      %1559 = vrot.lane.b32.xlu0 %v575, 32
      %v1560 = vpop.permute.xlu0 %1559
      %1561 = vrot.lane.b32.xlu0 %v576, 32
      %v1562 = vpop.permute.xlu0 %1561
      %1563 = vrot.lane.b32.xlu0 %v577, 32
      %v1564 = vpop.permute.xlu0 %1563
      %1565 = vrot.lane.b32.xlu0 %v578, 32
      %v1566 = vpop.permute.xlu0 %1565
      %1567 = vrot.lane.b32.xlu0 %v579, 32
      %v1568 = vpop.permute.xlu0 %1567
      %1569 = vrot.lane.b32.xlu0 %v580, 32
      %v1570 = vpop.permute.xlu0 %1569
      %1571 = vrot.lane.b32.xlu0 %v581, 32
      %v1572 = vpop.permute.xlu0 %1571
      %1573 = vrot.lane.b32.xlu0 %v582, 32
      %v1574 = vpop.permute.xlu0 %1573
      %v1607 = vsel %vm219, %v294, %v616
      %v1608 = vsel %vm219, %v295, %v618
      %v1609 = vsel %vm219, %v296, %v620
      %v1610 = vsel %vm219, %v297, %v622
      %v1611 = vsel %vm219, %v298, %v624
      %v1612 = vsel %vm219, %v299, %v626
      %v1613 = vsel %vm219, %v300, %v628
      %v1614 = vsel %vm219, %v301, %v630
      %v1615 = vsel %vm219, %v302, %v632
      %v1616 = vsel %vm219, %v303, %v634
      %v1617 = vsel %vm219, %v304, %v636
      %v1618 = vsel %vm219, %v305, %v638
      %v1619 = vsel %vm219, %v306, %v640
      %v1620 = vsel %vm219, %v307, %v642
      %v1621 = vsel %vm219, %v308, %v644
      %v1622 = vsel %vm219, %v309, %v646
      %v1623 = vsel %vm219, %v310, %v648
      %v1624 = vsel %vm219, %v311, %v650
      %v1625 = vsel %vm219, %v312, %v652
      %v1626 = vsel %vm219, %v313, %v654
      %v1627 = vsel %vm219, %v314, %v656
      %v1628 = vsel %vm219, %v315, %v658
      %v1629 = vsel %vm219, %v316, %v660
      %v1630 = vsel %vm219, %v317, %v662
      %v1631 = vsel %vm219, %v318, %v664
      %v1632 = vsel %vm219, %v319, %v666
      %v1633 = vsel %vm219, %v320, %v668
      %v1634 = vsel %vm219, %v321, %v670
      %v1635 = vsel %vm219, %v322, %v672
      %v1636 = vsel %vm219, %v323, %v674
      %v1637 = vsel %vm219, %v324, %v676
      %v1638 = vsel %vm219, %v325, %v678
      %vm1639 = vcmask 64512
      %v1640 = vsel %vm1639, %v1607, %v744
      %v1641 = vsel %vm1639, %v1608, %v746
      %v1642 = vsel %vm1639, %v1609, %v748
      %v1643 = vsel %vm1639, %v1610, %v750
      %v1644 = vsel %vm1639, %v1611, %v752
      %v1645 = vsel %vm1639, %v1612, %v754
      %v1646 = vsel %vm1639, %v1613, %v756
      %v1647 = vsel %vm1639, %v1614, %v758
      %v1648 = vsel %vm1639, %v1615, %v760
      %v1649 = vsel %vm1639, %v1616, %v762
      %v1650 = vsel %vm1639, %v1617, %v764
      %v1651 = vsel %vm1639, %v1618, %v766
      %v1652 = vsel %vm1639, %v1619, %v768
      %v1653 = vsel %vm1639, %v1620, %v770
      %v1654 = vsel %vm1639, %v1621, %v772
      %v1655 = vsel %vm1639, %v1622, %v774
      %v1656 = vsel %vm1639, %v1623, %v776
      %v1657 = vsel %vm1639, %v1624, %v778
      %v1658 = vsel %vm1639, %v1625, %v780
      %v1659 = vsel %vm1639, %v1626, %v782
      %v1660 = vsel %vm1639, %v1627, %v784
      %v1661 = vsel %vm1639, %v1628, %v786
      %v1662 = vsel %vm1639, %v1629, %v788
      %v1663 = vsel %vm1639, %v1630, %v790
      %v1664 = vsel %vm1639, %v1631, %v792
      %v1665 = vsel %vm1639, %v1632, %v794
      %v1666 = vsel %vm1639, %v1633, %v796
      %v1667 = vsel %vm1639, %v1634, %v798
      %v1668 = vsel %vm1639, %v1635, %v800
      %v1669 = vsel %vm1639, %v1636, %v802
      %v1670 = vsel %vm1639, %v1637, %v804
      %v1671 = vsel %vm1639, %v1638, %v806
      %vm1672 = vcmask 97280
      %v1673 = vsel %vm1672, %v1640, %v872
      %v1674 = vsel %vm1672, %v1641, %v874
      %v1675 = vsel %vm1672, %v1642, %v876
      %v1676 = vsel %vm1672, %v1643, %v878
      %v1677 = vsel %vm1672, %v1644, %v880
      %v1678 = vsel %vm1672, %v1645, %v882
      %v1679 = vsel %vm1672, %v1646, %v884
      %v1680 = vsel %vm1672, %v1647, %v886
      %v1681 = vsel %vm1672, %v1648, %v888
      %v1682 = vsel %vm1672, %v1649, %v890
      %v1683 = vsel %vm1672, %v1650, %v892
      %v1684 = vsel %vm1672, %v1651, %v894
      %v1685 = vsel %vm1672, %v1652, %v896
      %v1686 = vsel %vm1672, %v1653, %v898
      %v1687 = vsel %vm1672, %v1654, %v900
      %v1688 = vsel %vm1672, %v1655, %v902
      %v1689 = vsel %vm1672, %v1656, %v904
      %v1690 = vsel %vm1672, %v1657, %v906
      %v1691 = vsel %vm1672, %v1658, %v908
      %v1692 = vsel %vm1672, %v1659, %v910
      %v1693 = vsel %vm1672, %v1660, %v912
      %v1694 = vsel %vm1672, %v1661, %v914
      %v1695 = vsel %vm1672, %v1662, %v916
      %v1696 = vsel %vm1672, %v1663, %v918
      %v1697 = vsel %vm1672, %v1664, %v920
      %v1698 = vsel %vm1672, %v1665, %v922
      %v1699 = vsel %vm1672, %v1666, %v924
      %v1700 = vsel %vm1672, %v1667, %v926
      %v1701 = vsel %vm1672, %v1668, %v928
      %v1702 = vsel %vm1672, %v1669, %v930
      %v1703 = vsel %vm1672, %v1670, %v932
      %v1704 = vsel %vm1672, %v1671, %v934
      %vm1705 = vcmask 130048
      %v1706 = vsel %vm1705, %v1673, %v1000
      %v1707 = vsel %vm1705, %v1674, %v1002
      %v1708 = vsel %vm1705, %v1675, %v1004
      %v1709 = vsel %vm1705, %v1676, %v1006
      %v1710 = vsel %vm1705, %v1677, %v1008
      %v1711 = vsel %vm1705, %v1678, %v1010
      %v1712 = vsel %vm1705, %v1679, %v1012
      %v1713 = vsel %vm1705, %v1680, %v1014
      %v1714 = vsel %vm1705, %v1681, %v1016
      %v1715 = vsel %vm1705, %v1682, %v1018
      %v1716 = vsel %vm1705, %v1683, %v1020
      %v1717 = vsel %vm1705, %v1684, %v1022
      %v1718 = vsel %vm1705, %v1685, %v1024
      %v1719 = vsel %vm1705, %v1686, %v1026
      %v1720 = vsel %vm1705, %v1687, %v1028
      %v1721 = vsel %vm1705, %v1688, %v1030
      %v1722 = vsel %vm1705, %v1689, %v1032
      %v1723 = vsel %vm1705, %v1690, %v1034
      %v1724 = vsel %vm1705, %v1691, %v1036
      %v1725 = vsel %vm1705, %v1692, %v1038
      %v1726 = vsel %vm1705, %v1693, %v1040
      %v1727 = vsel %vm1705, %v1694, %v1042
      %v1728 = vsel %vm1705, %v1695, %v1044
      %v1729 = vsel %vm1705, %v1696, %v1046
      %v1730 = vsel %vm1705, %v1697, %v1048
      %v1731 = vsel %vm1705, %v1698, %v1050
      %v1732 = vsel %vm1705, %v1699, %v1052
      %v1733 = vsel %vm1705, %v1700, %v1054
      %v1734 = vsel %vm1705, %v1701, %v1056
      %v1735 = vsel %vm1705, %v1702, %v1058
      %v1736 = vsel %vm1705, %v1703, %v1060
      %v1737 = vsel %vm1705, %v1704, %v1062
      %vm1738 = vcmask 162816
      %v1739 = vsel %vm1738, %v1706, %v1128
      %v1740 = vsel %vm1738, %v1707, %v1130
      %v1741 = vsel %vm1738, %v1708, %v1132
      %v1742 = vsel %vm1738, %v1709, %v1134
      %v1743 = vsel %vm1738, %v1710, %v1136
      %v1744 = vsel %vm1738, %v1711, %v1138
      %v1745 = vsel %vm1738, %v1712, %v1140
      %v1746 = vsel %vm1738, %v1713, %v1142
      %v1747 = vsel %vm1738, %v1714, %v1144
      %v1748 = vsel %vm1738, %v1715, %v1146
      %v1749 = vsel %vm1738, %v1716, %v1148
      %v1750 = vsel %vm1738, %v1717, %v1150
      %v1751 = vsel %vm1738, %v1718, %v1152
      %v1752 = vsel %vm1738, %v1719, %v1154
      %v1753 = vsel %vm1738, %v1720, %v1156
      %v1754 = vsel %vm1738, %v1721, %v1158
      %v1755 = vsel %vm1738, %v1722, %v1160
      %v1756 = vsel %vm1738, %v1723, %v1162
      %v1757 = vsel %vm1738, %v1724, %v1164
      %v1758 = vsel %vm1738, %v1725, %v1166
      %v1759 = vsel %vm1738, %v1726, %v1168
      %v1760 = vsel %vm1738, %v1727, %v1170
      %v1761 = vsel %vm1738, %v1728, %v1172
      %v1762 = vsel %vm1738, %v1729, %v1174
      %v1763 = vsel %vm1738, %v1730, %v1176
      %v1764 = vsel %vm1738, %v1731, %v1178
      %v1765 = vsel %vm1738, %v1732, %v1180
      %v1766 = vsel %vm1738, %v1733, %v1182
      %v1767 = vsel %vm1738, %v1734, %v1184
      %v1768 = vsel %vm1738, %v1735, %v1186
      %v1769 = vsel %vm1738, %v1736, %v1188
      %v1770 = vsel %vm1738, %v1737, %v1190
      %vm1771 = vcmask 195584
      %v1772 = vsel %vm1771, %v1739, %v1256
      %v1773 = vsel %vm1771, %v1740, %v1258
      %v1774 = vsel %vm1771, %v1741, %v1260
      %v1775 = vsel %vm1771, %v1742, %v1262
      %v1776 = vsel %vm1771, %v1743, %v1264
      %v1777 = vsel %vm1771, %v1744, %v1266
      %v1778 = vsel %vm1771, %v1745, %v1268
      %v1779 = vsel %vm1771, %v1746, %v1270
      %v1780 = vsel %vm1771, %v1747, %v1272
      %v1781 = vsel %vm1771, %v1748, %v1274
      %v1782 = vsel %vm1771, %v1749, %v1276
      %v1783 = vsel %vm1771, %v1750, %v1278
      %v1784 = vsel %vm1771, %v1751, %v1280
      %v1785 = vsel %vm1771, %v1752, %v1282
      %v1786 = vsel %vm1771, %v1753, %v1284
      %v1787 = vsel %vm1771, %v1754, %v1286
      %v1788 = vsel %vm1771, %v1755, %v1288
      %v1789 = vsel %vm1771, %v1756, %v1290
      %v1790 = vsel %vm1771, %v1757, %v1292
      %v1791 = vsel %vm1771, %v1758, %v1294
      %v1792 = vsel %vm1771, %v1759, %v1296
      %v1793 = vsel %vm1771, %v1760, %v1298
      %v1794 = vsel %vm1771, %v1761, %v1300
      %v1795 = vsel %vm1771, %v1762, %v1302
      %v1796 = vsel %vm1771, %v1763, %v1304
      %v1797 = vsel %vm1771, %v1764, %v1306
      %v1798 = vsel %vm1771, %v1765, %v1308
      %v1799 = vsel %vm1771, %v1766, %v1310
      %v1800 = vsel %vm1771, %v1767, %v1312
      %v1801 = vsel %vm1771, %v1768, %v1314
      %v1802 = vsel %vm1771, %v1769, %v1316
      %v1803 = vsel %vm1771, %v1770, %v1318
      %vm1804 = vcmask 228352
      %v1805 = vsel %vm1804, %v1772, %v1384
      %v1806 = vsel %vm1804, %v1773, %v1386
      %v1807 = vsel %vm1804, %v1774, %v1388
      %v1808 = vsel %vm1804, %v1775, %v1390
      %v1809 = vsel %vm1804, %v1776, %v1392
      %v1810 = vsel %vm1804, %v1777, %v1394
      %v1811 = vsel %vm1804, %v1778, %v1396
      %v1812 = vsel %vm1804, %v1779, %v1398
      %v1813 = vsel %vm1804, %v1780, %v1400
      %v1814 = vsel %vm1804, %v1781, %v1402
      %v1815 = vsel %vm1804, %v1782, %v1404
      %v1816 = vsel %vm1804, %v1783, %v1406
      %v1817 = vsel %vm1804, %v1784, %v1408
      %v1818 = vsel %vm1804, %v1785, %v1410
      %v1819 = vsel %vm1804, %v1786, %v1412
      %v1820 = vsel %vm1804, %v1787, %v1414
      %v1821 = vsel %vm1804, %v1788, %v1416
      %v1822 = vsel %vm1804, %v1789, %v1418
      %v1823 = vsel %vm1804, %v1790, %v1420
      %v1824 = vsel %vm1804, %v1791, %v1422
      %v1825 = vsel %vm1804, %v1792, %v1424
      %v1826 = vsel %vm1804, %v1793, %v1426
      %v1827 = vsel %vm1804, %v1794, %v1428
      %v1828 = vsel %vm1804, %v1795, %v1430
      %v1829 = vsel %vm1804, %v1796, %v1432
      %v1830 = vsel %vm1804, %v1797, %v1434
      %v1831 = vsel %vm1804, %v1798, %v1436
      %v1832 = vsel %vm1804, %v1799, %v1438
      %v1833 = vsel %vm1804, %v1800, %v1440
      %v1834 = vsel %vm1804, %v1801, %v1442
      %v1835 = vsel %vm1804, %v1802, %v1444
      %v1836 = vsel %vm1804, %v1803, %v1446
      %vm1837 = vcmask 261120
      %v1838 = vsel %vm1837, %v1805, %v1512
      %v1839 = vsel %vm1837, %v1806, %v1514
      %v1840 = vsel %vm1837, %v1807, %v1516
      %v1841 = vsel %vm1837, %v1808, %v1518
      %v1842 = vsel %vm1837, %v1809, %v1520
      %v1843 = vsel %vm1837, %v1810, %v1522
      %v1844 = vsel %vm1837, %v1811, %v1524
      %v1845 = vsel %vm1837, %v1812, %v1526
      %v1846 = vsel %vm1837, %v1813, %v1528
      %v1847 = vsel %vm1837, %v1814, %v1530
      %v1848 = vsel %vm1837, %v1815, %v1532
      %v1849 = vsel %vm1837, %v1816, %v1534
      %v1850 = vsel %vm1837, %v1817, %v1536
      %v1851 = vsel %vm1837, %v1818, %v1538
      %v1852 = vsel %vm1837, %v1819, %v1540
      %v1853 = vsel %vm1837, %v1820, %v1542
      %v1854 = vsel %vm1837, %v1821, %v1544
      %v1855 = vsel %vm1837, %v1822, %v1546
      %v1856 = vsel %vm1837, %v1823, %v1548
      %v1857 = vsel %vm1837, %v1824, %v1550
      %v1858 = vsel %vm1837, %v1825, %v1552
      %v1859 = vsel %vm1837, %v1826, %v1554
      %v1860 = vsel %vm1837, %v1827, %v1556
      %v1861 = vsel %vm1837, %v1828, %v1558
      %v1862 = vsel %vm1837, %v1829, %v1560
      %v1863 = vsel %vm1837, %v1830, %v1562
      %v1864 = vsel %vm1837, %v1831, %v1564
      %v1865 = vsel %vm1837, %v1832, %v1566
      %v1866 = vsel %vm1837, %v1833, %v1568
      %v1867 = vsel %vm1837, %v1834, %v1570
      %v1868 = vsel %vm1837, %v1835, %v1572
      %v1869 = vsel %vm1837, %v1836, %v1574
      %vm1870 = vcmask 293888
      %v1872 = vsel %vm1870, %v1838, 0
      %v1875 = vsel %vm1870, %v1839, 0
      %v1878 = vsel %vm1870, %v1840, 0
      %v1881 = vsel %vm1870, %v1841, 0
      %v1884 = vsel %vm1870, %v1842, 0
      %v1887 = vsel %vm1870, %v1843, 0
      %v1890 = vsel %vm1870, %v1844, 0
      %v1893 = vsel %vm1870, %v1845, 0
      %v1896 = vsel %vm1870, %v1846, 0
      %v1899 = vsel %vm1870, %v1847, 0
      %v1902 = vsel %vm1870, %v1848, 0
      %v1905 = vsel %vm1870, %v1849, 0
      %v1908 = vsel %vm1870, %v1850, 0
      %v1911 = vsel %vm1870, %v1851, 0
      %v1914 = vsel %vm1870, %v1852, 0
      %v1917 = vsel %vm1870, %v1853, 0
      %v1920 = vsel %vm1870, %v1854, 0
      %v1923 = vsel %vm1870, %v1855, 0
      %v1926 = vsel %vm1870, %v1856, 0
      %v1929 = vsel %vm1870, %v1857, 0
      %v1932 = vsel %vm1870, %v1858, 0
      %v1935 = vsel %vm1870, %v1859, 0
      %v1938 = vsel %vm1870, %v1860, 0
      %v1941 = vsel %vm1870, %v1861, 0
      %v1944 = vsel %vm1870, %v1862, 0
      %v1947 = vsel %vm1870, %v1863, 0
      %v1950 = vsel %vm1870, %v1864, 0
      %v1953 = vsel %vm1870, %v1865, 0
      %v1956 = vsel %vm1870, %v1866, 0
      %v1959 = vsel %vm1870, %v1867, 0
      %v1962 = vsel %vm1870, %v1868, 0
      %v1965 = vsel %vm1870, %v1869, 0
      %vm1967 = vcmask 1043456
      %v1969 = vsel %vm1967, %v218, 0
      %1971 = vmatprep.subr.mxu0 0.0
      %1972 = vmatpush1.msra.mxu0 0.0
      %1973 = vmatprep.subr.mxu0 0.0
      %1974 = vmatpush1.msra.mxu0 0.0
      %1975 = vmatprep.subr.mxu0 0.0
      %1976 = vmatpush1.msra.mxu0 0.0
      %1977 = vmatprep.subr.mxu0 0.0
      %1978 = vmatpush1.msra.mxu0 0.0
      %1979 = vmatprep.subr.mxu0 0.0
      %1980 = vmatpush1.msra.mxu0 0.0
      %1981 = vmatprep.subr.mxu0 0.0
      %1982 = vmatpush1.msra.mxu0 0.0
      %1983 = vmatprep.subr.mxu0 0.0
      %1984 = vmatpush1.msra.mxu0 0.0
      %1985 = vmatprep.subr.mxu0 0.0
      %1986 = vmatpush1.msra.mxu0 0.0
      %1987 = vmatprep.subr.mxu0 0.0
      %1988 = vmatpush1.msra.mxu0 0.0
      %1989 = vmatprep.subr.mxu0 0.0
      %1990 = vmatpush1.msra.mxu0 0.0
      %1991 = vmatprep.subr.mxu0 0.0
      %1992 = vmatpush1.msra.mxu0 0.0
      %1993 = vmatprep.subr.mxu0 0.0
      %1994 = vmatpush1.msra.mxu0 %v1969
      %1995 = vmatprep.subr.mxu0 0.0
      %1996 = vmatpush1.msra.mxu0 %v217
      %1997 = vmatprep.subr.mxu0 0.0
      %1998 = vmatpush1.msra.mxu0 %v216
      %1999 = vmatprep.subr.mxu0 0.0
      %2000 = vmatpush1.msra.mxu0 %v215
      %2001 = vmatprep.subr.mxu0 0.0
      %2002 = vmatpush1.msra.mxu0 %v214
      %2003 = vmatprep.subr.mxu0 0.0
      %2004 = vmatpush2.msra.mxu0 0.0
      %2005 = vmatprep.subr.mxu0 0.0
      %2006 = vmatpush2.msra.mxu0 0.0
      %2007 = vmatprep.subr.mxu0 0.0
      %2008 = vmatpush2.msra.mxu0 0.0
      %2009 = vmatprep.subr.mxu0 0.0
      %2010 = vmatpush2.msra.mxu0 0.0
      %2011 = vmatprep.subr.mxu0 0.0
      %2012 = vmatpush2.msra.mxu0 0.0
      %2013 = vmatprep.subr.mxu0 0.0
      %2014 = vmatpush2.msra.mxu0 0.0
      %2015 = vmatprep.subr.mxu0 0.0
      %2016 = vmatpush2.msra.mxu0 0.0
      %2017 = vmatprep.subr.mxu0 0.0
      %2018 = vmatpush2.msra.mxu0 0.0
      %2019 = vmatprep.subr.mxu0 0.0
      %2020 = vmatpush2.msra.mxu0 0.0
      %2021 = vmatprep.subr.mxu0 0.0
      %2022 = vmatpush2.msra.mxu0 0.0
      %2023 = vmatprep.subr.mxu0 0.0
      %2024 = vmatpush2.msra.mxu0 0.0
      %2025 = vmatprep.subr.mxu0 0.0
      %2026 = vmatpush2.msra.mxu0 0.0
      %2027 = vmatprep.subr.mxu0 0.0
      %2028 = vmatpush2.msra.mxu0 0.0
      %2029 = vmatprep.subr.mxu0 0.0
      %2030 = vmatpush2.msra.mxu0 0.0
      %2031 = vmatprep.subr.mxu0 0.0
      %2032 = vmatpush2.msra.mxu0 0.0
      %2033 = vmatprep.subr.mxu0 0.0
      %2034 = vmatpush2.msra.mxu0 0.0
      %2035 = vmatprep.mubr.f32.mxu0 0.0
      %2036 = vmatmul.mubr.f32.gmra.mxu0 %v1872
      %v2037 = vpop.f32.mrf.mxu0
      %v2038 = vadd.f32 0.0, %v2037
      %v2039 = vpop.f32.mrf.mxu0
      %2040 = vmatprep.mubr.f32.mxu0 0.0
      %2041 = vmatmul.mubr.f32.gmra.mxu0 %v1875
      %v2042 = vpop.f32.mrf.mxu0
      %v2043 = vadd.f32 0.0, %v2042
      %v2044 = vpop.f32.mrf.mxu0
      %2045 = vmatprep.mubr.f32.mxu0 0.0
      %2046 = vmatmul.mubr.f32.gmra.mxu0 %v1878
      %v2047 = vpop.f32.mrf.mxu0
      %v2048 = vadd.f32 0.0, %v2047
      %v2049 = vpop.f32.mrf.mxu0
      %2050 = vmatprep.mubr.f32.mxu0 0.0
      %2051 = vmatmul.mubr.f32.gmra.mxu0 %v1881
      %v2052 = vpop.f32.mrf.mxu0
      %v2053 = vadd.f32 0.0, %v2052
      %v2054 = vpop.f32.mrf.mxu0
      %2055 = vmatprep.mubr.f32.mxu0 0.0
      %2056 = vmatmul.mubr.f32.gmra.mxu0 %v1884
      %v2057 = vpop.f32.mrf.mxu0
      %v2058 = vadd.f32 0.0, %v2057
      %v2059 = vpop.f32.mrf.mxu0
      %2060 = vmatprep.mubr.f32.mxu0 0.0
      %2061 = vmatmul.mubr.f32.gmra.mxu0 %v1887
      %v2062 = vpop.f32.mrf.mxu0
      %v2063 = vadd.f32 0.0, %v2062
      %v2064 = vpop.f32.mrf.mxu0
      %2065 = vmatprep.mubr.f32.mxu0 0.0
      %2066 = vmatmul.mubr.f32.gmra.mxu0 %v1890
      %v2067 = vpop.f32.mrf.mxu0
      %v2068 = vadd.f32 0.0, %v2067
      %v2069 = vpop.f32.mrf.mxu0
      %2070 = vmatprep.mubr.f32.mxu0 0.0
      %2071 = vmatmul.mubr.f32.gmra.mxu0 %v1893
      %v2072 = vpop.f32.mrf.mxu0
      %v2073 = vadd.f32 0.0, %v2072
      %v2074 = vpop.f32.mrf.mxu0
      %2075 = vmatprep.mubr.f32.mxu0 0.0
      %2076 = vmatmul.mubr.f32.gmra.mxu0 %v1896
      %v2077 = vpop.f32.mrf.mxu0
      %v2078 = vadd.f32 0.0, %v2077
      %v2079 = vpop.f32.mrf.mxu0
      %2080 = vmatprep.mubr.f32.mxu0 0.0
      %2081 = vmatmul.mubr.f32.gmra.mxu0 %v1899
      %v2082 = vpop.f32.mrf.mxu0
      %v2083 = vadd.f32 0.0, %v2082
      %v2084 = vpop.f32.mrf.mxu0
      %2085 = vmatprep.mubr.f32.mxu0 0.0
      %2086 = vmatmul.mubr.f32.gmra.mxu0 %v1902
      %v2087 = vpop.f32.mrf.mxu0
      %v2088 = vadd.f32 0.0, %v2087
      %v2089 = vpop.f32.mrf.mxu0
      %2090 = vmatprep.mubr.f32.mxu0 0.0
      %2091 = vmatmul.mubr.f32.gmra.mxu0 %v1905
      %v2092 = vpop.f32.mrf.mxu0
      %v2093 = vadd.f32 0.0, %v2092
      %v2094 = vpop.f32.mrf.mxu0
      %2095 = vmatprep.mubr.f32.mxu0 0.0
      %2096 = vmatmul.mubr.f32.gmra.mxu0 %v1908
      %v2097 = vpop.f32.mrf.mxu0
      %v2098 = vadd.f32 0.0, %v2097
      %v2099 = vpop.f32.mrf.mxu0
      %2100 = vmatprep.mubr.f32.mxu0 0.0
      %2101 = vmatmul.mubr.f32.gmra.mxu0 %v1911
      %v2102 = vpop.f32.mrf.mxu0
      %v2103 = vadd.f32 0.0, %v2102
      %v2104 = vpop.f32.mrf.mxu0
      %2105 = vmatprep.mubr.f32.mxu0 0.0
      %2106 = vmatmul.mubr.f32.gmra.mxu0 %v1914
      %v2107 = vpop.f32.mrf.mxu0
      %v2108 = vadd.f32 0.0, %v2107
      %v2109 = vpop.f32.mrf.mxu0
      %2110 = vmatprep.mubr.f32.mxu0 0.0
      %2111 = vmatmul.mubr.f32.gmra.mxu0 %v1917
      %v2112 = vpop.f32.mrf.mxu0
      %v2113 = vadd.f32 0.0, %v2112
      %v2114 = vpop.f32.mrf.mxu0
      %2115 = vmatprep.mubr.f32.mxu0 0.0
      %2116 = vmatmul.mubr.f32.gmra.mxu0 %v1920
      %v2117 = vpop.f32.mrf.mxu0
      %v2118 = vadd.f32 0.0, %v2117
      %v2119 = vpop.f32.mrf.mxu0
      %2120 = vmatprep.mubr.f32.mxu0 0.0
      %2121 = vmatmul.mubr.f32.gmra.mxu0 %v1923
      %v2122 = vpop.f32.mrf.mxu0
      %v2123 = vadd.f32 0.0, %v2122
      %v2124 = vpop.f32.mrf.mxu0
      %2125 = vmatprep.mubr.f32.mxu0 0.0
      %2126 = vmatmul.mubr.f32.gmra.mxu0 %v1926
      %v2127 = vpop.f32.mrf.mxu0
      %v2128 = vadd.f32 0.0, %v2127
      %v2129 = vpop.f32.mrf.mxu0
      %2130 = vmatprep.mubr.f32.mxu0 0.0
      %2131 = vmatmul.mubr.f32.gmra.mxu0 %v1929
      %v2132 = vpop.f32.mrf.mxu0
      %v2133 = vadd.f32 0.0, %v2132
      %v2134 = vpop.f32.mrf.mxu0
      %2135 = vmatprep.mubr.f32.mxu0 0.0
      %2136 = vmatmul.mubr.f32.gmra.mxu0 %v1932
      %v2137 = vpop.f32.mrf.mxu0
      %v2138 = vadd.f32 0.0, %v2137
      %v2139 = vpop.f32.mrf.mxu0
      %2140 = vmatprep.mubr.f32.mxu0 0.0
      %2141 = vmatmul.mubr.f32.gmra.mxu0 %v1935
      %v2142 = vpop.f32.mrf.mxu0
      %v2143 = vadd.f32 0.0, %v2142
      %v2144 = vpop.f32.mrf.mxu0
      %2145 = vmatprep.mubr.f32.mxu0 0.0
      %2146 = vmatmul.mubr.f32.gmra.mxu0 %v1938
      %v2147 = vpop.f32.mrf.mxu0
      %v2148 = vadd.f32 0.0, %v2147
      %v2149 = vpop.f32.mrf.mxu0
      %2150 = vmatprep.mubr.f32.mxu0 0.0
      %2151 = vmatmul.mubr.f32.gmra.mxu0 %v1941
      %v2152 = vpop.f32.mrf.mxu0
      %v2153 = vadd.f32 0.0, %v2152
      %v2154 = vpop.f32.mrf.mxu0
      %2155 = vmatprep.mubr.f32.mxu0 0.0
      %2156 = vmatmul.mubr.f32.gmra.mxu0 %v1944
      %v2157 = vpop.f32.mrf.mxu0
      %v2158 = vadd.f32 0.0, %v2157
      %v2159 = vpop.f32.mrf.mxu0
      %2160 = vmatprep.mubr.f32.mxu0 0.0
      %2161 = vmatmul.mubr.f32.gmra.mxu0 %v1947
      %v2162 = vpop.f32.mrf.mxu0
      %v2163 = vadd.f32 0.0, %v2162
      %v2164 = vpop.f32.mrf.mxu0
      %2165 = vmatprep.mubr.f32.mxu0 0.0
      %2166 = vmatmul.mubr.f32.gmra.mxu0 %v1950
      %v2167 = vpop.f32.mrf.mxu0
      %v2168 = vadd.f32 0.0, %v2167
      %v2169 = vpop.f32.mrf.mxu0
      %2170 = vmatprep.mubr.f32.mxu0 0.0
      %2171 = vmatmul.mubr.f32.gmra.mxu0 %v1953
      %v2172 = vpop.f32.mrf.mxu0
      %v2173 = vadd.f32 0.0, %v2172
      %v2174 = vpop.f32.mrf.mxu0
      %2175 = vmatprep.mubr.f32.mxu0 0.0
      %2176 = vmatmul.mubr.f32.gmra.mxu0 %v1956
      %v2177 = vpop.f32.mrf.mxu0
      %v2178 = vadd.f32 0.0, %v2177
      %v2179 = vpop.f32.mrf.mxu0
      %2180 = vmatprep.mubr.f32.mxu0 0.0
      %2181 = vmatmul.mubr.f32.gmra.mxu0 %v1959
      %v2182 = vpop.f32.mrf.mxu0
      %v2183 = vadd.f32 0.0, %v2182
      %v2184 = vpop.f32.mrf.mxu0
      %2185 = vmatprep.mubr.f32.mxu0 0.0
      %2186 = vmatmul.mubr.f32.gmra.mxu0 %v1962
      %v2187 = vpop.f32.mrf.mxu0
      %v2188 = vadd.f32 0.0, %v2187
      %v2189 = vpop.f32.mrf.mxu0
      %2190 = vmatprep.mubr.f32.mxu0 0.0
      %2191 = vmatmul.mubr.f32.gmra.mxu0 %v1965
      %v2192 = vpop.f32.mrf.mxu0
      %v2193 = vadd.f32 0.0, %v2192
      %v2194 = vpop.f32.mrf.mxu0
      %2195 = vdwg.mxu0
      %2196 = vst.msk [vmem:[%s177] sm:$0xff] %vm1639, %v2038
      %2197 = vst.msk [vmem:[%s177 + $0x8] sm:$0xff] %vm1639, %v2043
      %2198 = vst.msk [vmem:[%s177 + $0x10] sm:$0xff] %vm1639, %v2048
      %2199 = vst.msk [vmem:[%s177 + $0x18] sm:$0xff] %vm1639, %v2053
      %2200 = vst.msk [vmem:[%s177 + $0x20] sm:$0xff] %vm1639, %v2058
      %2201 = vst.msk [vmem:[%s177 + $0x28] sm:$0xff] %vm1639, %v2063
      %2202 = vst.msk [vmem:[%s177 + $0x30] sm:$0xff] %vm1639, %v2068
      %2203 = vst.msk [vmem:[%s177 + $0x38] sm:$0xff] %vm1639, %v2073
      %2204 = vst.msk [vmem:[%s177 + $0x40] sm:$0xff] %vm1639, %v2078
      %2205 = vst.msk [vmem:[%s177 + $0x48] sm:$0xff] %vm1639, %v2083
      %2206 = vst.msk [vmem:[%s177 + $0x50] sm:$0xff] %vm1639, %v2088
      %2207 = vst.msk [vmem:[%s177 + $0x58] sm:$0xff] %vm1639, %v2093
      %2208 = vst.msk [vmem:[%s177 + $0x60] sm:$0xff] %vm1639, %v2098
      %2209 = vst.msk [vmem:[%s177 + $0x68] sm:$0xff] %vm1639, %v2103
      %2210 = vst.msk [vmem:[%s177 + $0x70] sm:$0xff] %vm1639, %v2108
      %2211 = vst.msk [vmem:[%s177 + $0x78] sm:$0xff] %vm1639, %v2113
      %2212 = vst.msk [vmem:[%s177 + $0x80] sm:$0xff] %vm1639, %v2118
      %2213 = vst.msk [vmem:[%s177 + $0x88] sm:$0xff] %vm1639, %v2123
      %2214 = vst.msk [vmem:[%s177 + $0x90] sm:$0xff] %vm1639, %v2128
      %2215 = vst.msk [vmem:[%s177 + $0x98] sm:$0xff] %vm1639, %v2133
      %2216 = vst.msk [vmem:[%s177 + $0xa0] sm:$0xff] %vm1639, %v2138
      %2217 = vst.msk [vmem:[%s177 + $0xa8] sm:$0xff] %vm1639, %v2143
      %2218 = vst.msk [vmem:[%s177 + $0xb0] sm:$0xff] %vm1639, %v2148
      %2219 = vst.msk [vmem:[%s177 + $0xb8] sm:$0xff] %vm1639, %v2153
      %2220 = vst.msk [vmem:[%s177 + $0xc0] sm:$0xff] %vm1639, %v2158
      %2221 = vst.msk [vmem:[%s177 + $0xc8] sm:$0xff] %vm1639, %v2163
      %2222 = vst.msk [vmem:[%s177 + $0xd0] sm:$0xff] %vm1639, %v2168
      %2223 = vst.msk [vmem:[%s177 + $0xd8] sm:$0xff] %vm1639, %v2173
      %2224 = vst.msk [vmem:[%s177 + $0xe0] sm:$0xff] %vm1639, %v2178
      %2225 = vst.msk [vmem:[%s177 + $0xe8] sm:$0xff] %vm1639, %v2183
      %2226 = vst.msk [vmem:[%s177 + $0xf0] sm:$0xff] %vm1639, %v2188
      %2227 = vst.msk [vmem:[%s177 + $0xf8] sm:$0xff] %vm1639, %v2193
      %v2228 = vsel %vm1639, %v2038, 0.0
      %v2229 = vsel %vm1639, %v2043, 0.0
      %v2230 = vadd.f32 %v2228, %v2229
      %v2231 = vsel %vm1639, %v2048, 0.0
      %v2232 = vadd.f32 %v2230, %v2231
      %v2233 = vsel %vm1639, %v2053, 0.0
      %v2234 = vadd.f32 %v2232, %v2233
      %v2235 = vsel %vm1639, %v2058, 0.0
      %v2236 = vadd.f32 %v2234, %v2235
      %v2237 = vsel %vm1639, %v2063, 0.0
      %v2238 = vadd.f32 %v2236, %v2237
      %v2239 = vsel %vm1639, %v2068, 0.0
      %v2240 = vadd.f32 %v2238, %v2239
      %v2241 = vsel %vm1639, %v2073, 0.0
      %v2242 = vadd.f32 %v2240, %v2241
      %v2243 = vsel %vm1639, %v2078, 0.0
      %v2244 = vadd.f32 %v2242, %v2243
      %v2245 = vsel %vm1639, %v2083, 0.0
      %v2246 = vadd.f32 %v2244, %v2245
      %v2247 = vsel %vm1639, %v2088, 0.0
      %v2248 = vadd.f32 %v2246, %v2247
      %v2249 = vsel %vm1639, %v2093, 0.0
      %v2250 = vadd.f32 %v2248, %v2249
      %v2251 = vsel %vm1639, %v2098, 0.0
      %v2252 = vadd.f32 %v2250, %v2251
      %v2253 = vsel %vm1639, %v2103, 0.0
      %v2254 = vadd.f32 %v2252, %v2253
      %v2255 = vsel %vm1639, %v2108, 0.0
      %v2256 = vadd.f32 %v2254, %v2255
      %v2257 = vsel %vm1639, %v2113, 0.0
      %v2258 = vadd.f32 %v2256, %v2257
      %v2259 = vsel %vm1639, %v2118, 0.0
      %v2260 = vadd.f32 %v2258, %v2259
      %v2261 = vsel %vm1639, %v2123, 0.0
      %v2262 = vadd.f32 %v2260, %v2261
      %v2263 = vsel %vm1639, %v2128, 0.0
      %v2264 = vadd.f32 %v2262, %v2263
      %v2265 = vsel %vm1639, %v2133, 0.0
      %v2266 = vadd.f32 %v2264, %v2265
      %v2267 = vsel %vm1639, %v2138, 0.0
      %v2268 = vadd.f32 %v2266, %v2267
      %v2269 = vsel %vm1639, %v2143, 0.0
      %v2270 = vadd.f32 %v2268, %v2269
      %v2271 = vsel %vm1639, %v2148, 0.0
      %v2272 = vadd.f32 %v2270, %v2271
      %v2273 = vsel %vm1639, %v2153, 0.0
      %v2274 = vadd.f32 %v2272, %v2273
      %v2275 = vsel %vm1639, %v2158, 0.0
      %v2276 = vadd.f32 %v2274, %v2275
      %v2277 = vsel %vm1639, %v2163, 0.0
      %v2278 = vadd.f32 %v2276, %v2277
      %v2279 = vsel %vm1639, %v2168, 0.0
      %v2280 = vadd.f32 %v2278, %v2279
      %v2281 = vsel %vm1639, %v2173, 0.0
      %v2282 = vadd.f32 %v2280, %v2281
      %v2283 = vsel %vm1639, %v2178, 0.0
      %v2284 = vadd.f32 %v2282, %v2283
      %v2285 = vsel %vm1639, %v2183, 0.0
      %v2286 = vadd.f32 %v2284, %v2285
      %v2287 = vsel %vm1639, %v2188, 0.0
      %v2288 = vadd.f32 %v2286, %v2287
      %v2289 = vsel %vm1639, %v2193, 0.0
      %v2290 = vadd.f32 %v2288, %v2289
      %v2291 = vrot.slane %v2290, 4
      %v2292 = vadd.f32 %v2290, %v2291
      %v2293 = vrot.slane %v2292, 2
      %v2294 = vadd.f32 %v2292, %v2293
      %v2295 = vrot.slane %v2294, 1
      %v2296 = vadd.f32 %v2294, %v2295
      %v2297 = vmul.f32 %v2038, %v2038
      %v2298 = vmul.f32 %v2043, %v2043
      %v2299 = vmul.f32 %v2048, %v2048
      %v2300 = vmul.f32 %v2053, %v2053
      %v2301 = vmul.f32 %v2058, %v2058
      %v2302 = vmul.f32 %v2063, %v2063
      %v2303 = vmul.f32 %v2068, %v2068
      %v2304 = vmul.f32 %v2073, %v2073
      %v2305 = vmul.f32 %v2078, %v2078
      %v2306 = vmul.f32 %v2083, %v2083
      %v2307 = vmul.f32 %v2088, %v2088
      %v2308 = vmul.f32 %v2093, %v2093
      %v2309 = vmul.f32 %v2098, %v2098
      %v2310 = vmul.f32 %v2103, %v2103
      %v2311 = vmul.f32 %v2108, %v2108
      %v2312 = vmul.f32 %v2113, %v2113
      %v2313 = vmul.f32 %v2118, %v2118
      %v2314 = vmul.f32 %v2123, %v2123
      %v2315 = vmul.f32 %v2128, %v2128
      %v2316 = vmul.f32 %v2133, %v2133
      %v2317 = vmul.f32 %v2138, %v2138
      %v2318 = vmul.f32 %v2143, %v2143
      %v2319 = vmul.f32 %v2148, %v2148
      %v2320 = vmul.f32 %v2153, %v2153
      %v2321 = vmul.f32 %v2158, %v2158
      %v2322 = vmul.f32 %v2163, %v2163
      %v2323 = vmul.f32 %v2168, %v2168
      %v2324 = vmul.f32 %v2173, %v2173
      %v2325 = vmul.f32 %v2178, %v2178
      %v2326 = vmul.f32 %v2183, %v2183
      %v2327 = vmul.f32 %v2188, %v2188
      %v2328 = vmul.f32 %v2193, %v2193
      %v2329 = vsel %vm1639, %v2297, 0.0
      %v2330 = vsel %vm1639, %v2298, 0.0
      %v2331 = vadd.f32 %v2329, %v2330
      %v2332 = vsel %vm1639, %v2299, 0.0
      %v2333 = vadd.f32 %v2331, %v2332
      %v2334 = vsel %vm1639, %v2300, 0.0
      %v2335 = vadd.f32 %v2333, %v2334
      %v2336 = vsel %vm1639, %v2301, 0.0
      %v2337 = vadd.f32 %v2335, %v2336
      %v2338 = vsel %vm1639, %v2302, 0.0
      %v2339 = vadd.f32 %v2337, %v2338
      %v2340 = vsel %vm1639, %v2303, 0.0
      %v2341 = vadd.f32 %v2339, %v2340
      %v2342 = vsel %vm1639, %v2304, 0.0
      %v2343 = vadd.f32 %v2341, %v2342
      %v2344 = vsel %vm1639, %v2305, 0.0
      %v2345 = vadd.f32 %v2343, %v2344
      %v2346 = vsel %vm1639, %v2306, 0.0
      %v2347 = vadd.f32 %v2345, %v2346
      %v2348 = vsel %vm1639, %v2307, 0.0
      %v2349 = vadd.f32 %v2347, %v2348
      %v2350 = vsel %vm1639, %v2308, 0.0
      %v2351 = vadd.f32 %v2349, %v2350
      %v2352 = vsel %vm1639, %v2309, 0.0
      %v2353 = vadd.f32 %v2351, %v2352
      %v2354 = vsel %vm1639, %v2310, 0.0
      %v2355 = vadd.f32 %v2353, %v2354
      %v2356 = vsel %vm1639, %v2311, 0.0
      %v2357 = vadd.f32 %v2355, %v2356
      %v2358 = vsel %vm1639, %v2312, 0.0
      %v2359 = vadd.f32 %v2357, %v2358
      %v2360 = vsel %vm1639, %v2313, 0.0
      %v2361 = vadd.f32 %v2359, %v2360
      %v2362 = vsel %vm1639, %v2314, 0.0
      %v2363 = vadd.f32 %v2361, %v2362
      %v2364 = vsel %vm1639, %v2315, 0.0
      %v2365 = vadd.f32 %v2363, %v2364
      %v2366 = vsel %vm1639, %v2316, 0.0
      %v2367 = vadd.f32 %v2365, %v2366
      %v2368 = vsel %vm1639, %v2317, 0.0
      %v2369 = vadd.f32 %v2367, %v2368
      %v2370 = vsel %vm1639, %v2318, 0.0
      %v2371 = vadd.f32 %v2369, %v2370
      %v2372 = vsel %vm1639, %v2319, 0.0
      %v2373 = vadd.f32 %v2371, %v2372
      %v2374 = vsel %vm1639, %v2320, 0.0
      %v2375 = vadd.f32 %v2373, %v2374
      %v2376 = vsel %vm1639, %v2321, 0.0
      %v2377 = vadd.f32 %v2375, %v2376
      %v2378 = vsel %vm1639, %v2322, 0.0
      %v2379 = vadd.f32 %v2377, %v2378
      %v2380 = vsel %vm1639, %v2323, 0.0
      %v2381 = vadd.f32 %v2379, %v2380
      %v2382 = vsel %vm1639, %v2324, 0.0
      %v2383 = vadd.f32 %v2381, %v2382
      %v2384 = vsel %vm1639, %v2325, 0.0
      %v2385 = vadd.f32 %v2383, %v2384
      %v2386 = vsel %vm1639, %v2326, 0.0
      %v2387 = vadd.f32 %v2385, %v2386
      %v2388 = vsel %vm1639, %v2327, 0.0
      %v2389 = vadd.f32 %v2387, %v2388
      %v2390 = vsel %vm1639, %v2328, 0.0
      %v2391 = vadd.f32 %v2389, %v2390
      %v2392 = vrot.slane %v2391, 4
      %v2393 = vadd.f32 %v2391, %v2392
      %v2394 = vrot.slane %v2393, 2
      %v2395 = vadd.f32 %v2393, %v2394
      %v2396 = vrot.slane %v2395, 1
      %v2397 = vadd.f32 %v2395, %v2396
      %vm2398 = vcmask 1040384
      %v2399 = vsel %vm2398, %v2296, %v2397
      %vm2400 = vcmask 58368
      %2401 = vst.msk [vmem:[%s181] sm:$0x3] %vm2400, %v2399
      %p2402 = scmp.lt.s32.totalorder %s15, 1
      %s2403 = scalar_select %p2402, %s15, 1
      %s2404 = smul.addr %s2403, 32
      %s2405 = smul.addr %s2404, 8
      %s2406 = scalar_lea.vmem %s2, %s2405
      %p2407 = scmp.lt.s32.totalorder %s15, 1
      %s2408 = scalar_select %p2407, %s15, 1
      %s2409 = smul.addr %s2408, 2
      %s2410 = scalar_lea.vmem %s3, %s2409
      // Predicated region
      $region29: #{first_residual_block.3} parent=27 // pred_check
        %p2411 = pneg %p80
      $region30: #{first_residual_block.3} parent=27 // pred_check_branch
        %2413 = sbr.rel (%p2411) target = $region32
      $region31: #{first_residual_block.3} parent=27 // pred_region
        _
      $region32: #{first_residual_block.3} parent=27 // pred_fallthru
        _
      // Predicated region
      $region33: #{first_residual_block.3} parent=27 // pred_check
        %p2414 = pneg %p106
      $region34: #{first_residual_block.3} parent=27 // pred_check_branch
        %2416 = sbr.rel (%p2414) target = $region36
      $region35: #{first_residual_block.3} parent=27 // pred_region
        _
      $region36: #{first_residual_block.3} parent=27 // pred_fallthru
        _
    $region28: #{first_residual_block.3} parent=5 // pred_fallthru
      _
    %p2417 = scmp.le.s32.totalorder 2, %s10
    // Predicated region
    $region37: #{first_residual_block.3} parent=5 // pred_check
      %p2418 = pneg %p2417
    $region38: #{first_residual_block.3} parent=5 // pred_check_branch
      %2420 = sbr.rel (%p2418) target = $region40
    $region39: #{first_residual_block.3} parent=5 // pred_region
      %s2421 = ssub.s32 %s10, 2
      // Predicated region
      $region41: #{first_residual_block.3} parent=39 // pred_check
        %p2422 = pneg %p86
      $region42: #{first_residual_block.3} parent=39 // pred_check_branch
        %2424 = sbr.rel (%p2422) target = $region44
      $region43: #{first_residual_block.3} parent=39 // pred_region
        %p2425 = scmp.lt.s32.totalorder %s16, 1
        %s2426 = scalar_select %p2425, %s16, 1
        %s2427 = smul.addr %s2426, 32
        %s2428 = smul.addr %s2427, 8
        %s2429 = scalar_lea.vmem %s2, %s2428
      $region44: #{first_residual_block.3} parent=39 // pred_fallthru
        _
      // Predicated region
      $region45: #{first_residual_block.3} parent=39 // pred_check
        %p2430 = pneg %p112
      $region46: #{first_residual_block.3} parent=39 // pred_check_branch
        %2432 = sbr.rel (%p2430) target = $region48
      $region47: #{first_residual_block.3} parent=39 // pred_region
        %p2433 = scmp.lt.s32.totalorder %s16, 1
        %s2434 = scalar_select %p2433, %s16, 1
        %s2435 = smul.addr %s2434, 2
        %s2436 = scalar_lea.vmem %s3, %s2435
      $region48: #{first_residual_block.3} parent=39 // pred_fallthru
        _
    $region40: #{first_residual_block.3} parent=5 // pred_fallthru
      _
  $region6: #{first_residual_block.3} parent=0 // loop_footer
    %s14 = sadd.s32 1, %s10
  $region7: #{first_residual_block.3} parent=0 // loop_footer_branch
    %9 = sbr.rel target = $region3
  $region8: #{first_residual_block.3} parent=0 // loop_exit
    _

// kernel: first_residual_block.4
$region0: #{first_residual_block.4}
  #allocation0 [shape = 'u32[]', space=smem, size = 0x4, offset = 0x4, fixed_abs, tag = 'smem constant byte address 0x4 - core index']
  #allocation1 [shape = 'u32[144,128]{1,0:T(1,128)}', space=vmem, size = 0x12000, scoped, tag = 'internal scratch']
  #allocation2 [shape = 'f32[18,18,8]{2,1,0:T(8,128)}', space=vmem, size = 0x36000, scoped, tag = 'scratch operand']
  %s0 = inlined_call_operand.vmem [shape: f32[2,16,16,8], index: 0, kind: input, shape index: {}]
  %s1 = inlined_call_operand.vmem [shape: f32[1,8], index: 1, kind: input, shape index: {}]
  %s2 = inlined_call_operand.vmem [shape: f32[1,8], index: 2, kind: input, shape index: {}]
  %s3 = inlined_call_operand.vmem [shape: f32[72,8], index: 3, kind: input, shape index: {}]
  %s4 = inlined_call_operand.vmem [shape: f32[2,16,16,8], index: 4, kind: output, shape index: {0}]
  %s5 = inlined_call_operand.vmem [shape: f32[2,2,8], index: 5, kind: output, shape index: {1}]
  %6 = xla_tuple %s4, %s5
  %s7 = sld [smem:[#allocation0]]
  $region57: #{first_residual_block.4} parent=0
    _
  %s9 = ssub.s32 1, %s7
  %s10 = scalar_select 0, %s9, %s7
  loop: start=0, step=1, limit=4
  $region2: #{first_residual_block.4} parent=0 // loop_pre_header
    _
  $region3: #{first_residual_block.4} parent=0 // loop_header
    %s12 = sphi 0, %s16
    %p13 = scmp.ge.s32.totalorder %s12, 4
    %s22 = sphi 0, %s24
    %s25 = sphi 0, %s22
    %s26 = sphi 0, %s25
    %s42 = sphi 0, %s26
    %s46 = sphi 0, %s46
    %s48 = sphi 0, %s46
    %s49 = sphi 0, %s48
    %s63 = sphi 0, %s49
    %s67 = sphi 0, %s67
    %s69 = sphi 0, %s67
    %s70 = sphi 0, %s69
    %s84 = sphi 0, %s70
    %s88 = sphi 0, %s88
    %s90 = sphi 0, %s88
    %s91 = sphi 0, %s90
    %s105 = sphi 0, %s91
    %s111 = sphi 0, %s113
    %s114 = sphi 0, %s111
    %s115 = sphi 0, %s114
    %s131 = sphi 0, %s115
    %s137 = sphi 0, %s139
    %s140 = sphi 0, %s137
    %s141 = sphi 0, %s140
    %s157 = sphi 0, %s141
  $region4: #{first_residual_block.4} parent=0 // loop_header_branch
    %15 = sbr.rel (%p13) target = $region8
  $region5: #{first_residual_block.4} parent=0 // loop_body
    %s17 = ssub.s32 %s12, 1
    %s18 = ssub.s32 %s12, 2
    %s19 = sadd.s32 %s12, 1
    %s20 = ssub.s32 %s12, %s19
    %p21 = scmp.eq.s32.totalorder %s20, 0
    %s23 = sadd.s32 %s22, 1
    %s24 = scalar_select %p21, %s22, %s23
    %p27 = pneg %p21
    %p28 = scmp.eq.s32.totalorder %s12, 1
    %p29 = por %p27, %p28
    %p30 = scmp.ne.s32.totalorder %s22, %s25
    %p31 = scmp.eq.s32.totalorder %s12, 0
    %p32 = por %p30, %p31
    %p33 = scmp.ne.s32.totalorder %s22, %s25
    %p34 = scmp.eq.s32.totalorder %s17, 1
    %p35 = por %p33, %p34
    %p36 = scmp.ne.s32.totalorder %s25, %s26
    %p37 = scmp.eq.s32.totalorder %s17, 0
    %p38 = por %p36, %p37
    %p39 = scmp.ne.s32.totalorder %s25, %s26
    %p40 = scmp.eq.s32.totalorder %s18, 1
    %p41 = por %p39, %p40
    %p43 = scmp.ne.s32.totalorder %s26, %s42
    %p44 = scmp.eq.s32.totalorder %s18, 0
    %p45 = por %p43, %p44
    %s47 = sadd.s32 %s46, 1
    %p50 = scmp.eq.s32.totalorder %s12, 1
    %p51 = scmp.ne.s32.totalorder %s46, %s48
    %p52 = scmp.eq.s32.totalorder %s12, 0
    %p53 = por %p51, %p52
    %p54 = scmp.ne.s32.totalorder %s46, %s48
    %p55 = scmp.eq.s32.totalorder %s17, 1
    %p56 = por %p54, %p55
    %p57 = scmp.ne.s32.totalorder %s48, %s49
    %p58 = scmp.eq.s32.totalorder %s17, 0
    %p59 = por %p57, %p58
    %p60 = scmp.ne.s32.totalorder %s48, %s49
    %p61 = scmp.eq.s32.totalorder %s18, 1
    %p62 = por %p60, %p61
    %p64 = scmp.ne.s32.totalorder %s49, %s63
    %p65 = scmp.eq.s32.totalorder %s18, 0
    %p66 = por %p64, %p65
    %s68 = sadd.s32 %s67, 1
    %p71 = scmp.eq.s32.totalorder %s12, 1
    %p72 = scmp.ne.s32.totalorder %s67, %s69
    %p73 = scmp.eq.s32.totalorder %s12, 0
    %p74 = por %p72, %p73
    %p75 = scmp.ne.s32.totalorder %s67, %s69
    %p76 = scmp.eq.s32.totalorder %s17, 1
    %p77 = por %p75, %p76
    %p78 = scmp.ne.s32.totalorder %s69, %s70
    %p79 = scmp.eq.s32.totalorder %s17, 0
    %p80 = por %p78, %p79
    %p81 = scmp.ne.s32.totalorder %s69, %s70
    %p82 = scmp.eq.s32.totalorder %s18, 1
    %p83 = por %p81, %p82
    %p85 = scmp.ne.s32.totalorder %s70, %s84
    %p86 = scmp.eq.s32.totalorder %s18, 0
    %p87 = por %p85, %p86
    %s89 = sadd.s32 %s88, 1
    %p92 = scmp.eq.s32.totalorder %s12, 1
    %p93 = scmp.ne.s32.totalorder %s88, %s90
    %p94 = scmp.eq.s32.totalorder %s12, 0
    %p95 = por %p93, %p94
    %p96 = scmp.ne.s32.totalorder %s88, %s90
    %p97 = scmp.eq.s32.totalorder %s17, 1
    %p98 = por %p96, %p97
    %p99 = scmp.ne.s32.totalorder %s90, %s91
    %p100 = scmp.eq.s32.totalorder %s17, 0
    %p101 = por %p99, %p100
    %p102 = scmp.ne.s32.totalorder %s90, %s91
    %p103 = scmp.eq.s32.totalorder %s18, 1
    %p104 = por %p102, %p103
    %p106 = scmp.ne.s32.totalorder %s91, %s105
    %p107 = scmp.eq.s32.totalorder %s18, 0
    %p108 = por %p106, %p107
    %s109 = ssub.s32 %s12, %s19
    %p110 = scmp.eq.s32.totalorder %s109, 0
    %s112 = sadd.s32 %s111, 1
    %s113 = scalar_select %p110, %s111, %s112
    %p116 = pneg %p110
    %p117 = scmp.eq.s32.totalorder %s12, 1
    %p118 = por %p116, %p117
    %p119 = scmp.ne.s32.totalorder %s111, %s114
    %p120 = scmp.eq.s32.totalorder %s12, 0
    %p121 = por %p119, %p120
    %p122 = scmp.ne.s32.totalorder %s111, %s114
    %p123 = scmp.eq.s32.totalorder %s17, 1
    %p124 = por %p122, %p123
    %p125 = scmp.ne.s32.totalorder %s114, %s115
    %p126 = scmp.eq.s32.totalorder %s17, 0
    %p127 = por %p125, %p126
    %p128 = scmp.ne.s32.totalorder %s114, %s115
    %p129 = scmp.eq.s32.totalorder %s18, 1
    %p130 = por %p128, %p129
    %p132 = scmp.ne.s32.totalorder %s115, %s131
    %p133 = scmp.eq.s32.totalorder %s18, 0
    %p134 = por %p132, %p133
    %s135 = ssub.s32 %s12, %s19
    %p136 = scmp.eq.s32.totalorder %s135, 0
    %s138 = sadd.s32 %s137, 1
    %s139 = scalar_select %p136, %s137, %s138
    %p142 = pneg %p136
    %p143 = scmp.eq.s32.totalorder %s12, 1
    %p144 = por %p142, %p143
    %p145 = scmp.ne.s32.totalorder %s137, %s140
    %p146 = scmp.eq.s32.totalorder %s12, 0
    %p147 = por %p145, %p146
    %p148 = scmp.ne.s32.totalorder %s137, %s140
    %p149 = scmp.eq.s32.totalorder %s17, 1
    %p150 = por %p148, %p149
    %p151 = scmp.ne.s32.totalorder %s140, %s141
    %p152 = scmp.eq.s32.totalorder %s17, 0
    %p153 = por %p151, %p152
    %p154 = scmp.ne.s32.totalorder %s140, %s141
    %p155 = scmp.eq.s32.totalorder %s18, 1
    %p156 = por %p154, %p155
    %p158 = scmp.ne.s32.totalorder %s141, %s157
    %p159 = scmp.eq.s32.totalorder %s18, 0
    %p160 = por %p158, %p159
    %p161 = scmp.le.s32.totalorder 1, %s12
    %p162 = scmp.lt.s32.totalorder %s12, 3
    %p163 = pnand %p161, %p162
    %p164 = pneg %p163
    // Predicated region
    $region9: #{first_residual_block.4} parent=5 // pred_check
      _
    $region10: #{first_residual_block.4} parent=5 // pred_check_branch
      %166 = sbr.rel (%p163) target = $region12
    $region11: #{first_residual_block.4} parent=5 // pred_region
      %s167 = ssub.s32 %s12, 1
      // Predicated region
      $region13: #{first_residual_block.4} parent=11 // pred_check
        %p168 = pneg %p59
      $region14: #{first_residual_block.4} parent=11 // pred_check_branch
        %170 = sbr.rel (%p168) target = $region16
      $region15: #{first_residual_block.4} parent=11 // pred_region
        _
      $region16: #{first_residual_block.4} parent=11 // pred_fallthru
        _
      // Predicated region
      $region17: #{first_residual_block.4} parent=11 // pred_check
        %p171 = pneg %p80
      $region18: #{first_residual_block.4} parent=11 // pred_check_branch
        %173 = sbr.rel (%p171) target = $region20
      $region19: #{first_residual_block.4} parent=11 // pred_region
        _
      $region20: #{first_residual_block.4} parent=11 // pred_fallthru
        _
      // Predicated region
      $region21: #{first_residual_block.4} parent=11 // pred_check
        %p174 = pneg %p101
      $region22: #{first_residual_block.4} parent=11 // pred_check_branch
        %176 = sbr.rel (%p174) target = $region24
      $region23: #{first_residual_block.4} parent=11 // pred_region
        _
      $region24: #{first_residual_block.4} parent=11 // pred_fallthru
        _
    $region12: #{first_residual_block.4} parent=5 // pred_fallthru
      _
    %p177 = scmp.lt.s32.totalorder %s12, 2
    // Predicated region
    $region25: #{first_residual_block.4} parent=5 // pred_check
      %p178 = pneg %p177
    $region26: #{first_residual_block.4} parent=5 // pred_check_branch
      %180 = sbr.rel (%p178) target = $region28
    $region27: #{first_residual_block.4} parent=5 // pred_region
      // Predicated region
      $region29: #{first_residual_block.4} parent=27 // pred_check
        %p181 = pneg %p32
      $region30: #{first_residual_block.4} parent=27 // pred_check_branch
        %183 = sbr.rel (%p181) target = $region32
      $region31: #{first_residual_block.4} parent=27 // pred_region
        %p184 = scmp.lt.s32.totalorder %s12, 1
        %s185 = scalar_select %p184, %s12, 1
        %s186 = smul.addr %s185, 32
        %s187 = smul.addr %s186, 8
        %s188 = scalar_lea.vmem %s0, %s187
      $region32: #{first_residual_block.4} parent=27 // pred_fallthru
        _
    $region28: #{first_residual_block.4} parent=5 // pred_fallthru
      _
    %p189 = scmp.le.s32.totalorder 1, %s12
    %p190 = scmp.lt.s32.totalorder %s12, 3
    %p191 = pnand %p189, %p190
    %p192 = pneg %p191
    // Predicated region
    $region33: #{first_residual_block.4} parent=5 // pred_check
      _
    $region34: #{first_residual_block.4} parent=5 // pred_check_branch
      %194 = sbr.rel (%p191) target = $region36
    $region35: #{first_residual_block.4} parent=5 // pred_region
      %s195 = ssub.s32 %s12, 1
      %p196 = scmp.lt.s32.totalorder %s17, 1
      %s197 = scalar_select %p196, %s17, 1
      %s198 = smul.addr %s197, 32
      %s199 = smul.addr %s198, 8
      %s200 = scalar_lea.vmem %s0, %s199
      %p201 = pneg %p38
      %p202 = pneg %p35
      %p203 = pneg %p59
      %p204 = pneg %p56
      %p205 = pneg %p80
      %p206 = pneg %p77
      %p207 = pneg %p101
      %p208 = pneg %p98
      %p209 = pneg %p127
      %p210 = pneg %p124
      %p211 = scmp.lt.s32.totalorder %s17, 1
      %s212 = scalar_select %p211, %s17, 1
      %s213 = smul.addr %s212, 32
      %s214 = smul.addr %s213, 8
      %s215 = scalar_lea.vmem %s4, %s214
      %p216 = pneg %p153
      %p217 = pneg %p150
      %p218 = scmp.lt.s32.totalorder %s17, 1
      %s219 = scalar_select %p218, %s17, 1
      %s220 = smul.addr %s219, 2
      %s221 = scalar_lea.vmem %s5, %s220
      %p222 = scmp.lt.s32.totalorder %s17, 1
      %s223 = scalar_select %p222, %s17, 1
      %s224 = smul.addr %s223, 32
      %s225 = smul.addr %s224, 8
      %s226 = scalar_lea.vmem %s0, %s225
      %p227 = scmp.lt.s32.totalorder %s17, 1
      %s228 = scalar_select %p227, %s17, 1
      %s229 = smul.addr %s228, 32
      %s230 = smul.addr %s229, 8
      %s231 = scalar_lea.vmem %s4, %s230
      %p232 = scmp.lt.s32.totalorder %s17, 1
      %s233 = scalar_select %p232, %s17, 1
      %s234 = smul.addr %s233, 2
      %s235 = scalar_lea.vmem %s5, %s234
      %v236 = vld [vmem:[%s226] sm:$0xff]
      %v237 = vld [vmem:[%s226 + $0x8] sm:$0xff]
      %v238 = vld [vmem:[%s226 + $0x10] sm:$0xff]
      %v239 = vld [vmem:[%s226 + $0x18] sm:$0xff]
      %v240 = vld [vmem:[%s226 + $0x20] sm:$0xff]
      %v241 = vld [vmem:[%s226 + $0x28] sm:$0xff]
      %v242 = vld [vmem:[%s226 + $0x30] sm:$0xff]
      %v243 = vld [vmem:[%s226 + $0x38] sm:$0xff]
      %v244 = vld [vmem:[%s226 + $0x40] sm:$0xff]
      %v245 = vld [vmem:[%s226 + $0x48] sm:$0xff]
      %v246 = vld [vmem:[%s226 + $0x50] sm:$0xff]
      %v247 = vld [vmem:[%s226 + $0x58] sm:$0xff]
      %v248 = vld [vmem:[%s226 + $0x60] sm:$0xff]
      %v249 = vld [vmem:[%s226 + $0x68] sm:$0xff]
      %v250 = vld [vmem:[%s226 + $0x70] sm:$0xff]
      %v251 = vld [vmem:[%s226 + $0x78] sm:$0xff]
      %v252 = vld [vmem:[%s226 + $0x80] sm:$0xff]
      %v253 = vld [vmem:[%s226 + $0x88] sm:$0xff]
      %v254 = vld [vmem:[%s226 + $0x90] sm:$0xff]
      %v255 = vld [vmem:[%s226 + $0x98] sm:$0xff]
      %v256 = vld [vmem:[%s226 + $0xa0] sm:$0xff]
      %v257 = vld [vmem:[%s226 + $0xa8] sm:$0xff]
      %v258 = vld [vmem:[%s226 + $0xb0] sm:$0xff]
      %v259 = vld [vmem:[%s226 + $0xb8] sm:$0xff]
      %v260 = vld [vmem:[%s226 + $0xc0] sm:$0xff]
      %v261 = vld [vmem:[%s226 + $0xc8] sm:$0xff]
      %v262 = vld [vmem:[%s226 + $0xd0] sm:$0xff]
      %v263 = vld [vmem:[%s226 + $0xd8] sm:$0xff]
      %v264 = vld [vmem:[%s226 + $0xe0] sm:$0xff]
      %v265 = vld [vmem:[%s226 + $0xe8] sm:$0xff]
      %v266 = vld [vmem:[%s226 + $0xf0] sm:$0xff]
      %v267 = vld [vmem:[%s226 + $0xf8] sm:$0xff]
      %v268 = vld [vmem:[%s1] sm:$0x1]
      %v270 = vlaneseq
      %v271 = vshrl.u32 %v270, 7
      %v272 = vsub.s32 0, %v271
      %v273 = vrot.slane %v268, %v272
      %v275 = vmul.f32 %v236, %v273
      %v276 = vmul.f32 %v237, %v273
      %v277 = vmul.f32 %v238, %v273
      %v278 = vmul.f32 %v239, %v273
      %v279 = vmul.f32 %v240, %v273
      %v280 = vmul.f32 %v241, %v273
      %v281 = vmul.f32 %v242, %v273
      %v282 = vmul.f32 %v243, %v273
      %v283 = vmul.f32 %v244, %v273
      %v284 = vmul.f32 %v245, %v273
      %v285 = vmul.f32 %v246, %v273
      %v286 = vmul.f32 %v247, %v273
      %v287 = vmul.f32 %v248, %v273
      %v288 = vmul.f32 %v249, %v273
      %v289 = vmul.f32 %v250, %v273
      %v290 = vmul.f32 %v251, %v273
      %v291 = vmul.f32 %v252, %v273
      %v292 = vmul.f32 %v253, %v273
      %v293 = vmul.f32 %v254, %v273
      %v294 = vmul.f32 %v255, %v273
      %v295 = vmul.f32 %v256, %v273
      %v296 = vmul.f32 %v257, %v273
      %v297 = vmul.f32 %v258, %v273
      %v298 = vmul.f32 %v259, %v273
      %v299 = vmul.f32 %v260, %v273
      %v300 = vmul.f32 %v261, %v273
      %v301 = vmul.f32 %v262, %v273
      %v302 = vmul.f32 %v263, %v273
      %v303 = vmul.f32 %v264, %v273
      %v304 = vmul.f32 %v265, %v273
      %v305 = vmul.f32 %v266, %v273
      %v306 = vmul.f32 %v267, %v273
      %v307 = vld [vmem:[%s2] sm:$0x1]
      %v309 = vlaneseq
      %v310 = vshrl.u32 %v309, 7
      %v311 = vsub.s32 0, %v310
      %v312 = vrot.slane %v307, %v311
      %v314 = vadd.f32 %v275, %v312
      %v315 = vadd.f32 %v276, %v312
      %v316 = vadd.f32 %v277, %v312
      %v317 = vadd.f32 %v278, %v312
      %v318 = vadd.f32 %v279, %v312
      %v319 = vadd.f32 %v280, %v312
      %v320 = vadd.f32 %v281, %v312
      %v321 = vadd.f32 %v282, %v312
      %v322 = vadd.f32 %v283, %v312
      %v323 = vadd.f32 %v284, %v312
      %v324 = vadd.f32 %v285, %v312
      %v325 = vadd.f32 %v286, %v312
      %v326 = vadd.f32 %v287, %v312
      %v327 = vadd.f32 %v288, %v312
      %v328 = vadd.f32 %v289, %v312
      %v329 = vadd.f32 %v290, %v312
      %v330 = vadd.f32 %v291, %v312
      %v331 = vadd.f32 %v292, %v312
      %v332 = vadd.f32 %v293, %v312
      %v333 = vadd.f32 %v294, %v312
      %v334 = vadd.f32 %v295, %v312
      %v335 = vadd.f32 %v296, %v312
      %v336 = vadd.f32 %v297, %v312
      %v337 = vadd.f32 %v298, %v312
      %v338 = vadd.f32 %v299, %v312
      %v339 = vadd.f32 %v300, %v312
      %v340 = vadd.f32 %v301, %v312
      %v341 = vadd.f32 %v302, %v312
      %v342 = vadd.f32 %v303, %v312
      %v343 = vadd.f32 %v304, %v312
      %v344 = vadd.f32 %v305, %v312
      %v345 = vadd.f32 %v306, %v312
      %v346 = vmax.f32 %v314, 0.0
      %v347 = vmax.f32 %v315, 0.0
      %v348 = vmax.f32 %v316, 0.0
      %v349 = vmax.f32 %v317, 0.0
      %v350 = vmax.f32 %v318, 0.0
      %v351 = vmax.f32 %v319, 0.0
      %v352 = vmax.f32 %v320, 0.0
      %v353 = vmax.f32 %v321, 0.0
      %v354 = vmax.f32 %v322, 0.0
      %v355 = vmax.f32 %v323, 0.0
      %v356 = vmax.f32 %v324, 0.0
      %v357 = vmax.f32 %v325, 0.0
      %v358 = vmax.f32 %v326, 0.0
      %v359 = vmax.f32 %v327, 0.0
      %v360 = vmax.f32 %v328, 0.0
      %v361 = vmax.f32 %v329, 0.0
      %v362 = vmax.f32 %v330, 0.0
      %v363 = vmax.f32 %v331, 0.0
      %v364 = vmax.f32 %v332, 0.0
      %v365 = vmax.f32 %v333, 0.0
      %v366 = vmax.f32 %v334, 0.0
      %v367 = vmax.f32 %v335, 0.0
      %v368 = vmax.f32 %v336, 0.0
      %v369 = vmax.f32 %v337, 0.0
      %v370 = vmax.f32 %v338, 0.0
      %v371 = vmax.f32 %v339, 0.0
      %v372 = vmax.f32 %v340, 0.0
      %v373 = vmax.f32 %v341, 0.0
      %v374 = vmax.f32 %v342, 0.0
      %v375 = vmax.f32 %v343, 0.0
      %v376 = vmax.f32 %v344, 0.0
      %v377 = vmax.f32 %v345, 0.0
      %v378 = vld [vmem:[%s3] sm:$0xff]
      %v379 = vld [vmem:[%s3 + $0x8] sm:$0xff]
      %v380 = vld [vmem:[%s3 + $0x10] sm:$0xff]
      %v381 = vld [vmem:[%s3 + $0x18] sm:$0xff]
      %v382 = vld [vmem:[%s3 + $0x20] sm:$0xff]
      %v383 = vld [vmem:[%s3 + $0x28] sm:$0xff]
      %v384 = vld [vmem:[%s3 + $0x30] sm:$0xff]
      %v385 = vld [vmem:[%s3 + $0x38] sm:$0xff]
      %v386 = vld [vmem:[%s3 + $0x40] sm:$0xff]
      %vm387 = vcmask 64512
      %388 = vst.msk [vmem:[#allocation2] sm:$0xff] %vm387, 0.0
      %389 = vst.msk [vmem:[#allocation2 + $0x8] sm:$0xff] %vm387, 0.0
      %vm390 = vcmask 58368
      %391 = vst.msk [vmem:[#allocation2 + $0x10] sm:$0x3] %vm390, 0.0
      %s392 = scalar_lea.vmem [#allocation2], 408
      %393 = vst.msk [vmem:[%s392] sm:$0xff] %vm387, 0.0
      %394 = vst.msk [vmem:[%s392 + $0x8] sm:$0xff] %vm387, 0.0
      %395 = vst.msk [vmem:[%s392 + $0x10] sm:$0x3] %vm390, 0.0
      %s396 = scalar_lea.vmem [#allocation2], 24
      %vm397 = vcmask 57344
      %398 = vst.msk [vmem:[%s396] sm:$0x1] %vm397, 0.0
      %399 = vst.msk [vmem:[%s396 + $0x18] sm:$0x1] %vm397, 0.0
      %400 = vst.msk [vmem:[%s396 + $0x30] sm:$0x1] %vm397, 0.0
      %401 = vst.msk [vmem:[%s396 + $0x48] sm:$0x1] %vm397, 0.0
      %402 = vst.msk [vmem:[%s396 + $0x60] sm:$0x1] %vm397, 0.0
      %403 = vst.msk [vmem:[%s396 + $0x78] sm:$0x1] %vm397, 0.0
      %404 = vst.msk [vmem:[%s396 + $0x90] sm:$0x1] %vm397, 0.0
      %405 = vst.msk [vmem:[%s396 + $0xa8] sm:$0x1] %vm397, 0.0
      %406 = vst.msk [vmem:[%s396 + $0xc0] sm:$0x1] %vm397, 0.0
      %407 = vst.msk [vmem:[%s396 + $0xd8] sm:$0x1] %vm397, 0.0
      %408 = vst.msk [vmem:[%s396 + $0xf0] sm:$0x1] %vm397, 0.0
      %409 = vst.msk [vmem:[%s396 + $0x108] sm:$0x1] %vm397, 0.0
      %410 = vst.msk [vmem:[%s396 + $0x120] sm:$0x1] %vm397, 0.0
      %411 = vst.msk [vmem:[%s396 + $0x138] sm:$0x1] %vm397, 0.0
      %412 = vst.msk [vmem:[%s396 + $0x150] sm:$0x1] %vm397, 0.0
      %413 = vst.msk [vmem:[%s396 + $0x168] sm:$0x1] %vm397, 0.0
      %414 = vst.msk [vmem:[%s396 + $0x11] sm:$0x1] %vm397, 0.0
      %415 = vst.msk [vmem:[%s396 + $0x29] sm:$0x1] %vm397, 0.0
      %416 = vst.msk [vmem:[%s396 + $0x41] sm:$0x1] %vm397, 0.0
      %417 = vst.msk [vmem:[%s396 + $0x59] sm:$0x1] %vm397, 0.0
      %418 = vst.msk [vmem:[%s396 + $0x71] sm:$0x1] %vm397, 0.0
      %419 = vst.msk [vmem:[%s396 + $0x89] sm:$0x1] %vm397, 0.0
      %420 = vst.msk [vmem:[%s396 + $0xa1] sm:$0x1] %vm397, 0.0
      %421 = vst.msk [vmem:[%s396 + $0xb9] sm:$0x1] %vm397, 0.0
      %422 = vst.msk [vmem:[%s396 + $0xd1] sm:$0x1] %vm397, 0.0
      %423 = vst.msk [vmem:[%s396 + $0xe9] sm:$0x1] %vm397, 0.0
      %424 = vst.msk [vmem:[%s396 + $0x101] sm:$0x1] %vm397, 0.0
      %425 = vst.msk [vmem:[%s396 + $0x119] sm:$0x1] %vm397, 0.0
      %426 = vst.msk [vmem:[%s396 + $0x131] sm:$0x1] %vm397, 0.0
      %427 = vst.msk [vmem:[%s396 + $0x149] sm:$0x1] %vm397, 0.0
      %428 = vst.msk [vmem:[%s396 + $0x161] sm:$0x1] %vm397, 0.0
      %429 = vst.msk [vmem:[%s396 + $0x179] sm:$0x1] %vm397, 0.0
      %430 = vst.msk [vmem:[%s396 + $0x1] sm:$0xff] %vm387, %v346
      %431 = vst.msk [vmem:[%s396 + $0x9] sm:$0xff] %vm387, %v347
      %432 = vst.msk [vmem:[%s396 + $0x19] sm:$0xff] %vm387, %v348
      %433 = vst.msk [vmem:[%s396 + $0x21] sm:$0xff] %vm387, %v349
      %434 = vst.msk [vmem:[%s396 + $0x31] sm:$0xff] %vm387, %v350
      %435 = vst.msk [vmem:[%s396 + $0x39] sm:$0xff] %vm387, %v351
      %436 = vst.msk [vmem:[%s396 + $0x49] sm:$0xff] %vm387, %v352
      %437 = vst.msk [vmem:[%s396 + $0x51] sm:$0xff] %vm387, %v353
      %438 = vst.msk [vmem:[%s396 + $0x61] sm:$0xff] %vm387, %v354
      %439 = vst.msk [vmem:[%s396 + $0x69] sm:$0xff] %vm387, %v355
      %440 = vst.msk [vmem:[%s396 + $0x79] sm:$0xff] %vm387, %v356
      %441 = vst.msk [vmem:[%s396 + $0x81] sm:$0xff] %vm387, %v357
      %442 = vst.msk [vmem:[%s396 + $0x91] sm:$0xff] %vm387, %v358
      %443 = vst.msk [vmem:[%s396 + $0x99] sm:$0xff] %vm387, %v359
      %444 = vst.msk [vmem:[%s396 + $0xa9] sm:$0xff] %vm387, %v360
      %445 = vst.msk [vmem:[%s396 + $0xb1] sm:$0xff] %vm387, %v361
      %446 = vst.msk [vmem:[%s396 + $0xc1] sm:$0xff] %vm387, %v362
      %447 = vst.msk [vmem:[%s396 + $0xc9] sm:$0xff] %vm387, %v363
      %448 = vst.msk [vmem:[%s396 + $0xd9] sm:$0xff] %vm387, %v364
      %449 = vst.msk [vmem:[%s396 + $0xe1] sm:$0xff] %vm387, %v365
      %450 = vst.msk [vmem:[%s396 + $0xf1] sm:$0xff] %vm387, %v366
      %451 = vst.msk [vmem:[%s396 + $0xf9] sm:$0xff] %vm387, %v367
      %452 = vst.msk [vmem:[%s396 + $0x109] sm:$0xff] %vm387, %v368
      %453 = vst.msk [vmem:[%s396 + $0x111] sm:$0xff] %vm387, %v369
      %454 = vst.msk [vmem:[%s396 + $0x121] sm:$0xff] %vm387, %v370
      %455 = vst.msk [vmem:[%s396 + $0x129] sm:$0xff] %vm387, %v371
      %456 = vst.msk [vmem:[%s396 + $0x139] sm:$0xff] %vm387, %v372
      %457 = vst.msk [vmem:[%s396 + $0x141] sm:$0xff] %vm387, %v373
      %458 = vst.msk [vmem:[%s396 + $0x151] sm:$0xff] %vm387, %v374
      %459 = vst.msk [vmem:[%s396 + $0x159] sm:$0xff] %vm387, %v375
      %460 = vst.msk [vmem:[%s396 + $0x169] sm:$0xff] %vm387, %v376
      %461 = vst.msk [vmem:[%s396 + $0x171] sm:$0xff] %vm387, %v377
      %v462 = vld [vmem:[#allocation2] sm:$0xff]
      %v463 = vld [vmem:[#allocation2 + $0x8] sm:$0xff]
      %v464 = vld [vmem:[#allocation2 + $0x18] sm:$0xff]
      %v465 = vld [vmem:[#allocation2 + $0x20] sm:$0xff]
      %v466 = vld [vmem:[#allocation2 + $0x30] sm:$0xff]
      %v467 = vld [vmem:[#allocation2 + $0x38] sm:$0xff]
      %v468 = vld [vmem:[#allocation2 + $0x48] sm:$0xff]
      %v469 = vld [vmem:[#allocation2 + $0x50] sm:$0xff]
      %v470 = vld [vmem:[#allocation2 + $0x60] sm:$0xff]
      %v471 = vld [vmem:[#allocation2 + $0x68] sm:$0xff]
      %v472 = vld [vmem:[#allocation2 + $0x78] sm:$0xff]
      %v473 = vld [vmem:[#allocation2 + $0x80] sm:$0xff]
      %v474 = vld [vmem:[#allocation2 + $0x90] sm:$0xff]
      %v475 = vld [vmem:[#allocation2 + $0x98] sm:$0xff]
      %v476 = vld [vmem:[#allocation2 + $0xa8] sm:$0xff]
      %v477 = vld [vmem:[#allocation2 + $0xb0] sm:$0xff]
      %v478 = vld [vmem:[#allocation2 + $0xc0] sm:$0xff]
      %v479 = vld [vmem:[#allocation2 + $0xc8] sm:$0xff]
      %v480 = vld [vmem:[#allocation2 + $0xd8] sm:$0xff]
      %v481 = vld [vmem:[#allocation2 + $0xe0] sm:$0xff]
      %v482 = vld [vmem:[#allocation2 + $0xf0] sm:$0xff]
      %v483 = vld [vmem:[#allocation2 + $0xf8] sm:$0xff]
      %v484 = vld [vmem:[#allocation2 + $0x108] sm:$0xff]
      %v485 = vld [vmem:[#allocation2 + $0x110] sm:$0xff]
      %v486 = vld [vmem:[#allocation2 + $0x120] sm:$0xff]
      %v487 = vld [vmem:[#allocation2 + $0x128] sm:$0xff]
      %v488 = vld [vmem:[#allocation2 + $0x138] sm:$0xff]
      %v489 = vld [vmem:[#allocation2 + $0x140] sm:$0xff]
      %v490 = vld [vmem:[#allocation2 + $0x150] sm:$0xff]
      %v491 = vld [vmem:[#allocation2 + $0x158] sm:$0xff]
      %v492 = vld [vmem:[#allocation2 + $0x168] sm:$0xff]
      %v493 = vld [vmem:[#allocation2 + $0x170] sm:$0xff]
      %v494 = vld [vmem:[#allocation2 + $0x1] sm:$0xff]
      %v495 = vld [vmem:[#allocation2 + $0x9] sm:$0xff]
      %v496 = vld [vmem:[#allocation2 + $0x19] sm:$0xff]
      %v497 = vld [vmem:[#allocation2 + $0x21] sm:$0xff]
      %v498 = vld [vmem:[#allocation2 + $0x31] sm:$0xff]
      %v499 = vld [vmem:[#allocation2 + $0x39] sm:$0xff]
      %v500 = vld [vmem:[#allocation2 + $0x49] sm:$0xff]
      %v501 = vld [vmem:[#allocation2 + $0x51] sm:$0xff]
      %v502 = vld [vmem:[#allocation2 + $0x61] sm:$0xff]
      %v503 = vld [vmem:[#allocation2 + $0x69] sm:$0xff]
      %v504 = vld [vmem:[#allocation2 + $0x79] sm:$0xff]
      %v505 = vld [vmem:[#allocation2 + $0x81] sm:$0xff]
      %v506 = vld [vmem:[#allocation2 + $0x91] sm:$0xff]
      %v507 = vld [vmem:[#allocation2 + $0x99] sm:$0xff]
      %v508 = vld [vmem:[#allocation2 + $0xa9] sm:$0xff]
      %v509 = vld [vmem:[#allocation2 + $0xb1] sm:$0xff]
      %v510 = vld [vmem:[#allocation2 + $0xc1] sm:$0xff]
      %v511 = vld [vmem:[#allocation2 + $0xc9] sm:$0xff]
      %v512 = vld [vmem:[#allocation2 + $0xd9] sm:$0xff]
      %v513 = vld [vmem:[#allocation2 + $0xe1] sm:$0xff]
      %v514 = vld [vmem:[#allocation2 + $0xf1] sm:$0xff]
      %v515 = vld [vmem:[#allocation2 + $0xf9] sm:$0xff]
      %v516 = vld [vmem:[#allocation2 + $0x109] sm:$0xff]
      %v517 = vld [vmem:[#allocation2 + $0x111] sm:$0xff]
      %v518 = vld [vmem:[#allocation2 + $0x121] sm:$0xff]
      %v519 = vld [vmem:[#allocation2 + $0x129] sm:$0xff]
      %v520 = vld [vmem:[#allocation2 + $0x139] sm:$0xff]
      %v521 = vld [vmem:[#allocation2 + $0x141] sm:$0xff]
      %v522 = vld [vmem:[#allocation2 + $0x151] sm:$0xff]
      %v523 = vld [vmem:[#allocation2 + $0x159] sm:$0xff]
      %v524 = vld [vmem:[#allocation2 + $0x169] sm:$0xff]
      %v525 = vld [vmem:[#allocation2 + $0x171] sm:$0xff]
      %v526 = vld [vmem:[#allocation2 + $0x2] sm:$0xff]
      %v527 = vld [vmem:[#allocation2 + $0xa] sm:$0xff]
      %v528 = vld [vmem:[#allocation2 + $0x1a] sm:$0xff]
      %v529 = vld [vmem:[#allocation2 + $0x22] sm:$0xff]
      %v530 = vld [vmem:[#allocation2 + $0x32] sm:$0xff]
      %v531 = vld [vmem:[#allocation2 + $0x3a] sm:$0xff]
      %v532 = vld [vmem:[#allocation2 + $0x4a] sm:$0xff]
      %v533 = vld [vmem:[#allocation2 + $0x52] sm:$0xff]
      %v534 = vld [vmem:[#allocation2 + $0x62] sm:$0xff]
      %v535 = vld [vmem:[#allocation2 + $0x6a] sm:$0xff]
      %v536 = vld [vmem:[#allocation2 + $0x7a] sm:$0xff]
      %v537 = vld [vmem:[#allocation2 + $0x82] sm:$0xff]
      %v538 = vld [vmem:[#allocation2 + $0x92] sm:$0xff]
      %v539 = vld [vmem:[#allocation2 + $0x9a] sm:$0xff]
      %v540 = vld [vmem:[#allocation2 + $0xaa] sm:$0xff]
      %v541 = vld [vmem:[#allocation2 + $0xb2] sm:$0xff]
      %v542 = vld [vmem:[#allocation2 + $0xc2] sm:$0xff]
      %v543 = vld [vmem:[#allocation2 + $0xca] sm:$0xff]
      %v544 = vld [vmem:[#allocation2 + $0xda] sm:$0xff]
      %v545 = vld [vmem:[#allocation2 + $0xe2] sm:$0xff]
      %v546 = vld [vmem:[#allocation2 + $0xf2] sm:$0xff]
      %v547 = vld [vmem:[#allocation2 + $0xfa] sm:$0xff]
      %v548 = vld [vmem:[#allocation2 + $0x10a] sm:$0xff]
      %v549 = vld [vmem:[#allocation2 + $0x112] sm:$0xff]
      %v550 = vld [vmem:[#allocation2 + $0x122] sm:$0xff]
      %v551 = vld [vmem:[#allocation2 + $0x12a] sm:$0xff]
      %v552 = vld [vmem:[#allocation2 + $0x13a] sm:$0xff]
      %v553 = vld [vmem:[#allocation2 + $0x142] sm:$0xff]
      %v554 = vld [vmem:[#allocation2 + $0x152] sm:$0xff]
      %v555 = vld [vmem:[#allocation2 + $0x15a] sm:$0xff]
      %v556 = vld [vmem:[#allocation2 + $0x16a] sm:$0xff]
      %v557 = vld [vmem:[#allocation2 + $0x172] sm:$0xff]
      %v558 = vld [vmem:[%s396] sm:$0xff]
      %v559 = vld [vmem:[%s396 + $0x8] sm:$0xff]
      %v560 = vld [vmem:[%s396 + $0x18] sm:$0xff]
      %v561 = vld [vmem:[%s396 + $0x20] sm:$0xff]
      %v562 = vld [vmem:[%s396 + $0x30] sm:$0xff]
      %v563 = vld [vmem:[%s396 + $0x38] sm:$0xff]
      %v564 = vld [vmem:[%s396 + $0x48] sm:$0xff]
      %v565 = vld [vmem:[%s396 + $0x50] sm:$0xff]
      %v566 = vld [vmem:[%s396 + $0x60] sm:$0xff]
      %v567 = vld [vmem:[%s396 + $0x68] sm:$0xff]
      %v568 = vld [vmem:[%s396 + $0x78] sm:$0xff]
      %v569 = vld [vmem:[%s396 + $0x80] sm:$0xff]
      %v570 = vld [vmem:[%s396 + $0x90] sm:$0xff]
      %v571 = vld [vmem:[%s396 + $0x98] sm:$0xff]
      %v572 = vld [vmem:[%s396 + $0xa8] sm:$0xff]
      %v573 = vld [vmem:[%s396 + $0xb0] sm:$0xff]
      %v574 = vld [vmem:[%s396 + $0xc0] sm:$0xff]
      %v575 = vld [vmem:[%s396 + $0xc8] sm:$0xff]
      %v576 = vld [vmem:[%s396 + $0xd8] sm:$0xff]
      %v577 = vld [vmem:[%s396 + $0xe0] sm:$0xff]
      %v578 = vld [vmem:[%s396 + $0xf0] sm:$0xff]
      %v579 = vld [vmem:[%s396 + $0xf8] sm:$0xff]
      %v580 = vld [vmem:[%s396 + $0x108] sm:$0xff]
      %v581 = vld [vmem:[%s396 + $0x110] sm:$0xff]
      %v582 = vld [vmem:[%s396 + $0x120] sm:$0xff]
      %v583 = vld [vmem:[%s396 + $0x128] sm:$0xff]
      %v584 = vld [vmem:[%s396 + $0x138] sm:$0xff]
      %v585 = vld [vmem:[%s396 + $0x140] sm:$0xff]
      %v586 = vld [vmem:[%s396 + $0x150] sm:$0xff]
      %v587 = vld [vmem:[%s396 + $0x158] sm:$0xff]
      %v588 = vld [vmem:[%s396 + $0x168] sm:$0xff]
      %v589 = vld [vmem:[%s396 + $0x170] sm:$0xff]
      %v590 = vld [vmem:[%s396 + $0x1] sm:$0xff]
      %v591 = vld [vmem:[%s396 + $0x9] sm:$0xff]
      %v592 = vld [vmem:[%s396 + $0x19] sm:$0xff]
      %v593 = vld [vmem:[%s396 + $0x21] sm:$0xff]
      %v594 = vld [vmem:[%s396 + $0x31] sm:$0xff]
      %v595 = vld [vmem:[%s396 + $0x39] sm:$0xff]
      %v596 = vld [vmem:[%s396 + $0x49] sm:$0xff]
      %v597 = vld [vmem:[%s396 + $0x51] sm:$0xff]
      %v598 = vld [vmem:[%s396 + $0x61] sm:$0xff]
      %v599 = vld [vmem:[%s396 + $0x69] sm:$0xff]
      %v600 = vld [vmem:[%s396 + $0x79] sm:$0xff]
      %v601 = vld [vmem:[%s396 + $0x81] sm:$0xff]
      %v602 = vld [vmem:[%s396 + $0x91] sm:$0xff]
      %v603 = vld [vmem:[%s396 + $0x99] sm:$0xff]
      %v604 = vld [vmem:[%s396 + $0xa9] sm:$0xff]
      %v605 = vld [vmem:[%s396 + $0xb1] sm:$0xff]
      %v606 = vld [vmem:[%s396 + $0xc1] sm:$0xff]
      %v607 = vld [vmem:[%s396 + $0xc9] sm:$0xff]
      %v608 = vld [vmem:[%s396 + $0xd9] sm:$0xff]
      %v609 = vld [vmem:[%s396 + $0xe1] sm:$0xff]
      %v610 = vld [vmem:[%s396 + $0xf1] sm:$0xff]
      %v611 = vld [vmem:[%s396 + $0xf9] sm:$0xff]
      %v612 = vld [vmem:[%s396 + $0x109] sm:$0xff]
      %v613 = vld [vmem:[%s396 + $0x111] sm:$0xff]
      %v614 = vld [vmem:[%s396 + $0x121] sm:$0xff]
      %v615 = vld [vmem:[%s396 + $0x129] sm:$0xff]
      %v616 = vld [vmem:[%s396 + $0x139] sm:$0xff]
      %v617 = vld [vmem:[%s396 + $0x141] sm:$0xff]
      %v618 = vld [vmem:[%s396 + $0x151] sm:$0xff]
      %v619 = vld [vmem:[%s396 + $0x159] sm:$0xff]
      %v620 = vld [vmem:[%s396 + $0x169] sm:$0xff]
      %v621 = vld [vmem:[%s396 + $0x171] sm:$0xff]
      %v622 = vld [vmem:[%s396 + $0x2] sm:$0xff]
      %v623 = vld [vmem:[%s396 + $0xa] sm:$0xff]
      %v624 = vld [vmem:[%s396 + $0x1a] sm:$0xff]
      %v625 = vld [vmem:[%s396 + $0x22] sm:$0xff]
      %v626 = vld [vmem:[%s396 + $0x32] sm:$0xff]
      %v627 = vld [vmem:[%s396 + $0x3a] sm:$0xff]
      %v628 = vld [vmem:[%s396 + $0x4a] sm:$0xff]
      %v629 = vld [vmem:[%s396 + $0x52] sm:$0xff]
      %v630 = vld [vmem:[%s396 + $0x62] sm:$0xff]
      %v631 = vld [vmem:[%s396 + $0x6a] sm:$0xff]
      %v632 = vld [vmem:[%s396 + $0x7a] sm:$0xff]
      %v633 = vld [vmem:[%s396 + $0x82] sm:$0xff]
      %v634 = vld [vmem:[%s396 + $0x92] sm:$0xff]
      %v635 = vld [vmem:[%s396 + $0x9a] sm:$0xff]
      %v636 = vld [vmem:[%s396 + $0xaa] sm:$0xff]
      %v637 = vld [vmem:[%s396 + $0xb2] sm:$0xff]
      %v638 = vld [vmem:[%s396 + $0xc2] sm:$0xff]
      %v639 = vld [vmem:[%s396 + $0xca] sm:$0xff]
      %v640 = vld [vmem:[%s396 + $0xda] sm:$0xff]
      %v641 = vld [vmem:[%s396 + $0xe2] sm:$0xff]
      %v642 = vld [vmem:[%s396 + $0xf2] sm:$0xff]
      %v643 = vld [vmem:[%s396 + $0xfa] sm:$0xff]
      %v644 = vld [vmem:[%s396 + $0x10a] sm:$0xff]
      %v645 = vld [vmem:[%s396 + $0x112] sm:$0xff]
      %v646 = vld [vmem:[%s396 + $0x122] sm:$0xff]
      %v647 = vld [vmem:[%s396 + $0x12a] sm:$0xff]
      %v648 = vld [vmem:[%s396 + $0x13a] sm:$0xff]
      %v649 = vld [vmem:[%s396 + $0x142] sm:$0xff]
      %v650 = vld [vmem:[%s396 + $0x152] sm:$0xff]
      %v651 = vld [vmem:[%s396 + $0x15a] sm:$0xff]
      %v652 = vld [vmem:[%s396 + $0x16a] sm:$0xff]
      %v653 = vld [vmem:[%s396 + $0x172] sm:$0xff]
      %s654 = scalar_lea.vmem [#allocation2], 48
      %v655 = vld [vmem:[%s654] sm:$0xff]
      %v656 = vld [vmem:[%s654 + $0x8] sm:$0xff]
      %v657 = vld [vmem:[%s654 + $0x18] sm:$0xff]
      %v658 = vld [vmem:[%s654 + $0x20] sm:$0xff]
      %v659 = vld [vmem:[%s654 + $0x30] sm:$0xff]
      %v660 = vld [vmem:[%s654 + $0x38] sm:$0xff]
      %v661 = vld [vmem:[%s654 + $0x48] sm:$0xff]
      %v662 = vld [vmem:[%s654 + $0x50] sm:$0xff]
      %v663 = vld [vmem:[%s654 + $0x60] sm:$0xff]
      %v664 = vld [vmem:[%s654 + $0x68] sm:$0xff]
      %v665 = vld [vmem:[%s654 + $0x78] sm:$0xff]
      %v666 = vld [vmem:[%s654 + $0x80] sm:$0xff]
      %v667 = vld [vmem:[%s654 + $0x90] sm:$0xff]
      %v668 = vld [vmem:[%s654 + $0x98] sm:$0xff]
      %v669 = vld [vmem:[%s654 + $0xa8] sm:$0xff]
      %v670 = vld [vmem:[%s654 + $0xb0] sm:$0xff]
      %v671 = vld [vmem:[%s654 + $0xc0] sm:$0xff]
      %v672 = vld [vmem:[%s654 + $0xc8] sm:$0xff]
      %v673 = vld [vmem:[%s654 + $0xd8] sm:$0xff]
      %v674 = vld [vmem:[%s654 + $0xe0] sm:$0xff]
      %v675 = vld [vmem:[%s654 + $0xf0] sm:$0xff]
      %v676 = vld [vmem:[%s654 + $0xf8] sm:$0xff]
      %v677 = vld [vmem:[%s654 + $0x108] sm:$0xff]
      %v678 = vld [vmem:[%s654 + $0x110] sm:$0xff]
      %v679 = vld [vmem:[%s654 + $0x120] sm:$0xff]
      %v680 = vld [vmem:[%s654 + $0x128] sm:$0xff]
      %v681 = vld [vmem:[%s654 + $0x138] sm:$0xff]
      %v682 = vld [vmem:[%s654 + $0x140] sm:$0xff]
      %v683 = vld [vmem:[%s654 + $0x150] sm:$0xff]
      %v684 = vld [vmem:[%s654 + $0x158] sm:$0xff]
      %v685 = vld [vmem:[%s654 + $0x168] sm:$0xff]
      %v686 = vld [vmem:[%s654 + $0x170] sm:$0xff]
      %v687 = vld [vmem:[%s654 + $0x1] sm:$0xff]
      %v688 = vld [vmem:[%s654 + $0x9] sm:$0xff]
      %v689 = vld [vmem:[%s654 + $0x19] sm:$0xff]
      %v690 = vld [vmem:[%s654 + $0x21] sm:$0xff]
      %v691 = vld [vmem:[%s654 + $0x31] sm:$0xff]
      %v692 = vld [vmem:[%s654 + $0x39] sm:$0xff]
      %v693 = vld [vmem:[%s654 + $0x49] sm:$0xff]
      %v694 = vld [vmem:[%s654 + $0x51] sm:$0xff]
      %v695 = vld [vmem:[%s654 + $0x61] sm:$0xff]
      %v696 = vld [vmem:[%s654 + $0x69] sm:$0xff]
      %v697 = vld [vmem:[%s654 + $0x79] sm:$0xff]
      %v698 = vld [vmem:[%s654 + $0x81] sm:$0xff]
      %v699 = vld [vmem:[%s654 + $0x91] sm:$0xff]
      %v700 = vld [vmem:[%s654 + $0x99] sm:$0xff]
      %v701 = vld [vmem:[%s654 + $0xa9] sm:$0xff]
      %v702 = vld [vmem:[%s654 + $0xb1] sm:$0xff]
      %v703 = vld [vmem:[%s654 + $0xc1] sm:$0xff]
      %v704 = vld [vmem:[%s654 + $0xc9] sm:$0xff]
      %v705 = vld [vmem:[%s654 + $0xd9] sm:$0xff]
      %v706 = vld [vmem:[%s654 + $0xe1] sm:$0xff]
      %v707 = vld [vmem:[%s654 + $0xf1] sm:$0xff]
      %v708 = vld [vmem:[%s654 + $0xf9] sm:$0xff]
      %v709 = vld [vmem:[%s654 + $0x109] sm:$0xff]
      %v710 = vld [vmem:[%s654 + $0x111] sm:$0xff]
      %v711 = vld [vmem:[%s654 + $0x121] sm:$0xff]
      %v712 = vld [vmem:[%s654 + $0x129] sm:$0xff]
      %v713 = vld [vmem:[%s654 + $0x139] sm:$0xff]
      %v714 = vld [vmem:[%s654 + $0x141] sm:$0xff]
      %v715 = vld [vmem:[%s654 + $0x151] sm:$0xff]
      %v716 = vld [vmem:[%s654 + $0x159] sm:$0xff]
      %v717 = vld [vmem:[%s654 + $0x169] sm:$0xff]
      %v718 = vld [vmem:[%s654 + $0x171] sm:$0xff]
      %v719 = vld [vmem:[%s654 + $0x2] sm:$0xff]
      %v720 = vld [vmem:[%s654 + $0xa] sm:$0xff]
      %v721 = vld [vmem:[%s654 + $0x1a] sm:$0xff]
      %v722 = vld [vmem:[%s654 + $0x22] sm:$0xff]
      %v723 = vld [vmem:[%s654 + $0x32] sm:$0xff]
      %v724 = vld [vmem:[%s654 + $0x3a] sm:$0xff]
      %v725 = vld [vmem:[%s654 + $0x4a] sm:$0xff]
      %v726 = vld [vmem:[%s654 + $0x52] sm:$0xff]
      %v727 = vld [vmem:[%s654 + $0x62] sm:$0xff]
      %v728 = vld [vmem:[%s654 + $0x6a] sm:$0xff]
      %v729 = vld [vmem:[%s654 + $0x7a] sm:$0xff]
      %v730 = vld [vmem:[%s654 + $0x82] sm:$0xff]
      %v731 = vld [vmem:[%s654 + $0x92] sm:$0xff]
      %v732 = vld [vmem:[%s654 + $0x9a] sm:$0xff]
      %v733 = vld [vmem:[%s654 + $0xaa] sm:$0xff]
      %v734 = vld [vmem:[%s654 + $0xb2] sm:$0xff]
      %v735 = vld [vmem:[%s654 + $0xc2] sm:$0xff]
      %v736 = vld [vmem:[%s654 + $0xca] sm:$0xff]
      %v737 = vld [vmem:[%s654 + $0xda] sm:$0xff]
      %v738 = vld [vmem:[%s654 + $0xe2] sm:$0xff]
      %v739 = vld [vmem:[%s654 + $0xf2] sm:$0xff]
      %v740 = vld [vmem:[%s654 + $0xfa] sm:$0xff]
      %v741 = vld [vmem:[%s654 + $0x10a] sm:$0xff]
      %v742 = vld [vmem:[%s654 + $0x112] sm:$0xff]
      %v743 = vld [vmem:[%s654 + $0x122] sm:$0xff]
      %v744 = vld [vmem:[%s654 + $0x12a] sm:$0xff]
      %v745 = vld [vmem:[%s654 + $0x13a] sm:$0xff]
      %v746 = vld [vmem:[%s654 + $0x142] sm:$0xff]
      %v747 = vld [vmem:[%s654 + $0x152] sm:$0xff]
      %v748 = vld [vmem:[%s654 + $0x15a] sm:$0xff]
      %v749 = vld [vmem:[%s654 + $0x16a] sm:$0xff]
      %v750 = vld [vmem:[%s654 + $0x172] sm:$0xff]
      %783 = vrot.lane.b32.xlu0 %v494, 8
      %v784 = vpop.permute.xlu0 %783
      %785 = vrot.lane.b32.xlu0 %v495, 8
      %v786 = vpop.permute.xlu0 %785
      %787 = vrot.lane.b32.xlu0 %v496, 8
      %v788 = vpop.permute.xlu0 %787
      %789 = vrot.lane.b32.xlu0 %v497, 8
      %v790 = vpop.permute.xlu0 %789
      %791 = vrot.lane.b32.xlu0 %v498, 8
      %v792 = vpop.permute.xlu0 %791
      %793 = vrot.lane.b32.xlu0 %v499, 8
      %v794 = vpop.permute.xlu0 %793
      %795 = vrot.lane.b32.xlu0 %v500, 8
      %v796 = vpop.permute.xlu0 %795
      %797 = vrot.lane.b32.xlu0 %v501, 8
      %v798 = vpop.permute.xlu0 %797
      %799 = vrot.lane.b32.xlu0 %v502, 8
      %v800 = vpop.permute.xlu0 %799
      %801 = vrot.lane.b32.xlu0 %v503, 8
      %v802 = vpop.permute.xlu0 %801
      %803 = vrot.lane.b32.xlu0 %v504, 8
      %v804 = vpop.permute.xlu0 %803
      %805 = vrot.lane.b32.xlu0 %v505, 8
      %v806 = vpop.permute.xlu0 %805
      %807 = vrot.lane.b32.xlu0 %v506, 8
      %v808 = vpop.permute.xlu0 %807
      %809 = vrot.lane.b32.xlu0 %v507, 8
      %v810 = vpop.permute.xlu0 %809
      %811 = vrot.lane.b32.xlu0 %v508, 8
      %v812 = vpop.permute.xlu0 %811
      %813 = vrot.lane.b32.xlu0 %v509, 8
      %v814 = vpop.permute.xlu0 %813
      %815 = vrot.lane.b32.xlu0 %v510, 8
      %v816 = vpop.permute.xlu0 %815
      %817 = vrot.lane.b32.xlu0 %v511, 8
      %v818 = vpop.permute.xlu0 %817
      %819 = vrot.lane.b32.xlu0 %v512, 8
      %v820 = vpop.permute.xlu0 %819
      %821 = vrot.lane.b32.xlu0 %v513, 8
      %v822 = vpop.permute.xlu0 %821
      %823 = vrot.lane.b32.xlu0 %v514, 8
      %v824 = vpop.permute.xlu0 %823
      %825 = vrot.lane.b32.xlu0 %v515, 8
      %v826 = vpop.permute.xlu0 %825
      %827 = vrot.lane.b32.xlu0 %v516, 8
      %v828 = vpop.permute.xlu0 %827
      %829 = vrot.lane.b32.xlu0 %v517, 8
      %v830 = vpop.permute.xlu0 %829
      %831 = vrot.lane.b32.xlu0 %v518, 8
      %v832 = vpop.permute.xlu0 %831
      %833 = vrot.lane.b32.xlu0 %v519, 8
      %v834 = vpop.permute.xlu0 %833
      %835 = vrot.lane.b32.xlu0 %v520, 8
      %v836 = vpop.permute.xlu0 %835
      %837 = vrot.lane.b32.xlu0 %v521, 8
      %v838 = vpop.permute.xlu0 %837
      %839 = vrot.lane.b32.xlu0 %v522, 8
      %v840 = vpop.permute.xlu0 %839
      %841 = vrot.lane.b32.xlu0 %v523, 8
      %v842 = vpop.permute.xlu0 %841
      %843 = vrot.lane.b32.xlu0 %v524, 8
      %v844 = vpop.permute.xlu0 %843
      %845 = vrot.lane.b32.xlu0 %v525, 8
      %v846 = vpop.permute.xlu0 %845
      %911 = vrot.lane.b32.xlu0 %v526, 16
      %v912 = vpop.permute.xlu0 %911
      %913 = vrot.lane.b32.xlu0 %v527, 16
      %v914 = vpop.permute.xlu0 %913
      %915 = vrot.lane.b32.xlu0 %v528, 16
      %v916 = vpop.permute.xlu0 %915
      %917 = vrot.lane.b32.xlu0 %v529, 16
      %v918 = vpop.permute.xlu0 %917
      %919 = vrot.lane.b32.xlu0 %v530, 16
      %v920 = vpop.permute.xlu0 %919
      %921 = vrot.lane.b32.xlu0 %v531, 16
      %v922 = vpop.permute.xlu0 %921
      %923 = vrot.lane.b32.xlu0 %v532, 16
      %v924 = vpop.permute.xlu0 %923
      %925 = vrot.lane.b32.xlu0 %v533, 16
      %v926 = vpop.permute.xlu0 %925
      %927 = vrot.lane.b32.xlu0 %v534, 16
      %v928 = vpop.permute.xlu0 %927
      %929 = vrot.lane.b32.xlu0 %v535, 16
      %v930 = vpop.permute.xlu0 %929
      %931 = vrot.lane.b32.xlu0 %v536, 16
      %v932 = vpop.permute.xlu0 %931
      %933 = vrot.lane.b32.xlu0 %v537, 16
      %v934 = vpop.permute.xlu0 %933
      %935 = vrot.lane.b32.xlu0 %v538, 16
      %v936 = vpop.permute.xlu0 %935
      %937 = vrot.lane.b32.xlu0 %v539, 16
      %v938 = vpop.permute.xlu0 %937
      %939 = vrot.lane.b32.xlu0 %v540, 16
      %v940 = vpop.permute.xlu0 %939
      %941 = vrot.lane.b32.xlu0 %v541, 16
      %v942 = vpop.permute.xlu0 %941
      %943 = vrot.lane.b32.xlu0 %v542, 16
      %v944 = vpop.permute.xlu0 %943
      %945 = vrot.lane.b32.xlu0 %v543, 16
      %v946 = vpop.permute.xlu0 %945
      %947 = vrot.lane.b32.xlu0 %v544, 16
      %v948 = vpop.permute.xlu0 %947
      %949 = vrot.lane.b32.xlu0 %v545, 16
      %v950 = vpop.permute.xlu0 %949
      %951 = vrot.lane.b32.xlu0 %v546, 16
      %v952 = vpop.permute.xlu0 %951
      %953 = vrot.lane.b32.xlu0 %v547, 16
      %v954 = vpop.permute.xlu0 %953
      %955 = vrot.lane.b32.xlu0 %v548, 16
      %v956 = vpop.permute.xlu0 %955
      %957 = vrot.lane.b32.xlu0 %v549, 16
      %v958 = vpop.permute.xlu0 %957
      %959 = vrot.lane.b32.xlu0 %v550, 16
      %v960 = vpop.permute.xlu0 %959
      %961 = vrot.lane.b32.xlu0 %v551, 16
      %v962 = vpop.permute.xlu0 %961
      %963 = vrot.lane.b32.xlu0 %v552, 16
      %v964 = vpop.permute.xlu0 %963
      %965 = vrot.lane.b32.xlu0 %v553, 16
      %v966 = vpop.permute.xlu0 %965
      %967 = vrot.lane.b32.xlu0 %v554, 16
      %v968 = vpop.permute.xlu0 %967
      %969 = vrot.lane.b32.xlu0 %v555, 16
      %v970 = vpop.permute.xlu0 %969
      %971 = vrot.lane.b32.xlu0 %v556, 16
      %v972 = vpop.permute.xlu0 %971
      %973 = vrot.lane.b32.xlu0 %v557, 16
      %v974 = vpop.permute.xlu0 %973
      %1039 = vrot.lane.b32.xlu0 %v558, 24
      %v1040 = vpop.permute.xlu0 %1039
      %1041 = vrot.lane.b32.xlu0 %v559, 24
      %v1042 = vpop.permute.xlu0 %1041
      %1043 = vrot.lane.b32.xlu0 %v560, 24
      %v1044 = vpop.permute.xlu0 %1043
      %1045 = vrot.lane.b32.xlu0 %v561, 24
      %v1046 = vpop.permute.xlu0 %1045
      %1047 = vrot.lane.b32.xlu0 %v562, 24
      %v1048 = vpop.permute.xlu0 %1047
      %1049 = vrot.lane.b32.xlu0 %v563, 24
      %v1050 = vpop.permute.xlu0 %1049
      %1051 = vrot.lane.b32.xlu0 %v564, 24
      %v1052 = vpop.permute.xlu0 %1051
      %1053 = vrot.lane.b32.xlu0 %v565, 24
      %v1054 = vpop.permute.xlu0 %1053
      %1055 = vrot.lane.b32.xlu0 %v566, 24
      %v1056 = vpop.permute.xlu0 %1055
      %1057 = vrot.lane.b32.xlu0 %v567, 24
      %v1058 = vpop.permute.xlu0 %1057
      %1059 = vrot.lane.b32.xlu0 %v568, 24
      %v1060 = vpop.permute.xlu0 %1059
      %1061 = vrot.lane.b32.xlu0 %v569, 24
      %v1062 = vpop.permute.xlu0 %1061
      %1063 = vrot.lane.b32.xlu0 %v570, 24
      %v1064 = vpop.permute.xlu0 %1063
      %1065 = vrot.lane.b32.xlu0 %v571, 24
      %v1066 = vpop.permute.xlu0 %1065
      %1067 = vrot.lane.b32.xlu0 %v572, 24
      %v1068 = vpop.permute.xlu0 %1067
      %1069 = vrot.lane.b32.xlu0 %v573, 24
      %v1070 = vpop.permute.xlu0 %1069
      %1071 = vrot.lane.b32.xlu0 %v574, 24
      %v1072 = vpop.permute.xlu0 %1071
      %1073 = vrot.lane.b32.xlu0 %v575, 24
      %v1074 = vpop.permute.xlu0 %1073
      %1075 = vrot.lane.b32.xlu0 %v576, 24
      %v1076 = vpop.permute.xlu0 %1075
      %1077 = vrot.lane.b32.xlu0 %v577, 24
      %v1078 = vpop.permute.xlu0 %1077
      %1079 = vrot.lane.b32.xlu0 %v578, 24
      %v1080 = vpop.permute.xlu0 %1079
      %1081 = vrot.lane.b32.xlu0 %v579, 24
      %v1082 = vpop.permute.xlu0 %1081
      %1083 = vrot.lane.b32.xlu0 %v580, 24
      %v1084 = vpop.permute.xlu0 %1083
      %1085 = vrot.lane.b32.xlu0 %v581, 24
      %v1086 = vpop.permute.xlu0 %1085
      %1087 = vrot.lane.b32.xlu0 %v582, 24
      %v1088 = vpop.permute.xlu0 %1087
      %1089 = vrot.lane.b32.xlu0 %v583, 24
      %v1090 = vpop.permute.xlu0 %1089
      %1091 = vrot.lane.b32.xlu0 %v584, 24
      %v1092 = vpop.permute.xlu0 %1091
      %1093 = vrot.lane.b32.xlu0 %v585, 24
      %v1094 = vpop.permute.xlu0 %1093
      %1095 = vrot.lane.b32.xlu0 %v586, 24
      %v1096 = vpop.permute.xlu0 %1095
      %1097 = vrot.lane.b32.xlu0 %v587, 24
      %v1098 = vpop.permute.xlu0 %1097
      %1099 = vrot.lane.b32.xlu0 %v588, 24
      %v1100 = vpop.permute.xlu0 %1099
      %1101 = vrot.lane.b32.xlu0 %v589, 24
      %v1102 = vpop.permute.xlu0 %1101
      %1167 = vrot.lane.b32.xlu0 %v590, 32
      %v1168 = vpop.permute.xlu0 %1167
      %1169 = vrot.lane.b32.xlu0 %v591, 32
      %v1170 = vpop.permute.xlu0 %1169
      %1171 = vrot.lane.b32.xlu0 %v592, 32
      %v1172 = vpop.permute.xlu0 %1171
      %1173 = vrot.lane.b32.xlu0 %v593, 32
      %v1174 = vpop.permute.xlu0 %1173
      %1175 = vrot.lane.b32.xlu0 %v594, 32
      %v1176 = vpop.permute.xlu0 %1175
      %1177 = vrot.lane.b32.xlu0 %v595, 32
      %v1178 = vpop.permute.xlu0 %1177
      %1179 = vrot.lane.b32.xlu0 %v596, 32
      %v1180 = vpop.permute.xlu0 %1179
      %1181 = vrot.lane.b32.xlu0 %v597, 32
      %v1182 = vpop.permute.xlu0 %1181
      %1183 = vrot.lane.b32.xlu0 %v598, 32
      %v1184 = vpop.permute.xlu0 %1183
      %1185 = vrot.lane.b32.xlu0 %v599, 32
      %v1186 = vpop.permute.xlu0 %1185
      %1187 = vrot.lane.b32.xlu0 %v600, 32
      %v1188 = vpop.permute.xlu0 %1187
      %1189 = vrot.lane.b32.xlu0 %v601, 32
      %v1190 = vpop.permute.xlu0 %1189
      %1191 = vrot.lane.b32.xlu0 %v602, 32
      %v1192 = vpop.permute.xlu0 %1191
      %1193 = vrot.lane.b32.xlu0 %v603, 32
      %v1194 = vpop.permute.xlu0 %1193
      %1195 = vrot.lane.b32.xlu0 %v604, 32
      %v1196 = vpop.permute.xlu0 %1195
      %1197 = vrot.lane.b32.xlu0 %v605, 32
      %v1198 = vpop.permute.xlu0 %1197
      %1199 = vrot.lane.b32.xlu0 %v606, 32
      %v1200 = vpop.permute.xlu0 %1199
      %1201 = vrot.lane.b32.xlu0 %v607, 32
      %v1202 = vpop.permute.xlu0 %1201
      %1203 = vrot.lane.b32.xlu0 %v608, 32
      %v1204 = vpop.permute.xlu0 %1203
      %1205 = vrot.lane.b32.xlu0 %v609, 32
      %v1206 = vpop.permute.xlu0 %1205
      %1207 = vrot.lane.b32.xlu0 %v610, 32
      %v1208 = vpop.permute.xlu0 %1207
      %1209 = vrot.lane.b32.xlu0 %v611, 32
      %v1210 = vpop.permute.xlu0 %1209
      %1211 = vrot.lane.b32.xlu0 %v612, 32
      %v1212 = vpop.permute.xlu0 %1211
      %1213 = vrot.lane.b32.xlu0 %v613, 32
      %v1214 = vpop.permute.xlu0 %1213
      %1215 = vrot.lane.b32.xlu0 %v614, 32
      %v1216 = vpop.permute.xlu0 %1215
      %1217 = vrot.lane.b32.xlu0 %v615, 32
      %v1218 = vpop.permute.xlu0 %1217
      %1219 = vrot.lane.b32.xlu0 %v616, 32
      %v1220 = vpop.permute.xlu0 %1219
      %1221 = vrot.lane.b32.xlu0 %v617, 32
      %v1222 = vpop.permute.xlu0 %1221
      %1223 = vrot.lane.b32.xlu0 %v618, 32
      %v1224 = vpop.permute.xlu0 %1223
      %1225 = vrot.lane.b32.xlu0 %v619, 32
      %v1226 = vpop.permute.xlu0 %1225
      %1227 = vrot.lane.b32.xlu0 %v620, 32
      %v1228 = vpop.permute.xlu0 %1227
      %1229 = vrot.lane.b32.xlu0 %v621, 32
      %v1230 = vpop.permute.xlu0 %1229
      %1295 = vrot.lane.b32.xlu0 %v622, 40
      %v1296 = vpop.permute.xlu0 %1295
      %1297 = vrot.lane.b32.xlu0 %v623, 40
      %v1298 = vpop.permute.xlu0 %1297
      %1299 = vrot.lane.b32.xlu0 %v624, 40
      %v1300 = vpop.permute.xlu0 %1299
      %1301 = vrot.lane.b32.xlu0 %v625, 40
      %v1302 = vpop.permute.xlu0 %1301
      %1303 = vrot.lane.b32.xlu0 %v626, 40
      %v1304 = vpop.permute.xlu0 %1303
      %1305 = vrot.lane.b32.xlu0 %v627, 40
      %v1306 = vpop.permute.xlu0 %1305
      %1307 = vrot.lane.b32.xlu0 %v628, 40
      %v1308 = vpop.permute.xlu0 %1307
      %1309 = vrot.lane.b32.xlu0 %v629, 40
      %v1310 = vpop.permute.xlu0 %1309
      %1311 = vrot.lane.b32.xlu0 %v630, 40
      %v1312 = vpop.permute.xlu0 %1311
      %1313 = vrot.lane.b32.xlu0 %v631, 40
      %v1314 = vpop.permute.xlu0 %1313
      %1315 = vrot.lane.b32.xlu0 %v632, 40
      %v1316 = vpop.permute.xlu0 %1315
      %1317 = vrot.lane.b32.xlu0 %v633, 40
      %v1318 = vpop.permute.xlu0 %1317
      %1319 = vrot.lane.b32.xlu0 %v634, 40
      %v1320 = vpop.permute.xlu0 %1319
      %1321 = vrot.lane.b32.xlu0 %v635, 40
      %v1322 = vpop.permute.xlu0 %1321
      %1323 = vrot.lane.b32.xlu0 %v636, 40
      %v1324 = vpop.permute.xlu0 %1323
      %1325 = vrot.lane.b32.xlu0 %v637, 40
      %v1326 = vpop.permute.xlu0 %1325
      %1327 = vrot.lane.b32.xlu0 %v638, 40
      %v1328 = vpop.permute.xlu0 %1327
      %1329 = vrot.lane.b32.xlu0 %v639, 40
      %v1330 = vpop.permute.xlu0 %1329
      %1331 = vrot.lane.b32.xlu0 %v640, 40
      %v1332 = vpop.permute.xlu0 %1331
      %1333 = vrot.lane.b32.xlu0 %v641, 40
      %v1334 = vpop.permute.xlu0 %1333
      %1335 = vrot.lane.b32.xlu0 %v642, 40
      %v1336 = vpop.permute.xlu0 %1335
      %1337 = vrot.lane.b32.xlu0 %v643, 40
      %v1338 = vpop.permute.xlu0 %1337
      %1339 = vrot.lane.b32.xlu0 %v644, 40
      %v1340 = vpop.permute.xlu0 %1339
      %1341 = vrot.lane.b32.xlu0 %v645, 40
      %v1342 = vpop.permute.xlu0 %1341
      %1343 = vrot.lane.b32.xlu0 %v646, 40
      %v1344 = vpop.permute.xlu0 %1343
      %1345 = vrot.lane.b32.xlu0 %v647, 40
      %v1346 = vpop.permute.xlu0 %1345
      %1347 = vrot.lane.b32.xlu0 %v648, 40
      %v1348 = vpop.permute.xlu0 %1347
      %1349 = vrot.lane.b32.xlu0 %v649, 40
      %v1350 = vpop.permute.xlu0 %1349
      %1351 = vrot.lane.b32.xlu0 %v650, 40
      %v1352 = vpop.permute.xlu0 %1351
      %1353 = vrot.lane.b32.xlu0 %v651, 40
      %v1354 = vpop.permute.xlu0 %1353
      %1355 = vrot.lane.b32.xlu0 %v652, 40
      %v1356 = vpop.permute.xlu0 %1355
      %1357 = vrot.lane.b32.xlu0 %v653, 40
      %v1358 = vpop.permute.xlu0 %1357
      %1423 = vrot.lane.b32.xlu0 %v655, 48
      %v1424 = vpop.permute.xlu0 %1423
      %1425 = vrot.lane.b32.xlu0 %v656, 48
      %v1426 = vpop.permute.xlu0 %1425
      %1427 = vrot.lane.b32.xlu0 %v657, 48
      %v1428 = vpop.permute.xlu0 %1427
      %1429 = vrot.lane.b32.xlu0 %v658, 48
      %v1430 = vpop.permute.xlu0 %1429
      %1431 = vrot.lane.b32.xlu0 %v659, 48
      %v1432 = vpop.permute.xlu0 %1431
      %1433 = vrot.lane.b32.xlu0 %v660, 48
      %v1434 = vpop.permute.xlu0 %1433
      %1435 = vrot.lane.b32.xlu0 %v661, 48
      %v1436 = vpop.permute.xlu0 %1435
      %1437 = vrot.lane.b32.xlu0 %v662, 48
      %v1438 = vpop.permute.xlu0 %1437
      %1439 = vrot.lane.b32.xlu0 %v663, 48
      %v1440 = vpop.permute.xlu0 %1439
      %1441 = vrot.lane.b32.xlu0 %v664, 48
      %v1442 = vpop.permute.xlu0 %1441
      %1443 = vrot.lane.b32.xlu0 %v665, 48
      %v1444 = vpop.permute.xlu0 %1443
      %1445 = vrot.lane.b32.xlu0 %v666, 48
      %v1446 = vpop.permute.xlu0 %1445
      %1447 = vrot.lane.b32.xlu0 %v667, 48
      %v1448 = vpop.permute.xlu0 %1447
      %1449 = vrot.lane.b32.xlu0 %v668, 48
      %v1450 = vpop.permute.xlu0 %1449
      %1451 = vrot.lane.b32.xlu0 %v669, 48
      %v1452 = vpop.permute.xlu0 %1451
      %1453 = vrot.lane.b32.xlu0 %v670, 48
      %v1454 = vpop.permute.xlu0 %1453
      %1455 = vrot.lane.b32.xlu0 %v671, 48
      %v1456 = vpop.permute.xlu0 %1455
      %1457 = vrot.lane.b32.xlu0 %v672, 48
      %v1458 = vpop.permute.xlu0 %1457
      %1459 = vrot.lane.b32.xlu0 %v673, 48
      %v1460 = vpop.permute.xlu0 %1459
      %1461 = vrot.lane.b32.xlu0 %v674, 48
      %v1462 = vpop.permute.xlu0 %1461
      %1463 = vrot.lane.b32.xlu0 %v675, 48
      %v1464 = vpop.permute.xlu0 %1463
      %1465 = vrot.lane.b32.xlu0 %v676, 48
      %v1466 = vpop.permute.xlu0 %1465
      %1467 = vrot.lane.b32.xlu0 %v677, 48
      %v1468 = vpop.permute.xlu0 %1467
      %1469 = vrot.lane.b32.xlu0 %v678, 48
      %v1470 = vpop.permute.xlu0 %1469
      %1471 = vrot.lane.b32.xlu0 %v679, 48
      %v1472 = vpop.permute.xlu0 %1471
      %1473 = vrot.lane.b32.xlu0 %v680, 48
      %v1474 = vpop.permute.xlu0 %1473
      %1475 = vrot.lane.b32.xlu0 %v681, 48
      %v1476 = vpop.permute.xlu0 %1475
      %1477 = vrot.lane.b32.xlu0 %v682, 48
      %v1478 = vpop.permute.xlu0 %1477
      %1479 = vrot.lane.b32.xlu0 %v683, 48
      %v1480 = vpop.permute.xlu0 %1479
      %1481 = vrot.lane.b32.xlu0 %v684, 48
      %v1482 = vpop.permute.xlu0 %1481
      %1483 = vrot.lane.b32.xlu0 %v685, 48
      %v1484 = vpop.permute.xlu0 %1483
      %1485 = vrot.lane.b32.xlu0 %v686, 48
      %v1486 = vpop.permute.xlu0 %1485
      %1551 = vrot.lane.b32.xlu0 %v687, 56
      %v1552 = vpop.permute.xlu0 %1551
      %1553 = vrot.lane.b32.xlu0 %v688, 56
      %v1554 = vpop.permute.xlu0 %1553
      %1555 = vrot.lane.b32.xlu0 %v689, 56
      %v1556 = vpop.permute.xlu0 %1555
      %1557 = vrot.lane.b32.xlu0 %v690, 56
      %v1558 = vpop.permute.xlu0 %1557
      %1559 = vrot.lane.b32.xlu0 %v691, 56
      %v1560 = vpop.permute.xlu0 %1559
      %1561 = vrot.lane.b32.xlu0 %v692, 56
      %v1562 = vpop.permute.xlu0 %1561
      %1563 = vrot.lane.b32.xlu0 %v693, 56
      %v1564 = vpop.permute.xlu0 %1563
      %1565 = vrot.lane.b32.xlu0 %v694, 56
      %v1566 = vpop.permute.xlu0 %1565
      %1567 = vrot.lane.b32.xlu0 %v695, 56
      %v1568 = vpop.permute.xlu0 %1567
      %1569 = vrot.lane.b32.xlu0 %v696, 56
      %v1570 = vpop.permute.xlu0 %1569
      %1571 = vrot.lane.b32.xlu0 %v697, 56
      %v1572 = vpop.permute.xlu0 %1571
      %1573 = vrot.lane.b32.xlu0 %v698, 56
      %v1574 = vpop.permute.xlu0 %1573
      %1575 = vrot.lane.b32.xlu0 %v699, 56
      %v1576 = vpop.permute.xlu0 %1575
      %1577 = vrot.lane.b32.xlu0 %v700, 56
      %v1578 = vpop.permute.xlu0 %1577
      %1579 = vrot.lane.b32.xlu0 %v701, 56
      %v1580 = vpop.permute.xlu0 %1579
      %1581 = vrot.lane.b32.xlu0 %v702, 56
      %v1582 = vpop.permute.xlu0 %1581
      %1583 = vrot.lane.b32.xlu0 %v703, 56
      %v1584 = vpop.permute.xlu0 %1583
      %1585 = vrot.lane.b32.xlu0 %v704, 56
      %v1586 = vpop.permute.xlu0 %1585
      %1587 = vrot.lane.b32.xlu0 %v705, 56
      %v1588 = vpop.permute.xlu0 %1587
      %1589 = vrot.lane.b32.xlu0 %v706, 56
      %v1590 = vpop.permute.xlu0 %1589
      %1591 = vrot.lane.b32.xlu0 %v707, 56
      %v1592 = vpop.permute.xlu0 %1591
      %1593 = vrot.lane.b32.xlu0 %v708, 56
      %v1594 = vpop.permute.xlu0 %1593
      %1595 = vrot.lane.b32.xlu0 %v709, 56
      %v1596 = vpop.permute.xlu0 %1595
      %1597 = vrot.lane.b32.xlu0 %v710, 56
      %v1598 = vpop.permute.xlu0 %1597
      %1599 = vrot.lane.b32.xlu0 %v711, 56
      %v1600 = vpop.permute.xlu0 %1599
      %1601 = vrot.lane.b32.xlu0 %v712, 56
      %v1602 = vpop.permute.xlu0 %1601
      %1603 = vrot.lane.b32.xlu0 %v713, 56
      %v1604 = vpop.permute.xlu0 %1603
      %1605 = vrot.lane.b32.xlu0 %v714, 56
      %v1606 = vpop.permute.xlu0 %1605
      %1607 = vrot.lane.b32.xlu0 %v715, 56
      %v1608 = vpop.permute.xlu0 %1607
      %1609 = vrot.lane.b32.xlu0 %v716, 56
      %v1610 = vpop.permute.xlu0 %1609
      %1611 = vrot.lane.b32.xlu0 %v717, 56
      %v1612 = vpop.permute.xlu0 %1611
      %1613 = vrot.lane.b32.xlu0 %v718, 56
      %v1614 = vpop.permute.xlu0 %1613
      %1679 = vrot.lane.b32.xlu0 %v719, 64
      %v1680 = vpop.permute.xlu0 %1679
      %1681 = vrot.lane.b32.xlu0 %v720, 64
      %v1682 = vpop.permute.xlu0 %1681
      %1683 = vrot.lane.b32.xlu0 %v721, 64
      %v1684 = vpop.permute.xlu0 %1683
      %1685 = vrot.lane.b32.xlu0 %v722, 64
      %v1686 = vpop.permute.xlu0 %1685
      %1687 = vrot.lane.b32.xlu0 %v723, 64
      %v1688 = vpop.permute.xlu0 %1687
      %1689 = vrot.lane.b32.xlu0 %v724, 64
      %v1690 = vpop.permute.xlu0 %1689
      %1691 = vrot.lane.b32.xlu0 %v725, 64
      %v1692 = vpop.permute.xlu0 %1691
      %1693 = vrot.lane.b32.xlu0 %v726, 64
      %v1694 = vpop.permute.xlu0 %1693
      %1695 = vrot.lane.b32.xlu0 %v727, 64
      %v1696 = vpop.permute.xlu0 %1695
      %1697 = vrot.lane.b32.xlu0 %v728, 64
      %v1698 = vpop.permute.xlu0 %1697
      %1699 = vrot.lane.b32.xlu0 %v729, 64
      %v1700 = vpop.permute.xlu0 %1699
      %1701 = vrot.lane.b32.xlu0 %v730, 64
      %v1702 = vpop.permute.xlu0 %1701
      %1703 = vrot.lane.b32.xlu0 %v731, 64
      %v1704 = vpop.permute.xlu0 %1703
      %1705 = vrot.lane.b32.xlu0 %v732, 64
      %v1706 = vpop.permute.xlu0 %1705
      %1707 = vrot.lane.b32.xlu0 %v733, 64
      %v1708 = vpop.permute.xlu0 %1707
      %1709 = vrot.lane.b32.xlu0 %v734, 64
      %v1710 = vpop.permute.xlu0 %1709
      %1711 = vrot.lane.b32.xlu0 %v735, 64
      %v1712 = vpop.permute.xlu0 %1711
      %1713 = vrot.lane.b32.xlu0 %v736, 64
      %v1714 = vpop.permute.xlu0 %1713
      %1715 = vrot.lane.b32.xlu0 %v737, 64
      %v1716 = vpop.permute.xlu0 %1715
      %1717 = vrot.lane.b32.xlu0 %v738, 64
      %v1718 = vpop.permute.xlu0 %1717
      %1719 = vrot.lane.b32.xlu0 %v739, 64
      %v1720 = vpop.permute.xlu0 %1719
      %1721 = vrot.lane.b32.xlu0 %v740, 64
      %v1722 = vpop.permute.xlu0 %1721
      %1723 = vrot.lane.b32.xlu0 %v741, 64
      %v1724 = vpop.permute.xlu0 %1723
      %1725 = vrot.lane.b32.xlu0 %v742, 64
      %v1726 = vpop.permute.xlu0 %1725
      %1727 = vrot.lane.b32.xlu0 %v743, 64
      %v1728 = vpop.permute.xlu0 %1727
      %1729 = vrot.lane.b32.xlu0 %v744, 64
      %v1730 = vpop.permute.xlu0 %1729
      %1731 = vrot.lane.b32.xlu0 %v745, 64
      %v1732 = vpop.permute.xlu0 %1731
      %1733 = vrot.lane.b32.xlu0 %v746, 64
      %v1734 = vpop.permute.xlu0 %1733
      %1735 = vrot.lane.b32.xlu0 %v747, 64
      %v1736 = vpop.permute.xlu0 %1735
      %1737 = vrot.lane.b32.xlu0 %v748, 64
      %v1738 = vpop.permute.xlu0 %1737
      %1739 = vrot.lane.b32.xlu0 %v749, 64
      %v1740 = vpop.permute.xlu0 %1739
      %1741 = vrot.lane.b32.xlu0 %v750, 64
      %v1742 = vpop.permute.xlu0 %1741
      %v1775 = vsel %vm387, %v462, %v784
      %v1776 = vsel %vm387, %v463, %v786
      %v1777 = vsel %vm387, %v464, %v788
      %v1778 = vsel %vm387, %v465, %v790
      %v1779 = vsel %vm387, %v466, %v792
      %v1780 = vsel %vm387, %v467, %v794
      %v1781 = vsel %vm387, %v468, %v796
      %v1782 = vsel %vm387, %v469, %v798
      %v1783 = vsel %vm387, %v470, %v800
      %v1784 = vsel %vm387, %v471, %v802
      %v1785 = vsel %vm387, %v472, %v804
      %v1786 = vsel %vm387, %v473, %v806
      %v1787 = vsel %vm387, %v474, %v808
      %v1788 = vsel %vm387, %v475, %v810
      %v1789 = vsel %vm387, %v476, %v812
      %v1790 = vsel %vm387, %v477, %v814
      %v1791 = vsel %vm387, %v478, %v816
      %v1792 = vsel %vm387, %v479, %v818
      %v1793 = vsel %vm387, %v480, %v820
      %v1794 = vsel %vm387, %v481, %v822
      %v1795 = vsel %vm387, %v482, %v824
      %v1796 = vsel %vm387, %v483, %v826
      %v1797 = vsel %vm387, %v484, %v828
      %v1798 = vsel %vm387, %v485, %v830
      %v1799 = vsel %vm387, %v486, %v832
      %v1800 = vsel %vm387, %v487, %v834
      %v1801 = vsel %vm387, %v488, %v836
      %v1802 = vsel %vm387, %v489, %v838
      %v1803 = vsel %vm387, %v490, %v840
      %v1804 = vsel %vm387, %v491, %v842
      %v1805 = vsel %vm387, %v492, %v844
      %v1806 = vsel %vm387, %v493, %v846
      %vm1807 = vcmask 130048
      %v1808 = vsel %vm1807, %v1775, %v912
      %v1809 = vsel %vm1807, %v1776, %v914
      %v1810 = vsel %vm1807, %v1777, %v916
      %v1811 = vsel %vm1807, %v1778, %v918
      %v1812 = vsel %vm1807, %v1779, %v920
      %v1813 = vsel %vm1807, %v1780, %v922
      %v1814 = vsel %vm1807, %v1781, %v924
      %v1815 = vsel %vm1807, %v1782, %v926
      %v1816 = vsel %vm1807, %v1783, %v928
      %v1817 = vsel %vm1807, %v1784, %v930
      %v1818 = vsel %vm1807, %v1785, %v932
      %v1819 = vsel %vm1807, %v1786, %v934
      %v1820 = vsel %vm1807, %v1787, %v936
      %v1821 = vsel %vm1807, %v1788, %v938
      %v1822 = vsel %vm1807, %v1789, %v940
      %v1823 = vsel %vm1807, %v1790, %v942
      %v1824 = vsel %vm1807, %v1791, %v944
      %v1825 = vsel %vm1807, %v1792, %v946
      %v1826 = vsel %vm1807, %v1793, %v948
      %v1827 = vsel %vm1807, %v1794, %v950
      %v1828 = vsel %vm1807, %v1795, %v952
      %v1829 = vsel %vm1807, %v1796, %v954
      %v1830 = vsel %vm1807, %v1797, %v956
      %v1831 = vsel %vm1807, %v1798, %v958
      %v1832 = vsel %vm1807, %v1799, %v960
      %v1833 = vsel %vm1807, %v1800, %v962
      %v1834 = vsel %vm1807, %v1801, %v964
      %v1835 = vsel %vm1807, %v1802, %v966
      %v1836 = vsel %vm1807, %v1803, %v968
      %v1837 = vsel %vm1807, %v1804, %v970
      %v1838 = vsel %vm1807, %v1805, %v972
      %v1839 = vsel %vm1807, %v1806, %v974
      %vm1840 = vcmask 195584
      %v1841 = vsel %vm1840, %v1808, %v1040
      %v1842 = vsel %vm1840, %v1809, %v1042
      %v1843 = vsel %vm1840, %v1810, %v1044
      %v1844 = vsel %vm1840, %v1811, %v1046
      %v1845 = vsel %vm1840, %v1812, %v1048
      %v1846 = vsel %vm1840, %v1813, %v1050
      %v1847 = vsel %vm1840, %v1814, %v1052
      %v1848 = vsel %vm1840, %v1815, %v1054
      %v1849 = vsel %vm1840, %v1816, %v1056
      %v1850 = vsel %vm1840, %v1817, %v1058
      %v1851 = vsel %vm1840, %v1818, %v1060
      %v1852 = vsel %vm1840, %v1819, %v1062
      %v1853 = vsel %vm1840, %v1820, %v1064
      %v1854 = vsel %vm1840, %v1821, %v1066
      %v1855 = vsel %vm1840, %v1822, %v1068
      %v1856 = vsel %vm1840, %v1823, %v1070
      %v1857 = vsel %vm1840, %v1824, %v1072
      %v1858 = vsel %vm1840, %v1825, %v1074
      %v1859 = vsel %vm1840, %v1826, %v1076
      %v1860 = vsel %vm1840, %v1827, %v1078
      %v1861 = vsel %vm1840, %v1828, %v1080
      %v1862 = vsel %vm1840, %v1829, %v1082
      %v1863 = vsel %vm1840, %v1830, %v1084
      %v1864 = vsel %vm1840, %v1831, %v1086
      %v1865 = vsel %vm1840, %v1832, %v1088
      %v1866 = vsel %vm1840, %v1833, %v1090
      %v1867 = vsel %vm1840, %v1834, %v1092
      %v1868 = vsel %vm1840, %v1835, %v1094
      %v1869 = vsel %vm1840, %v1836, %v1096
      %v1870 = vsel %vm1840, %v1837, %v1098
      %v1871 = vsel %vm1840, %v1838, %v1100
      %v1872 = vsel %vm1840, %v1839, %v1102
      %vm1873 = vcmask 261120
      %v1874 = vsel %vm1873, %v1841, %v1168
      %v1875 = vsel %vm1873, %v1842, %v1170
      %v1876 = vsel %vm1873, %v1843, %v1172
      %v1877 = vsel %vm1873, %v1844, %v1174
      %v1878 = vsel %vm1873, %v1845, %v1176
      %v1879 = vsel %vm1873, %v1846, %v1178
      %v1880 = vsel %vm1873, %v1847, %v1180
      %v1881 = vsel %vm1873, %v1848, %v1182
      %v1882 = vsel %vm1873, %v1849, %v1184
      %v1883 = vsel %vm1873, %v1850, %v1186
      %v1884 = vsel %vm1873, %v1851, %v1188
      %v1885 = vsel %vm1873, %v1852, %v1190
      %v1886 = vsel %vm1873, %v1853, %v1192
      %v1887 = vsel %vm1873, %v1854, %v1194
      %v1888 = vsel %vm1873, %v1855, %v1196
      %v1889 = vsel %vm1873, %v1856, %v1198
      %v1890 = vsel %vm1873, %v1857, %v1200
      %v1891 = vsel %vm1873, %v1858, %v1202
      %v1892 = vsel %vm1873, %v1859, %v1204
      %v1893 = vsel %vm1873, %v1860, %v1206
      %v1894 = vsel %vm1873, %v1861, %v1208
      %v1895 = vsel %vm1873, %v1862, %v1210
      %v1896 = vsel %vm1873, %v1863, %v1212
      %v1897 = vsel %vm1873, %v1864, %v1214
      %v1898 = vsel %vm1873, %v1865, %v1216
      %v1899 = vsel %vm1873, %v1866, %v1218
      %v1900 = vsel %vm1873, %v1867, %v1220
      %v1901 = vsel %vm1873, %v1868, %v1222
      %v1902 = vsel %vm1873, %v1869, %v1224
      %v1903 = vsel %vm1873, %v1870, %v1226
      %v1904 = vsel %vm1873, %v1871, %v1228
      %v1905 = vsel %vm1873, %v1872, %v1230
      %vm1906 = vcmask 326656
      %v1907 = vsel %vm1906, %v1874, %v1296
      %v1908 = vsel %vm1906, %v1875, %v1298
      %v1909 = vsel %vm1906, %v1876, %v1300
      %v1910 = vsel %vm1906, %v1877, %v1302
      %v1911 = vsel %vm1906, %v1878, %v1304
      %v1912 = vsel %vm1906, %v1879, %v1306
      %v1913 = vsel %vm1906, %v1880, %v1308
      %v1914 = vsel %vm1906, %v1881, %v1310
      %v1915 = vsel %vm1906, %v1882, %v1312
      %v1916 = vsel %vm1906, %v1883, %v1314
      %v1917 = vsel %vm1906, %v1884, %v1316
      %v1918 = vsel %vm1906, %v1885, %v1318
      %v1919 = vsel %vm1906, %v1886, %v1320
      %v1920 = vsel %vm1906, %v1887, %v1322
      %v1921 = vsel %vm1906, %v1888, %v1324
      %v1922 = vsel %vm1906, %v1889, %v1326
      %v1923 = vsel %vm1906, %v1890, %v1328
      %v1924 = vsel %vm1906, %v1891, %v1330
      %v1925 = vsel %vm1906, %v1892, %v1332
      %v1926 = vsel %vm1906, %v1893, %v1334
      %v1927 = vsel %vm1906, %v1894, %v1336
      %v1928 = vsel %vm1906, %v1895, %v1338
      %v1929 = vsel %vm1906, %v1896, %v1340
      %v1930 = vsel %vm1906, %v1897, %v1342
      %v1931 = vsel %vm1906, %v1898, %v1344
      %v1932 = vsel %vm1906, %v1899, %v1346
      %v1933 = vsel %vm1906, %v1900, %v1348
      %v1934 = vsel %vm1906, %v1901, %v1350
      %v1935 = vsel %vm1906, %v1902, %v1352
      %v1936 = vsel %vm1906, %v1903, %v1354
      %v1937 = vsel %vm1906, %v1904, %v1356
      %v1938 = vsel %vm1906, %v1905, %v1358
      %vm1939 = vcmask 392192
      %v1940 = vsel %vm1939, %v1907, %v1424
      %v1941 = vsel %vm1939, %v1908, %v1426
      %v1942 = vsel %vm1939, %v1909, %v1428
      %v1943 = vsel %vm1939, %v1910, %v1430
      %v1944 = vsel %vm1939, %v1911, %v1432
      %v1945 = vsel %vm1939, %v1912, %v1434
      %v1946 = vsel %vm1939, %v1913, %v1436
      %v1947 = vsel %vm1939, %v1914, %v1438
      %v1948 = vsel %vm1939, %v1915, %v1440
      %v1949 = vsel %vm1939, %v1916, %v1442
      %v1950 = vsel %vm1939, %v1917, %v1444
      %v1951 = vsel %vm1939, %v1918, %v1446
      %v1952 = vsel %vm1939, %v1919, %v1448
      %v1953 = vsel %vm1939, %v1920, %v1450
      %v1954 = vsel %vm1939, %v1921, %v1452
      %v1955 = vsel %vm1939, %v1922, %v1454
      %v1956 = vsel %vm1939, %v1923, %v1456
      %v1957 = vsel %vm1939, %v1924, %v1458
      %v1958 = vsel %vm1939, %v1925, %v1460
      %v1959 = vsel %vm1939, %v1926, %v1462
      %v1960 = vsel %vm1939, %v1927, %v1464
      %v1961 = vsel %vm1939, %v1928, %v1466
      %v1962 = vsel %vm1939, %v1929, %v1468
      %v1963 = vsel %vm1939, %v1930, %v1470
      %v1964 = vsel %vm1939, %v1931, %v1472
      %v1965 = vsel %vm1939, %v1932, %v1474
      %v1966 = vsel %vm1939, %v1933, %v1476
      %v1967 = vsel %vm1939, %v1934, %v1478
      %v1968 = vsel %vm1939, %v1935, %v1480
      %v1969 = vsel %vm1939, %v1936, %v1482
      %v1970 = vsel %vm1939, %v1937, %v1484
      %v1971 = vsel %vm1939, %v1938, %v1486
      %vm1972 = vcmask 457728
      %v1973 = vsel %vm1972, %v1940, %v1552
      %v1974 = vsel %vm1972, %v1941, %v1554
      %v1975 = vsel %vm1972, %v1942, %v1556
      %v1976 = vsel %vm1972, %v1943, %v1558
      %v1977 = vsel %vm1972, %v1944, %v1560
      %v1978 = vsel %vm1972, %v1945, %v1562
      %v1979 = vsel %vm1972, %v1946, %v1564
      %v1980 = vsel %vm1972, %v1947, %v1566
      %v1981 = vsel %vm1972, %v1948, %v1568
      %v1982 = vsel %vm1972, %v1949, %v1570
      %v1983 = vsel %vm1972, %v1950, %v1572
      %v1984 = vsel %vm1972, %v1951, %v1574
      %v1985 = vsel %vm1972, %v1952, %v1576
      %v1986 = vsel %vm1972, %v1953, %v1578
      %v1987 = vsel %vm1972, %v1954, %v1580
      %v1988 = vsel %vm1972, %v1955, %v1582
      %v1989 = vsel %vm1972, %v1956, %v1584
      %v1990 = vsel %vm1972, %v1957, %v1586
      %v1991 = vsel %vm1972, %v1958, %v1588
      %v1992 = vsel %vm1972, %v1959, %v1590
      %v1993 = vsel %vm1972, %v1960, %v1592
      %v1994 = vsel %vm1972, %v1961, %v1594
      %v1995 = vsel %vm1972, %v1962, %v1596
      %v1996 = vsel %vm1972, %v1963, %v1598
      %v1997 = vsel %vm1972, %v1964, %v1600
      %v1998 = vsel %vm1972, %v1965, %v1602
      %v1999 = vsel %vm1972, %v1966, %v1604
      %v2000 = vsel %vm1972, %v1967, %v1606
      %v2001 = vsel %vm1972, %v1968, %v1608
      %v2002 = vsel %vm1972, %v1969, %v1610
      %v2003 = vsel %vm1972, %v1970, %v1612
      %v2004 = vsel %vm1972, %v1971, %v1614
      %vm2005 = vcmask 523264
      %v2006 = vsel %vm2005, %v1973, %v1680
      %v2007 = vsel %vm2005, %v1974, %v1682
      %v2008 = vsel %vm2005, %v1975, %v1684
      %v2009 = vsel %vm2005, %v1976, %v1686
      %v2010 = vsel %vm2005, %v1977, %v1688
      %v2011 = vsel %vm2005, %v1978, %v1690
      %v2012 = vsel %vm2005, %v1979, %v1692
      %v2013 = vsel %vm2005, %v1980, %v1694
      %v2014 = vsel %vm2005, %v1981, %v1696
      %v2015 = vsel %vm2005, %v1982, %v1698
      %v2016 = vsel %vm2005, %v1983, %v1700
      %v2017 = vsel %vm2005, %v1984, %v1702
      %v2018 = vsel %vm2005, %v1985, %v1704
      %v2019 = vsel %vm2005, %v1986, %v1706
      %v2020 = vsel %vm2005, %v1987, %v1708
      %v2021 = vsel %vm2005, %v1988, %v1710
      %v2022 = vsel %vm2005, %v1989, %v1712
      %v2023 = vsel %vm2005, %v1990, %v1714
      %v2024 = vsel %vm2005, %v1991, %v1716
      %v2025 = vsel %vm2005, %v1992, %v1718
      %v2026 = vsel %vm2005, %v1993, %v1720
      %v2027 = vsel %vm2005, %v1994, %v1722
      %v2028 = vsel %vm2005, %v1995, %v1724
      %v2029 = vsel %vm2005, %v1996, %v1726
      %v2030 = vsel %vm2005, %v1997, %v1728
      %v2031 = vsel %vm2005, %v1998, %v1730
      %v2032 = vsel %vm2005, %v1999, %v1732
      %v2033 = vsel %vm2005, %v2000, %v1734
      %v2034 = vsel %vm2005, %v2001, %v1736
      %v2035 = vsel %vm2005, %v2002, %v1738
      %v2036 = vsel %vm2005, %v2003, %v1740
      %v2037 = vsel %vm2005, %v2004, %v1742
      %vm2038 = vcmask 588800
      %v2040 = vsel %vm2038, %v2006, 0
      %v2043 = vsel %vm2038, %v2007, 0
      %v2046 = vsel %vm2038, %v2008, 0
      %v2049 = vsel %vm2038, %v2009, 0
      %v2052 = vsel %vm2038, %v2010, 0
      %v2055 = vsel %vm2038, %v2011, 0
      %v2058 = vsel %vm2038, %v2012, 0
      %v2061 = vsel %vm2038, %v2013, 0
      %v2064 = vsel %vm2038, %v2014, 0
      %v2067 = vsel %vm2038, %v2015, 0
      %v2070 = vsel %vm2038, %v2016, 0
      %v2073 = vsel %vm2038, %v2017, 0
      %v2076 = vsel %vm2038, %v2018, 0
      %v2079 = vsel %vm2038, %v2019, 0
      %v2082 = vsel %vm2038, %v2020, 0
      %v2085 = vsel %vm2038, %v2021, 0
      %v2088 = vsel %vm2038, %v2022, 0
      %v2091 = vsel %vm2038, %v2023, 0
      %v2094 = vsel %vm2038, %v2024, 0
      %v2097 = vsel %vm2038, %v2025, 0
      %v2100 = vsel %vm2038, %v2026, 0
      %v2103 = vsel %vm2038, %v2027, 0
      %v2106 = vsel %vm2038, %v2028, 0
      %v2109 = vsel %vm2038, %v2029, 0
      %v2112 = vsel %vm2038, %v2030, 0
      %v2115 = vsel %vm2038, %v2031, 0
      %v2118 = vsel %vm2038, %v2032, 0
      %v2121 = vsel %vm2038, %v2033, 0
      %v2124 = vsel %vm2038, %v2034, 0
      %v2127 = vsel %vm2038, %v2035, 0
      %v2130 = vsel %vm2038, %v2036, 0
      %v2133 = vsel %vm2038, %v2037, 0
      %2135 = vmatprep.subr.mxu0 0.0
      %2136 = vmatpush1.msra.mxu0 0.0
      %2137 = vmatprep.subr.mxu0 0.0
      %2138 = vmatpush1.msra.mxu0 0.0
      %2139 = vmatprep.subr.mxu0 0.0
      %2140 = vmatpush1.msra.mxu0 0.0
      %2141 = vmatprep.subr.mxu0 0.0
      %2142 = vmatpush1.msra.mxu0 0.0
      %2143 = vmatprep.subr.mxu0 0.0
      %2144 = vmatpush1.msra.mxu0 0.0
      %2145 = vmatprep.subr.mxu0 0.0
      %2146 = vmatpush1.msra.mxu0 0.0
      %2147 = vmatprep.subr.mxu0 0.0
      %2148 = vmatpush1.msra.mxu0 0.0
      %2149 = vmatprep.subr.mxu0 0.0
      %2150 = vmatpush1.msra.mxu0 %v386
      %2151 = vmatprep.subr.mxu0 0.0
      %2152 = vmatpush1.msra.mxu0 %v385
      %2153 = vmatprep.subr.mxu0 0.0
      %2154 = vmatpush1.msra.mxu0 %v384
      %2155 = vmatprep.subr.mxu0 0.0
      %2156 = vmatpush1.msra.mxu0 %v383
      %2157 = vmatprep.subr.mxu0 0.0
      %2158 = vmatpush1.msra.mxu0 %v382
      %2159 = vmatprep.subr.mxu0 0.0
      %2160 = vmatpush1.msra.mxu0 %v381
      %2161 = vmatprep.subr.mxu0 0.0
      %2162 = vmatpush1.msra.mxu0 %v380
      %2163 = vmatprep.subr.mxu0 0.0
      %2164 = vmatpush1.msra.mxu0 %v379
      %2165 = vmatprep.subr.mxu0 0.0
      %2166 = vmatpush1.msra.mxu0 %v378
      %2167 = vmatprep.subr.mxu0 0.0
      %2168 = vmatpush2.msra.mxu0 0.0
      %2169 = vmatprep.subr.mxu0 0.0
      %2170 = vmatpush2.msra.mxu0 0.0
      %2171 = vmatprep.subr.mxu0 0.0
      %2172 = vmatpush2.msra.mxu0 0.0
      %2173 = vmatprep.subr.mxu0 0.0
      %2174 = vmatpush2.msra.mxu0 0.0
      %2175 = vmatprep.subr.mxu0 0.0
      %2176 = vmatpush2.msra.mxu0 0.0
      %2177 = vmatprep.subr.mxu0 0.0
      %2178 = vmatpush2.msra.mxu0 0.0
      %2179 = vmatprep.subr.mxu0 0.0
      %2180 = vmatpush2.msra.mxu0 0.0
      %2181 = vmatprep.subr.mxu0 0.0
      %2182 = vmatpush2.msra.mxu0 0.0
      %2183 = vmatprep.subr.mxu0 0.0
      %2184 = vmatpush2.msra.mxu0 0.0
      %2185 = vmatprep.subr.mxu0 0.0
      %2186 = vmatpush2.msra.mxu0 0.0
      %2187 = vmatprep.subr.mxu0 0.0
      %2188 = vmatpush2.msra.mxu0 0.0
      %2189 = vmatprep.subr.mxu0 0.0
      %2190 = vmatpush2.msra.mxu0 0.0
      %2191 = vmatprep.subr.mxu0 0.0
      %2192 = vmatpush2.msra.mxu0 0.0
      %2193 = vmatprep.subr.mxu0 0.0
      %2194 = vmatpush2.msra.mxu0 0.0
      %2195 = vmatprep.subr.mxu0 0.0
      %2196 = vmatpush2.msra.mxu0 0.0
      %2197 = vmatprep.subr.mxu0 0.0
      %2198 = vmatpush2.msra.mxu0 0.0
      %2199 = vmatprep.mubr.f32.mxu0 0.0
      %2200 = vmatmul.mubr.f32.gmra.mxu0 %v2040
      %v2201 = vpop.f32.mrf.mxu0
      %v2202 = vadd.f32 0.0, %v2201
      %v2203 = vpop.f32.mrf.mxu0
      %2204 = vmatprep.mubr.f32.mxu0 0.0
      %2205 = vmatmul.mubr.f32.gmra.mxu0 %v2043
      %v2206 = vpop.f32.mrf.mxu0
      %v2207 = vadd.f32 0.0, %v2206
      %v2208 = vpop.f32.mrf.mxu0
      %2209 = vmatprep.mubr.f32.mxu0 0.0
      %2210 = vmatmul.mubr.f32.gmra.mxu0 %v2046
      %v2211 = vpop.f32.mrf.mxu0
      %v2212 = vadd.f32 0.0, %v2211
      %v2213 = vpop.f32.mrf.mxu0
      %2214 = vmatprep.mubr.f32.mxu0 0.0
      %2215 = vmatmul.mubr.f32.gmra.mxu0 %v2049
      %v2216 = vpop.f32.mrf.mxu0
      %v2217 = vadd.f32 0.0, %v2216
      %v2218 = vpop.f32.mrf.mxu0
      %2219 = vmatprep.mubr.f32.mxu0 0.0
      %2220 = vmatmul.mubr.f32.gmra.mxu0 %v2052
      %v2221 = vpop.f32.mrf.mxu0
      %v2222 = vadd.f32 0.0, %v2221
      %v2223 = vpop.f32.mrf.mxu0
      %2224 = vmatprep.mubr.f32.mxu0 0.0
      %2225 = vmatmul.mubr.f32.gmra.mxu0 %v2055
      %v2226 = vpop.f32.mrf.mxu0
      %v2227 = vadd.f32 0.0, %v2226
      %v2228 = vpop.f32.mrf.mxu0
      %2229 = vmatprep.mubr.f32.mxu0 0.0
      %2230 = vmatmul.mubr.f32.gmra.mxu0 %v2058
      %v2231 = vpop.f32.mrf.mxu0
      %v2232 = vadd.f32 0.0, %v2231
      %v2233 = vpop.f32.mrf.mxu0
      %2234 = vmatprep.mubr.f32.mxu0 0.0
      %2235 = vmatmul.mubr.f32.gmra.mxu0 %v2061
      %v2236 = vpop.f32.mrf.mxu0
      %v2237 = vadd.f32 0.0, %v2236
      %v2238 = vpop.f32.mrf.mxu0
      %2239 = vmatprep.mubr.f32.mxu0 0.0
      %2240 = vmatmul.mubr.f32.gmra.mxu0 %v2064
      %v2241 = vpop.f32.mrf.mxu0
      %v2242 = vadd.f32 0.0, %v2241
      %v2243 = vpop.f32.mrf.mxu0
      %2244 = vmatprep.mubr.f32.mxu0 0.0
      %2245 = vmatmul.mubr.f32.gmra.mxu0 %v2067
      %v2246 = vpop.f32.mrf.mxu0
      %v2247 = vadd.f32 0.0, %v2246
      %v2248 = vpop.f32.mrf.mxu0
      %2249 = vmatprep.mubr.f32.mxu0 0.0
      %2250 = vmatmul.mubr.f32.gmra.mxu0 %v2070
      %v2251 = vpop.f32.mrf.mxu0
      %v2252 = vadd.f32 0.0, %v2251
      %v2253 = vpop.f32.mrf.mxu0
      %2254 = vmatprep.mubr.f32.mxu0 0.0
      %2255 = vmatmul.mubr.f32.gmra.mxu0 %v2073
      %v2256 = vpop.f32.mrf.mxu0
      %v2257 = vadd.f32 0.0, %v2256
      %v2258 = vpop.f32.mrf.mxu0
      %2259 = vmatprep.mubr.f32.mxu0 0.0
      %2260 = vmatmul.mubr.f32.gmra.mxu0 %v2076
      %v2261 = vpop.f32.mrf.mxu0
      %v2262 = vadd.f32 0.0, %v2261
      %v2263 = vpop.f32.mrf.mxu0
      %2264 = vmatprep.mubr.f32.mxu0 0.0
      %2265 = vmatmul.mubr.f32.gmra.mxu0 %v2079
      %v2266 = vpop.f32.mrf.mxu0
      %v2267 = vadd.f32 0.0, %v2266
      %v2268 = vpop.f32.mrf.mxu0
      %2269 = vmatprep.mubr.f32.mxu0 0.0
      %2270 = vmatmul.mubr.f32.gmra.mxu0 %v2082
      %v2271 = vpop.f32.mrf.mxu0
      %v2272 = vadd.f32 0.0, %v2271
      %v2273 = vpop.f32.mrf.mxu0
      %2274 = vmatprep.mubr.f32.mxu0 0.0
      %2275 = vmatmul.mubr.f32.gmra.mxu0 %v2085
      %v2276 = vpop.f32.mrf.mxu0
      %v2277 = vadd.f32 0.0, %v2276
      %v2278 = vpop.f32.mrf.mxu0
      %2279 = vmatprep.mubr.f32.mxu0 0.0
      %2280 = vmatmul.mubr.f32.gmra.mxu0 %v2088
      %v2281 = vpop.f32.mrf.mxu0
      %v2282 = vadd.f32 0.0, %v2281
      %v2283 = vpop.f32.mrf.mxu0
      %2284 = vmatprep.mubr.f32.mxu0 0.0
      %2285 = vmatmul.mubr.f32.gmra.mxu0 %v2091
      %v2286 = vpop.f32.mrf.mxu0
      %v2287 = vadd.f32 0.0, %v2286
      %v2288 = vpop.f32.mrf.mxu0
      %2289 = vmatprep.mubr.f32.mxu0 0.0
      %2290 = vmatmul.mubr.f32.gmra.mxu0 %v2094
      %v2291 = vpop.f32.mrf.mxu0
      %v2292 = vadd.f32 0.0, %v2291
      %v2293 = vpop.f32.mrf.mxu0
      %2294 = vmatprep.mubr.f32.mxu0 0.0
      %2295 = vmatmul.mubr.f32.gmra.mxu0 %v2097
      %v2296 = vpop.f32.mrf.mxu0
      %v2297 = vadd.f32 0.0, %v2296
      %v2298 = vpop.f32.mrf.mxu0
      %2299 = vmatprep.mubr.f32.mxu0 0.0
      %2300 = vmatmul.mubr.f32.gmra.mxu0 %v2100
      %v2301 = vpop.f32.mrf.mxu0
      %v2302 = vadd.f32 0.0, %v2301
      %v2303 = vpop.f32.mrf.mxu0
      %2304 = vmatprep.mubr.f32.mxu0 0.0
      %2305 = vmatmul.mubr.f32.gmra.mxu0 %v2103
      %v2306 = vpop.f32.mrf.mxu0
      %v2307 = vadd.f32 0.0, %v2306
      %v2308 = vpop.f32.mrf.mxu0
      %2309 = vmatprep.mubr.f32.mxu0 0.0
      %2310 = vmatmul.mubr.f32.gmra.mxu0 %v2106
      %v2311 = vpop.f32.mrf.mxu0
      %v2312 = vadd.f32 0.0, %v2311
      %v2313 = vpop.f32.mrf.mxu0
      %2314 = vmatprep.mubr.f32.mxu0 0.0
      %2315 = vmatmul.mubr.f32.gmra.mxu0 %v2109
      %v2316 = vpop.f32.mrf.mxu0
      %v2317 = vadd.f32 0.0, %v2316
      %v2318 = vpop.f32.mrf.mxu0
      %2319 = vmatprep.mubr.f32.mxu0 0.0
      %2320 = vmatmul.mubr.f32.gmra.mxu0 %v2112
      %v2321 = vpop.f32.mrf.mxu0
      %v2322 = vadd.f32 0.0, %v2321
      %v2323 = vpop.f32.mrf.mxu0
      %2324 = vmatprep.mubr.f32.mxu0 0.0
      %2325 = vmatmul.mubr.f32.gmra.mxu0 %v2115
      %v2326 = vpop.f32.mrf.mxu0
      %v2327 = vadd.f32 0.0, %v2326
      %v2328 = vpop.f32.mrf.mxu0
      %2329 = vmatprep.mubr.f32.mxu0 0.0
      %2330 = vmatmul.mubr.f32.gmra.mxu0 %v2118
      %v2331 = vpop.f32.mrf.mxu0
      %v2332 = vadd.f32 0.0, %v2331
      %v2333 = vpop.f32.mrf.mxu0
      %2334 = vmatprep.mubr.f32.mxu0 0.0
      %2335 = vmatmul.mubr.f32.gmra.mxu0 %v2121
      %v2336 = vpop.f32.mrf.mxu0
      %v2337 = vadd.f32 0.0, %v2336
      %v2338 = vpop.f32.mrf.mxu0
      %2339 = vmatprep.mubr.f32.mxu0 0.0
      %2340 = vmatmul.mubr.f32.gmra.mxu0 %v2124
      %v2341 = vpop.f32.mrf.mxu0
      %v2342 = vadd.f32 0.0, %v2341
      %v2343 = vpop.f32.mrf.mxu0
      %2344 = vmatprep.mubr.f32.mxu0 0.0
      %2345 = vmatmul.mubr.f32.gmra.mxu0 %v2127
      %v2346 = vpop.f32.mrf.mxu0
      %v2347 = vadd.f32 0.0, %v2346
      %v2348 = vpop.f32.mrf.mxu0
      %2349 = vmatprep.mubr.f32.mxu0 0.0
      %2350 = vmatmul.mubr.f32.gmra.mxu0 %v2130
      %v2351 = vpop.f32.mrf.mxu0
      %v2352 = vadd.f32 0.0, %v2351
      %v2353 = vpop.f32.mrf.mxu0
      %2354 = vmatprep.mubr.f32.mxu0 0.0
      %2355 = vmatmul.mubr.f32.gmra.mxu0 %v2133
      %v2356 = vpop.f32.mrf.mxu0
      %v2357 = vadd.f32 0.0, %v2356
      %v2358 = vpop.f32.mrf.mxu0
      %2359 = vdwg.mxu0
      %2360 = vst.msk [vmem:[%s231] sm:$0xff] %vm387, %v2202
      %2361 = vst.msk [vmem:[%s231 + $0x8] sm:$0xff] %vm387, %v2207
      %2362 = vst.msk [vmem:[%s231 + $0x10] sm:$0xff] %vm387, %v2212
      %2363 = vst.msk [vmem:[%s231 + $0x18] sm:$0xff] %vm387, %v2217
      %2364 = vst.msk [vmem:[%s231 + $0x20] sm:$0xff] %vm387, %v2222
      %2365 = vst.msk [vmem:[%s231 + $0x28] sm:$0xff] %vm387, %v2227
      %2366 = vst.msk [vmem:[%s231 + $0x30] sm:$0xff] %vm387, %v2232
      %2367 = vst.msk [vmem:[%s231 + $0x38] sm:$0xff] %vm387, %v2237
      %2368 = vst.msk [vmem:[%s231 + $0x40] sm:$0xff] %vm387, %v2242
      %2369 = vst.msk [vmem:[%s231 + $0x48] sm:$0xff] %vm387, %v2247
      %2370 = vst.msk [vmem:[%s231 + $0x50] sm:$0xff] %vm387, %v2252
      %2371 = vst.msk [vmem:[%s231 + $0x58] sm:$0xff] %vm387, %v2257
      %2372 = vst.msk [vmem:[%s231 + $0x60] sm:$0xff] %vm387, %v2262
      %2373 = vst.msk [vmem:[%s231 + $0x68] sm:$0xff] %vm387, %v2267
      %2374 = vst.msk [vmem:[%s231 + $0x70] sm:$0xff] %vm387, %v2272
      %2375 = vst.msk [vmem:[%s231 + $0x78] sm:$0xff] %vm387, %v2277
      %2376 = vst.msk [vmem:[%s231 + $0x80] sm:$0xff] %vm387, %v2282
      %2377 = vst.msk [vmem:[%s231 + $0x88] sm:$0xff] %vm387, %v2287
      %2378 = vst.msk [vmem:[%s231 + $0x90] sm:$0xff] %vm387, %v2292
      %2379 = vst.msk [vmem:[%s231 + $0x98] sm:$0xff] %vm387, %v2297
      %2380 = vst.msk [vmem:[%s231 + $0xa0] sm:$0xff] %vm387, %v2302
      %2381 = vst.msk [vmem:[%s231 + $0xa8] sm:$0xff] %vm387, %v2307
      %2382 = vst.msk [vmem:[%s231 + $0xb0] sm:$0xff] %vm387, %v2312
      %2383 = vst.msk [vmem:[%s231 + $0xb8] sm:$0xff] %vm387, %v2317
      %2384 = vst.msk [vmem:[%s231 + $0xc0] sm:$0xff] %vm387, %v2322
      %2385 = vst.msk [vmem:[%s231 + $0xc8] sm:$0xff] %vm387, %v2327
      %2386 = vst.msk [vmem:[%s231 + $0xd0] sm:$0xff] %vm387, %v2332
      %2387 = vst.msk [vmem:[%s231 + $0xd8] sm:$0xff] %vm387, %v2337
      %2388 = vst.msk [vmem:[%s231 + $0xe0] sm:$0xff] %vm387, %v2342
      %2389 = vst.msk [vmem:[%s231 + $0xe8] sm:$0xff] %vm387, %v2347
      %2390 = vst.msk [vmem:[%s231 + $0xf0] sm:$0xff] %vm387, %v2352
      %2391 = vst.msk [vmem:[%s231 + $0xf8] sm:$0xff] %vm387, %v2357
      %v2392 = vsel %vm387, %v2202, 0.0
      %v2393 = vsel %vm387, %v2207, 0.0
      %v2394 = vadd.f32 %v2392, %v2393
      %v2395 = vsel %vm387, %v2212, 0.0
      %v2396 = vadd.f32 %v2394, %v2395
      %v2397 = vsel %vm387, %v2217, 0.0
      %v2398 = vadd.f32 %v2396, %v2397
      %v2399 = vsel %vm387, %v2222, 0.0
      %v2400 = vadd.f32 %v2398, %v2399
      %v2401 = vsel %vm387, %v2227, 0.0
      %v2402 = vadd.f32 %v2400, %v2401
      %v2403 = vsel %vm387, %v2232, 0.0
      %v2404 = vadd.f32 %v2402, %v2403
      %v2405 = vsel %vm387, %v2237, 0.0
      %v2406 = vadd.f32 %v2404, %v2405
      %v2407 = vsel %vm387, %v2242, 0.0
      %v2408 = vadd.f32 %v2406, %v2407
      %v2409 = vsel %vm387, %v2247, 0.0
      %v2410 = vadd.f32 %v2408, %v2409
      %v2411 = vsel %vm387, %v2252, 0.0
      %v2412 = vadd.f32 %v2410, %v2411
      %v2413 = vsel %vm387, %v2257, 0.0
      %v2414 = vadd.f32 %v2412, %v2413
      %v2415 = vsel %vm387, %v2262, 0.0
      %v2416 = vadd.f32 %v2414, %v2415
      %v2417 = vsel %vm387, %v2267, 0.0
      %v2418 = vadd.f32 %v2416, %v2417
      %v2419 = vsel %vm387, %v2272, 0.0
      %v2420 = vadd.f32 %v2418, %v2419
      %v2421 = vsel %vm387, %v2277, 0.0
      %v2422 = vadd.f32 %v2420, %v2421
      %v2423 = vsel %vm387, %v2282, 0.0
      %v2424 = vadd.f32 %v2422, %v2423
      %v2425 = vsel %vm387, %v2287, 0.0
      %v2426 = vadd.f32 %v2424, %v2425
      %v2427 = vsel %vm387, %v2292, 0.0
      %v2428 = vadd.f32 %v2426, %v2427
      %v2429 = vsel %vm387, %v2297, 0.0
      %v2430 = vadd.f32 %v2428, %v2429
      %v2431 = vsel %vm387, %v2302, 0.0
      %v2432 = vadd.f32 %v2430, %v2431
      %v2433 = vsel %vm387, %v2307, 0.0
      %v2434 = vadd.f32 %v2432, %v2433
      %v2435 = vsel %vm387, %v2312, 0.0
      %v2436 = vadd.f32 %v2434, %v2435
      %v2437 = vsel %vm387, %v2317, 0.0
      %v2438 = vadd.f32 %v2436, %v2437
      %v2439 = vsel %vm387, %v2322, 0.0
      %v2440 = vadd.f32 %v2438, %v2439
      %v2441 = vsel %vm387, %v2327, 0.0
      %v2442 = vadd.f32 %v2440, %v2441
      %v2443 = vsel %vm387, %v2332, 0.0
      %v2444 = vadd.f32 %v2442, %v2443
      %v2445 = vsel %vm387, %v2337, 0.0
      %v2446 = vadd.f32 %v2444, %v2445
      %v2447 = vsel %vm387, %v2342, 0.0
      %v2448 = vadd.f32 %v2446, %v2447
      %v2449 = vsel %vm387, %v2347, 0.0
      %v2450 = vadd.f32 %v2448, %v2449
      %v2451 = vsel %vm387, %v2352, 0.0
      %v2452 = vadd.f32 %v2450, %v2451
      %v2453 = vsel %vm387, %v2357, 0.0
      %v2454 = vadd.f32 %v2452, %v2453
      %v2455 = vrot.slane %v2454, 4
      %v2456 = vadd.f32 %v2454, %v2455
      %v2457 = vrot.slane %v2456, 2
      %v2458 = vadd.f32 %v2456, %v2457
      %v2459 = vrot.slane %v2458, 1
      %v2460 = vadd.f32 %v2458, %v2459
      %v2461 = vmul.f32 %v2202, %v2202
      %v2462 = vmul.f32 %v2207, %v2207
      %v2463 = vmul.f32 %v2212, %v2212
      %v2464 = vmul.f32 %v2217, %v2217
      %v2465 = vmul.f32 %v2222, %v2222
      %v2466 = vmul.f32 %v2227, %v2227
      %v2467 = vmul.f32 %v2232, %v2232
      %v2468 = vmul.f32 %v2237, %v2237
      %v2469 = vmul.f32 %v2242, %v2242
      %v2470 = vmul.f32 %v2247, %v2247
      %v2471 = vmul.f32 %v2252, %v2252
      %v2472 = vmul.f32 %v2257, %v2257
      %v2473 = vmul.f32 %v2262, %v2262
      %v2474 = vmul.f32 %v2267, %v2267
      %v2475 = vmul.f32 %v2272, %v2272
      %v2476 = vmul.f32 %v2277, %v2277
      %v2477 = vmul.f32 %v2282, %v2282
      %v2478 = vmul.f32 %v2287, %v2287
      %v2479 = vmul.f32 %v2292, %v2292
      %v2480 = vmul.f32 %v2297, %v2297
      %v2481 = vmul.f32 %v2302, %v2302
      %v2482 = vmul.f32 %v2307, %v2307
      %v2483 = vmul.f32 %v2312, %v2312
      %v2484 = vmul.f32 %v2317, %v2317
      %v2485 = vmul.f32 %v2322, %v2322
      %v2486 = vmul.f32 %v2327, %v2327
      %v2487 = vmul.f32 %v2332, %v2332
      %v2488 = vmul.f32 %v2337, %v2337
      %v2489 = vmul.f32 %v2342, %v2342
      %v2490 = vmul.f32 %v2347, %v2347
      %v2491 = vmul.f32 %v2352, %v2352
      %v2492 = vmul.f32 %v2357, %v2357
      %v2493 = vsel %vm387, %v2461, 0.0
      %v2494 = vsel %vm387, %v2462, 0.0
      %v2495 = vadd.f32 %v2493, %v2494
      %v2496 = vsel %vm387, %v2463, 0.0
      %v2497 = vadd.f32 %v2495, %v2496
      %v2498 = vsel %vm387, %v2464, 0.0
      %v2499 = vadd.f32 %v2497, %v2498
      %v2500 = vsel %vm387, %v2465, 0.0
      %v2501 = vadd.f32 %v2499, %v2500
      %v2502 = vsel %vm387, %v2466, 0.0
      %v2503 = vadd.f32 %v2501, %v2502
      %v2504 = vsel %vm387, %v2467, 0.0
      %v2505 = vadd.f32 %v2503, %v2504
      %v2506 = vsel %vm387, %v2468, 0.0
      %v2507 = vadd.f32 %v2505, %v2506
      %v2508 = vsel %vm387, %v2469, 0.0
      %v2509 = vadd.f32 %v2507, %v2508
      %v2510 = vsel %vm387, %v2470, 0.0
      %v2511 = vadd.f32 %v2509, %v2510
      %v2512 = vsel %vm387, %v2471, 0.0
      %v2513 = vadd.f32 %v2511, %v2512
      %v2514 = vsel %vm387, %v2472, 0.0
      %v2515 = vadd.f32 %v2513, %v2514
      %v2516 = vsel %vm387, %v2473, 0.0
      %v2517 = vadd.f32 %v2515, %v2516
      %v2518 = vsel %vm387, %v2474, 0.0
      %v2519 = vadd.f32 %v2517, %v2518
      %v2520 = vsel %vm387, %v2475, 0.0
      %v2521 = vadd.f32 %v2519, %v2520
      %v2522 = vsel %vm387, %v2476, 0.0
      %v2523 = vadd.f32 %v2521, %v2522
      %v2524 = vsel %vm387, %v2477, 0.0
      %v2525 = vadd.f32 %v2523, %v2524
      %v2526 = vsel %vm387, %v2478, 0.0
      %v2527 = vadd.f32 %v2525, %v2526
      %v2528 = vsel %vm387, %v2479, 0.0
      %v2529 = vadd.f32 %v2527, %v2528
      %v2530 = vsel %vm387, %v2480, 0.0
      %v2531 = vadd.f32 %v2529, %v2530
      %v2532 = vsel %vm387, %v2481, 0.0
      %v2533 = vadd.f32 %v2531, %v2532
      %v2534 = vsel %vm387, %v2482, 0.0
      %v2535 = vadd.f32 %v2533, %v2534
      %v2536 = vsel %vm387, %v2483, 0.0
      %v2537 = vadd.f32 %v2535, %v2536
      %v2538 = vsel %vm387, %v2484, 0.0
      %v2539 = vadd.f32 %v2537, %v2538
      %v2540 = vsel %vm387, %v2485, 0.0
      %v2541 = vadd.f32 %v2539, %v2540
      %v2542 = vsel %vm387, %v2486, 0.0
      %v2543 = vadd.f32 %v2541, %v2542
      %v2544 = vsel %vm387, %v2487, 0.0
      %v2545 = vadd.f32 %v2543, %v2544
      %v2546 = vsel %vm387, %v2488, 0.0
      %v2547 = vadd.f32 %v2545, %v2546
      %v2548 = vsel %vm387, %v2489, 0.0
      %v2549 = vadd.f32 %v2547, %v2548
      %v2550 = vsel %vm387, %v2490, 0.0
      %v2551 = vadd.f32 %v2549, %v2550
      %v2552 = vsel %vm387, %v2491, 0.0
      %v2553 = vadd.f32 %v2551, %v2552
      %v2554 = vsel %vm387, %v2492, 0.0
      %v2555 = vadd.f32 %v2553, %v2554
      %v2556 = vrot.slane %v2555, 4
      %v2557 = vadd.f32 %v2555, %v2556
      %v2558 = vrot.slane %v2557, 2
      %v2559 = vadd.f32 %v2557, %v2558
      %v2560 = vrot.slane %v2559, 1
      %v2561 = vadd.f32 %v2559, %v2560
      %vm2562 = vcmask 1040384
      %v2563 = vsel %vm2562, %v2460, %v2561
      %2564 = vst.msk [vmem:[%s235] sm:$0x3] %vm390, %v2563
      %p2565 = scmp.lt.s32.totalorder %s17, 1
      %s2566 = scalar_select %p2565, %s17, 1
      %s2567 = smul.addr %s2566, 32
      %s2568 = smul.addr %s2567, 8
      %s2569 = scalar_lea.vmem %s4, %s2568
      %p2570 = scmp.lt.s32.totalorder %s17, 1
      %s2571 = scalar_select %p2570, %s17, 1
      %s2572 = smul.addr %s2571, 2
      %s2573 = scalar_lea.vmem %s5, %s2572
      // Predicated region
      $region37: #{first_residual_block.4} parent=35 // pred_check
        %p2574 = pneg %p124
      $region38: #{first_residual_block.4} parent=35 // pred_check_branch
        %2576 = sbr.rel (%p2574) target = $region40
      $region39: #{first_residual_block.4} parent=35 // pred_region
        _
      $region40: #{first_residual_block.4} parent=35 // pred_fallthru
        _
      // Predicated region
      $region41: #{first_residual_block.4} parent=35 // pred_check
        %p2577 = pneg %p150
      $region42: #{first_residual_block.4} parent=35 // pred_check_branch
        %2579 = sbr.rel (%p2577) target = $region44
      $region43: #{first_residual_block.4} parent=35 // pred_region
        _
      $region44: #{first_residual_block.4} parent=35 // pred_fallthru
        _
    $region36: #{first_residual_block.4} parent=5 // pred_fallthru
      _
    %p2580 = scmp.le.s32.totalorder 2, %s12
    // Predicated region
    $region45: #{first_residual_block.4} parent=5 // pred_check
      %p2581 = pneg %p2580
    $region46: #{first_residual_block.4} parent=5 // pred_check_branch
      %2583 = sbr.rel (%p2581) target = $region48
    $region47: #{first_residual_block.4} parent=5 // pred_region
      %s2584 = ssub.s32 %s12, 2
      // Predicated region
      $region49: #{first_residual_block.4} parent=47 // pred_check
        %p2585 = pneg %p130
      $region50: #{first_residual_block.4} parent=47 // pred_check_branch
        %2587 = sbr.rel (%p2585) target = $region52
      $region51: #{first_residual_block.4} parent=47 // pred_region
        %p2588 = scmp.lt.s32.totalorder %s18, 1
        %s2589 = scalar_select %p2588, %s18, 1
        %s2590 = smul.addr %s2589, 32
        %s2591 = smul.addr %s2590, 8
        %s2592 = scalar_lea.vmem %s4, %s2591
      $region52: #{first_residual_block.4} parent=47 // pred_fallthru
        _
      // Predicated region
      $region53: #{first_residual_block.4} parent=47 // pred_check
        %p2593 = pneg %p156
      $region54: #{first_residual_block.4} parent=47 // pred_check_branch
        %2595 = sbr.rel (%p2593) target = $region56
      $region55: #{first_residual_block.4} parent=47 // pred_region
        %p2596 = scmp.lt.s32.totalorder %s18, 1
        %s2597 = scalar_select %p2596, %s18, 1
        %s2598 = smul.addr %s2597, 2
        %s2599 = scalar_lea.vmem %s5, %s2598
      $region56: #{first_residual_block.4} parent=47 // pred_fallthru
        _
    $region48: #{first_residual_block.4} parent=5 // pred_fallthru
      _
  $region6: #{first_residual_block.4} parent=0 // loop_footer
    %s16 = sadd.s32 1, %s12
  $region7: #{first_residual_block.4} parent=0 // loop_footer_branch
    %11 = sbr.rel target = $region3
  $region8: #{first_residual_block.4} parent=0 // loop_exit
    _

</llo_original>
